<compile_context>
chip_gen: v6e
topology: v6e:2x2x1
jax: 0.10.0
libtpu: 0.0.40
codegen_flags: <defaults>
</compile_context>

<pallas_src>
from functools import lru_cache, partial

import jax
import jax.numpy as jnp
from jax import lax
from jax.experimental import pallas as pl
from jax.experimental.pallas import tpu as pltpu


LANE = 128   # TPU lane width: output-channel padding target


# ---------------------------------------------------------------------------
# static helpers (trace-time only)
# ---------------------------------------------------------------------------
def _round_up(x, m):
    return (x + m - 1) // m * m


@lru_cache(maxsize=None)
def _tpu_budget():
    """(vmem_limit_bytes, row_tile_cap) per TPU generation."""
    vmem_cap = 64 * 1024 * 1024
    try:
        info = pltpu.get_tpu_info()
        vmem_cap = int(getattr(info, "vmem_capacity_bytes", vmem_cap))
    except Exception:
        pass
    if vmem_cap >= 96 * 1024 * 1024:          # v5e / v6e: 128 MiB physical VMEM
        return 64 * 1024 * 1024, 2048
    return 40 * 1024 * 1024, 1024             # v7x: 64 MiB physical VMEM


def _row_tile(total, cap):
    """Largest multiple-of-8 divisor of `total` <= cap, preferring >=2 steps."""
    cap = min(cap, total)
    if total >= 16:
        cap = min(cap, max(8, total // 2))    # >=2 grid steps -> megacore split
    for t in range(cap, 7, -1):
        if total % t == 0 and t % 8 == 0:
            return t
    return total


def _h_tile(h, w, row_cap):
    """Largest divisor of `h` whose tile (t * w rows) stays <= row_cap."""
    for t in range(h, 0, -1):
        if h % t == 0 and t * w <= row_cap:
            return t
    return 1


# ---------------------------------------------------------------------------
# Pallas kernels
# ---------------------------------------------------------------------------
def _conv1x1_stats_kernel(x_ref, w_ref, b_ref, y_ref, s_ref, ss_ref):
    """y = x @ w + b ; emit y plus per-tile [sum, sum-sq] partials."""
    y = jnp.dot(x_ref[...], w_ref[...],
                preferred_element_type=jnp.float32) + b_ref[...]
    y_ref[...] = y.astype(y_ref.dtype)
    s_ref[...] = jnp.sum(y, axis=0, keepdims=True).reshape(1, 1, -1)
    ss_ref[...] = jnp.sum(y * y, axis=0, keepdims=True).reshape(1, 1, -1)


def _affine_relu_conv1x1_stats_kernel(y_ref, sc_ref, sh_ref, w_ref, b_ref,
                                      o_ref, s_ref, ss_ref):
    """h = relu(y*scale + shift); o = h @ w + b; emit o plus stats partials."""
    w = w_ref[...]
    h = jnp.maximum(
        y_ref[...].astype(jnp.float32) * sc_ref[...] + sh_ref[...], 0.0)
    o = jnp.dot(h.astype(w.dtype), w,
                preferred_element_type=jnp.float32) + b_ref[...]
    o_ref[...] = o.astype(o_ref.dtype)
    s_ref[...] = jnp.sum(o, axis=0, keepdims=True).reshape(1, 1, -1)
    ss_ref[...] = jnp.sum(o * o, axis=0, keepdims=True).reshape(1, 1, -1)


def _affine_relu_kernel(y_ref, sc_ref, sh_ref, o_ref):
    """Elementwise BN-affine + ReLU."""
    h = jnp.maximum(
        y_ref[...].astype(jnp.float32) * sc_ref[...] + sh_ref[...], 0.0)
    o_ref[...] = h.astype(o_ref.dtype)


def _deconv_polyphase_kernel(x_ref, nx_ref, sc_ref, sh_ref, w_ref, b_ref,
                             y_ref, s_ref, ss_ref, *, tile_h, width, midp):
    """Fused BN1-affine+ReLU + polyphase stride-2 3x3 transposed conv.

    x_ref  : (1, tile_h, width, midp)   pre-BN stage-1 output rows of this tile
    nx_ref : (1, 1, width, midp)        first row of the NEXT tile (halo)
    sc/sh  : (1, midp)                  BN1 scale / shift (f32)
    w_ref  : (4*midp, 4*midp)           K-concat taps [self|right|down|diag]
                                        x  N-parity blocks [g0|g1|g2|g3]
    b_ref  : (1, 4*midp)                bias tiled over the 4 output parities
    y_ref  : (4, 1, tile_h, width, midp) pre-BN2 output, parity-major
    s_ref / ss_ref : (1, 1, 1, 4*midp)  per-(parity, channel) sum / sum-sq
    """
    rows = tile_h * width
    w = w_ref[...]
    sc = sc_ref[...]
    sh = sh_ref[...]

    # stage-1 BN affine + ReLU fused here (no standalone h1 HBM pass)
    h = jnp.maximum(x_ref[0].astype(jnp.float32) * sc + sh, 0.0)
    hn = jnp.maximum(nx_ref[0, 0].astype(jnp.float32) * sc + sh, 0.0)
    # halo row below the last image row must contribute ZERO post-activation
    keep = (pl.program_id(1) + 1 < pl.num_programs(1)).astype(jnp.float32)
    hn = hn * keep

    h = h.astype(w.dtype)
    hn = hn.astype(w.dtype)
    hfull = jnp.concatenate([h, hn[None]], axis=0)              # (th+1, W, midp)

    # width-neighbour band x[., b+1]; right edge contributes zero
    zcol = jnp.zeros((tile_h + 1, 1, midp), w.dtype)
    hshift = jnp.concatenate([hfull[:, 1:, :], zcol], axis=1)   # (th+1, W, midp)

    # single K-concat MXU matmul: [self | right | down | diag] @ wcat
    x4 = jnp.concatenate(
        [hfull[:tile_h].reshape(rows, midp),     # x[a  , b  ]
         hshift[:tile_h].reshape(rows, midp),    # x[a  , b+1]
         hfull[1:].reshape(rows, midp),          # x[a+1, b  ]
         hshift[1:].reshape(rows, midp)],        # x[a+1, b+1]
        axis=-1)                                 # (rows, 4*midp)
    acc = jnp.dot(x4, w, preferred_element_type=jnp.float32) + b_ref[...]

    s_ref[...] = jnp.sum(acc, axis=0, keepdims=True).reshape(1, 1, 1, -1)
    ss_ref[...] = jnp.sum(acc * acc, axis=0, keepdims=True).reshape(1, 1, 1, -1)

    out = acc.astype(y_ref.dtype)
    for g in range(4):   # parity g = 2*(oh%2) + (ow%2); lane-aligned slices
        y_ref[g, 0] = out[:, g * midp:(g + 1) * midp].reshape(
            tile_h, width, midp)


# ---------------------------------------------------------------------------
# pallas_call wrappers
# ---------------------------------------------------------------------------
def _conv1x1_stats(x2, w, b):
    m, cin = x2.shape
    cout = w.shape[1]
    vmem, row_cap = _tpu_budget()
    tm = _row_tile(m, row_cap)
    grid = (m // tm,)
    return pl.pallas_call(
        _conv1x1_stats_kernel,
        grid=grid,
        in_specs=[
            pl.BlockSpec((tm, cin), lambda i: (i, 0)),
            pl.BlockSpec((cin, cout), lambda i: (0, 0)),
            pl.BlockSpec((1, cout), lambda i: (0, 0)),
        ],
        out_specs=[
            pl.BlockSpec((tm, cout), lambda i: (i, 0)),
            pl.BlockSpec((1, 1, cout), lambda i: (i, 0, 0)),
            pl.BlockSpec((1, 1, cout), lambda i: (i, 0, 0)),
        ],
        out_shape=[
            jax.ShapeDtypeStruct((m, cout), w.dtype),
            jax.ShapeDtypeStruct((grid[0], 1, cout), jnp.float32),
            jax.ShapeDtypeStruct((grid[0], 1, cout), jnp.float32),
        ],
        compiler_params=pltpu.CompilerParams(
            dimension_semantics=("parallel",), vmem_limit_bytes=vmem),
    )(x2, w, b)


def _affine_relu_conv1x1_stats(y, scale, shift, w, b):
    m, cin = y.shape
    cout = w.shape[1]
    vmem, row_cap = _tpu_budget()
    tm = _row_tile(m, row_cap)
    grid = (m // tm,)
    return pl.pallas_call(
        _affine_relu_conv1x1_stats_kernel,
        grid=grid,
        in_specs=[
            pl.BlockSpec((tm, cin), lambda i: (i, 0)),
            pl.BlockSpec((1, cin), lambda i: (0, 0)),
            pl.BlockSpec((1, cin), lambda i: (0, 0)),
            pl.BlockSpec((cin, cout), lambda i: (0, 0)),
            pl.BlockSpec((1, cout), lambda i: (0, 0)),
        ],
        out_specs=[
            pl.BlockSpec((tm, cout), lambda i: (i, 0)),
            pl.BlockSpec((1, 1, cout), lambda i: (i, 0, 0)),
            pl.BlockSpec((1, 1, cout), lambda i: (i, 0, 0)),
        ],
        out_shape=[
            jax.ShapeDtypeStruct((m, cout), w.dtype),
            jax.ShapeDtypeStruct((grid[0], 1, cout), jnp.float32),
            jax.ShapeDtypeStruct((grid[0], 1, cout), jnp.float32),
        ],
        compiler_params=pltpu.CompilerParams(
            dimension_semantics=("parallel",), vmem_limit_bytes=vmem),
    )(y, scale, shift, w, b)


def _affine_relu(y, scale, shift, out_dtype=None):
    m, c = y.shape
    out_dtype = y.dtype if out_dtype is None else out_dtype
    vmem, row_cap = _tpu_budget()
    tm = _row_tile(m, row_cap)
    return pl.pallas_call(
        _affine_relu_kernel,
        grid=(m // tm,),
        in_specs=[
            pl.BlockSpec((tm, c), lambda i: (i, 0)),
            pl.BlockSpec((1, c), lambda i: (0, 0)),
            pl.BlockSpec((1, c), lambda i: (0, 0)),
        ],
        out_specs=pl.BlockSpec((tm, c), lambda i: (i, 0)),
        out_shape=jax.ShapeDtypeStruct((m, c), out_dtype),
        compiler_params=pltpu.CompilerParams(
            dimension_semantics=("parallel",), vmem_limit_bytes=vmem),
    )(y, scale, shift)


def _deconv_polyphase(y1_nhwc, sc1, sh1, wcat, b2cat):
    """Fused BN1+ReLU + stride-2 3x3 transposed conv on NHWC y1 -> parity-major."""
    n, hgt, wid, midp = y1_nhwc.shape
    vmem, row_cap = _tpu_budget()
    th = _h_tile(hgt, wid, row_cap)
    nt = hgt // th
    kern = partial(_deconv_polyphase_kernel, tile_h=th, width=wid, midp=midp)
    return pl.pallas_call(
        kern,
        grid=(n, nt),
        in_specs=[
            # main tile of y1
            pl.BlockSpec((1, th, wid, midp), lambda i, t: (i, t, 0, 0)),
            # 1-row halo: first row of the next tile (clamped; masked in-kernel)
            pl.BlockSpec((1, 1, wid, midp),
                         lambda i, t: (i, jnp.minimum((t + 1) * th, hgt - 1),
                                       0, 0)),
            pl.BlockSpec((1, midp), lambda i, t: (0, 0)),
            pl.BlockSpec((1, midp), lambda i, t: (0, 0)),
            pl.BlockSpec(wcat.shape, lambda i, t: (0, 0)),
            pl.BlockSpec(b2cat.shape, lambda i, t: (0, 0)),
        ],
        out_specs=[
            pl.BlockSpec((4, 1, th, wid, midp), lambda i, t: (0, i, t, 0, 0)),
            pl.BlockSpec((1, 1, 1, 4 * midp), lambda i, t: (i, t, 0, 0)),
            pl.BlockSpec((1, 1, 1, 4 * midp), lambda i, t: (i, t, 0, 0)),
        ],
        out_shape=[
            jax.ShapeDtypeStruct((4, n, hgt, wid, midp), wcat.dtype),
            jax.ShapeDtypeStruct((n, nt, 1, 4 * midp), jnp.float32),
            jax.ShapeDtypeStruct((n, nt, 1, 4 * midp), jnp.float32),
        ],
        compiler_params=pltpu.CompilerParams(
            dimension_semantics=("parallel", "parallel"),
            vmem_limit_bytes=vmem),
    )(y1_nhwc, y1_nhwc, sc1, sh1, wcat, b2cat)


def _bn_scale_shift(s_arr, ss_arr, gamma, beta, count, eps, fold=1):
    """Reduce per-tile [sum, sum-sq] partials into per-channel scale/shift."""
    s = s_arr.reshape(-1, s_arr.shape[-1]).sum(axis=0)
    ss = ss_arr.reshape(-1, ss_arr.shape[-1]).sum(axis=0)
    if fold > 1:                       # fold the 4 deconv parities together
        s = s.reshape(fold, -1).sum(axis=0)
        ss = ss.reshape(fold, -1).sum(axis=0)
    mean = s / count
    var = jnp.maximum(ss / count - mean * mean, 0.0)
    scale = gamma * lax.rsqrt(var + eps)
    shift = beta - mean * scale
    return scale.reshape(1, -1), shift.reshape(1, -1)


# ---------------------------------------------------------------------------
# one-time parameter preprocessing (hoisted out of the forward pass)
# ---------------------------------------------------------------------------
def prepare_params(p, in_channels, n_filters, compute_dtype=jnp.bfloat16):
    mid = in_channels // 4
    midp = _round_up(mid, LANE)
    fp = _round_up(n_filters, LANE)

    def pad2(a, r, c):
        return jnp.pad(a, ((0, r - a.shape[0]), (0, c - a.shape[1])))

    def pad1(a, c):
        return jnp.pad(a, (0, c - a.shape[0]))

    # stage 1: 1x1 conv (Cin -> mid). K stays at the TRUE Cin (no activation
    # channel padding); only the lane-dense output channels are padded.
    w1 = jnp.pad(p["w1"], ((0, 0), (0, midp - mid))).astype(compute_dtype)
    b1 = pad1(p["b1"], midp).reshape(1, midp).astype(jnp.float32)
    g1 = pad1(p["g1"], midp).astype(jnp.float32)
    bt1 = pad1(p["bt1"], midp).astype(jnp.float32)

    # stage 2: ConvTranspose2d(mid, mid, 3, s=2, p=1, op=1) packed as a single
    # (4*midp, 4*midp) K-concat matrix.  K blocks = input taps
    # [self, right, down, diag]; N blocks = output parities g = 2*(oh%2)+(ow%2).
    #   self  x[a  , b  ]: [W11, W12, W21, W22]
    #   right x[a  , b+1]: [  0, W10,   0, W20]
    #   down  x[a+1, b  ]: [  0,   0, W01, W02]
    #   diag  x[a+1, b+1]: [  0,   0,   0, W00]
    def tap(kh, kw):
        return pad2(p["wt2"][:, :, kh, kw], midp, midp)

    zero = jnp.zeros((midp, midp), jnp.float32)
    w_self = jnp.concatenate([tap(1, 1), tap(1, 2), tap(2, 1), tap(2, 2)], 1)
    w_right = jnp.concatenate([zero, tap(1, 0), zero, tap(2, 0)], 1)
    w_down = jnp.concatenate([zero, zero, tap(0, 1), tap(0, 2)], 1)
    w_diag = jnp.concatenate([zero, zero, zero, tap(0, 0)], 1)
    wcat = jnp.concatenate([w_self, w_right, w_down, w_diag],
                           axis=0).astype(compute_dtype)
    b2 = pad1(p["b2"], midp).astype(jnp.float32)
    b2cat = jnp.tile(b2, 4).reshape(1, 4 * midp)
    g2 = pad1(p["g2"], midp).astype(jnp.float32)
    bt2 = pad1(p["bt2"], midp).astype(jnp.float32)

    # stage 3: 1x1 conv (mid -> n_filters)
    w3 = pad2(p["w3"], midp, fp).astype(compute_dtype)
    b3 = pad1(p["b3"], fp).reshape(1, fp).astype(jnp.float32)
    g3 = pad1(p["g3"], fp).astype(jnp.float32)
    bt3 = pad1(p["bt3"], fp).astype(jnp.float32)

    return dict(w1=w1, b1=b1, g1=g1, bt1=bt1,
                wcat=wcat, b2cat=b2cat, g2=g2, bt2=bt2,
                w3=w3, b3=b3, g3=g3, bt3=bt3)


# ---------------------------------------------------------------------------
# DecoderBlock forward (NCHW in, NCHW out)
# ---------------------------------------------------------------------------
def decoder_block_forward(x_nchw, pp, n_filters, eps=1e-5):
    n, cin, hgt, wid = x_nchw.shape
    midp = pp["w1"].shape[1]
    fp = pp["w3"].shape[1]
    m1 = n * hgt * wid
    m2 = 4 * m1            # = N * 2H * 2W output pixels of the deconv

    # entry layout: NCHW -> lane-dense rows; K dim kept at the true cin
    x = jnp.transpose(x_nchw, (0, 2, 3, 1)).astype(pp["w1"].dtype)
    x = x.reshape(m1, cin)

    # stage 1: 1x1 conv + BN(train) stats (affine + ReLU fused into stage 2)
    y1, s1, ss1 = _conv1x1_stats(x, pp["w1"], pp["b1"])
    sc1, sh1 = _bn_scale_shift(s1, ss1, pp["g1"], pp["bt1"], m1, eps)

    # stage 2: fused BN1 affine+ReLU + polyphase stride-2 deconv + BN2 stats
    y2, s2, ss2 = _deconv_polyphase(y1.reshape(n, hgt, wid, midp),
                                    sc1, sh1, pp["wcat"], pp["b2cat"])
    sc2, sh2 = _bn_scale_shift(s2, ss2, pp["g2"], pp["bt2"], m2, eps, fold=4)

    # stage 3: fused BN2 affine+ReLU + 1x1 conv + BN3 stats
    y3, s3, ss3 = _affine_relu_conv1x1_stats(y2.reshape(m2, midp), sc2, sh2,
                                             pp["w3"], pp["b3"])
    sc3, sh3 = _bn_scale_shift(s3, ss3, pp["g3"], pp["bt3"], m2, eps)
    out = _affine_relu(y3, sc3, sh3)          # stays in the compute dtype

    # parity de-interleave + NHWC->NCHW + strip channel padding
    out = out.reshape(2, 2, n, hgt, wid, fp)
    out = jnp.transpose(out, (2, 5, 3, 0, 4, 1)).reshape(
        n, fp, 2 * hgt, 2 * wid)
    return out[:, :n_filters]


# ---------------------------------------------------------------------------
# Pure-JAX reference (mirrors the PyTorch module, training-mode BN, f32)
# ---------------------------------------------------------------------------
def _ref_forward(x_nchw, p, eps=1e-5):
    def bn_relu(y, g, b):
        mean = jnp.mean(y, axis=(0, 2, 3), keepdims=True)
        var = jnp.mean((y - mean) ** 2, axis=(0, 2, 3), keepdims=True)
        yh = (y - mean) / jnp.sqrt(var + eps)
        return jnp.maximum(
            yh * g.reshape(1, -1, 1, 1) + b.reshape(1, -1, 1, 1), 0.0)

    dn = ("NCHW", "OIHW", "NCHW")
    w1 = jnp.transpose(p["w1"])[:, :, None, None]
    y = lax.conv_general_dilated(x_nchw, w1, (1, 1), "VALID",
                                 dimension_numbers=dn)
    y = bn_relu(y + p["b1"].reshape(1, -1, 1, 1), p["g1"], p["bt1"])

    wflip = jnp.transpose(p["wt2"][:, :, ::-1, ::-1], (1, 0, 2, 3))
    y = lax.conv_general_dilated(y, wflip, (1, 1), [(1, 2), (1, 2)],
                                 lhs_dilation=(2, 2), dimension_numbers=dn)
    y = bn_relu(y + p["b2"].reshape(1, -1, 1, 1), p["g2"], p["bt2"])

    w3 = jnp.transpose(p["w3"])[:, :, None, None]
    y = lax.conv_general_dilated(y, w3, (1, 1), "VALID",
                                 dimension_numbers=dn)
    return bn_relu(y + p["b3"].reshape(1, -1, 1, 1), p["g3"], p["bt3"])


# ---------------------------------------------------------------------------
# Main
# ---------------------------------------------------------------------------
def _init_params(key, in_channels, n_filters):
    mid = in_channels // 4
    ks = jax.random.split(key, 12)
    f32 = jnp.float32
    return {
        "w1": 0.2 * jax.random.normal(ks[0], (in_channels, mid), f32),
        "b1": 0.1 * jax.random.normal(ks[1], (mid,), f32),
        "g1": 0.5 + jax.random.uniform(ks[2], (mid,), f32),
        "bt1": 0.1 * jax.random.normal(ks[3], (mid,), f32),
        # ConvTranspose2d weight, PyTorch layout (Cin, Cout, 3, 3)
        "wt2": 0.2 * jax.random.normal(ks[4], (mid, mid, 3, 3), f32),
        "b2": 0.1 * jax.random.normal(ks[5], (mid,), f32),
        "g2": 0.5 + jax.random.uniform(ks[6], (mid,), f32),
        "bt2": 0.1 * jax.random.normal(ks[7], (mid,), f32),
        "w3": 0.2 * jax.random.normal(ks[8], (mid, n_filters), f32),
        "b3": 0.1 * jax.random.normal(ks[9], (n_filters,), f32),
        "g3": 0.5 + jax.random.uniform(ks[10], (n_filters,), f32),
        "bt3": 0.1 * jax.random.normal(ks[11], (n_filters,), f32),
    }


if __name__ == "__main__":
    batch, in_channels, n_filters, hw = 2, 64, 32, 8

    key = jax.random.PRNGKey(0)
    k_x, k_p = jax.random.split(key)
    x = jax.random.normal(k_x, (batch, in_channels, hw, hw), jnp.float32)
    params = _init_params(k_p, in_channels, n_filters)

    fwd = jax.jit(decoder_block_forward, static_argnames=("n_filters",))
    ref = jax.block_until_ready(_ref_forward(x, params))

    # strict correctness check: same kernels, f32 MXU operands
    pp32 = prepare_params(params, in_channels, n_filters,
                          compute_dtype=jnp.float32)
    out32 = jax.block_until_ready(fwd(x, pp32, n_filters=n_filters))
    assert out32.shape == (batch, n_filters, 2 * hw, 2 * hw), out32.shape
    err32 = float(jnp.max(jnp.abs(out32 - ref)))
    assert err32 < 2e-3, f"f32 path: max abs error vs reference {err32}"

    # production path: bf16 MXU operands + bf16 activations (loose sanity
    # bound; the f32 run above is the strict gate on the identical code path).
    ppbf = prepare_params(params, in_channels, n_filters,
                          compute_dtype=jnp.bfloat16)
    outbf = jax.block_until_ready(fwd(x, ppbf, n_filters=n_filters))
    assert outbf.shape == (batch, n_filters, 2 * hw, 2 * hw), outbf.shape
    errbf = float(jnp.max(jnp.abs(outbf - ref)))
    assert errbf < 2e-1, f"bf16 path: max abs error vs reference {errbf}"

    print("KERNEL_OK")
</pallas_src>

<mosaic_0001>
module attributes {stable_mosaic.version = 11 : i64} {
  func.func @_conv1x1_stats_kernel(%arg0: i32, %arg1: memref<64x64xf32, #tpu.memory_space<vmem>>, %arg2: memref<64x128xf32, #tpu.memory_space<vmem>>, %arg3: memref<1x128xf32, #tpu.memory_space<vmem>>, %arg4: memref<64x128xf32, #tpu.memory_space<vmem>>, %arg5: memref<1x1x128xf32, #tpu.memory_space<vmem>>, %arg6: memref<1x1x128xf32, #tpu.memory_space<vmem>>) attributes {dimension_semantics = [#tpu.dimension_semantics<parallel>], iteration_bounds = array<i64: 2>, scalar_prefetch = 0 : i64, scratch_operands = 0 : i64, tpu.core_type = #tpu.core_type<tc>, window_params = [{transform_indices = @transform_0, window_bounds = array<i64: 64, 64>}, {pipeline_mode = #tpu.pipeline_mode<synchronous>, transform_indices = @transform_1, window_bounds = array<i64: 64, 128>}, {pipeline_mode = #tpu.pipeline_mode<synchronous>, transform_indices = @transform_2, window_bounds = array<i64: 1, 128>}, {transform_indices = @transform_3, window_bounds = array<i64: 64, 128>}, {transform_indices = @transform_4, window_bounds = array<i64: 1, 1, 128>}, {transform_indices = @transform_5, window_bounds = array<i64: 1, 1, 128>}]} {
    %c0 = arith.constant 0 : index
    %c0_0 = arith.constant 0 : index
    %0 = vector.load %arg1[%c0, %c0_0] : memref<64x64xf32, #tpu.memory_space<vmem>>, vector<64x64xf32>
    %c0_1 = arith.constant 0 : index
    %c0_2 = arith.constant 0 : index
    %1 = vector.load %arg2[%c0_1, %c0_2] : memref<64x128xf32, #tpu.memory_space<vmem>>, vector<64x128xf32>
    %cst = arith.constant dense<0.000000e+00> : vector<64x128xf32>
    %2 = tpu.matmul %0, %1, %cst {dimension_numbers = #tpu.dot_dimension_numbers<[1], [0], [0], [1], [0, 0, 1, 1], [], []>} : vector<64x64xf32>, vector<64x128xf32>, vector<64x128xf32> -> vector<64x128xf32>
    %c0_3 = arith.constant 0 : index
    %c0_4 = arith.constant 0 : index
    %3 = vector.load %arg3[%c0_3, %c0_4] : memref<1x128xf32, #tpu.memory_space<vmem>>, vector<1x128xf32>
    %4 = vector.broadcast %3 : vector<1x128xf32> to vector<64x128xf32>
    %5 = arith.addf %2, %4 : vector<64x128xf32>
    %c0_5 = arith.constant 0 : index
    %c0_6 = arith.constant 0 : index
    %6 = vector.load %arg4[%c0_5, %c0_6] : memref<64x128xf32, #tpu.memory_space<vmem>>, vector<64x128xf32>
    tpu.vector_store %arg4[%c0_5, %c0_6], %5 {strides = array<i32>} : memref<64x128xf32, #tpu.memory_space<vmem>>, vector<64x128xf32>,
    %cst_7 = arith.constant dense<0.000000e+00> : vector<128xf32>
    %7 = vector.multi_reduction <add>, %5, %cst_7 [0] : vector<64x128xf32> to vector<128xf32>
    %8 = vector.shape_cast %7 : vector<128xf32> to vector<1x128xf32>
    %9 = vector.shape_cast %8 : vector<1x128xf32> to vector<1x1x128xf32>
    %c0_8 = arith.constant 0 : index
    %c0_9 = arith.constant 0 : index
    %c0_10 = arith.constant 0 : index
    %10 = vector.load %arg5[%c0_8, %c0_9, %c0_10] : memref<1x1x128xf32, #tpu.memory_space<vmem>>, vector<1x1x128xf32>
    tpu.vector_store %arg5[%c0_8, %c0_9, %c0_10], %9 {strides = array<i32>} : memref<1x1x128xf32, #tpu.memory_space<vmem>>, vector<1x1x128xf32>,
    %11 = arith.mulf %5, %5 : vector<64x128xf32>
    %cst_11 = arith.constant dense<0.000000e+00> : vector<128xf32>
    %12 = vector.multi_reduction <add>, %11, %cst_11 [0] : vector<64x128xf32> to vector<128xf32>
    %13 = vector.shape_cast %12 : vector<128xf32> to vector<1x128xf32>
    %14 = vector.shape_cast %13 : vector<1x128xf32> to vector<1x1x128xf32>
    %c0_12 = arith.constant 0 : index
    %c0_13 = arith.constant 0 : index
    %c0_14 = arith.constant 0 : index
    %15 = vector.load %arg6[%c0_12, %c0_13, %c0_14] : memref<1x1x128xf32, #tpu.memory_space<vmem>>, vector<1x1x128xf32>
    tpu.vector_store %arg6[%c0_12, %c0_13, %c0_14], %14 {strides = array<i32>} : memref<1x1x128xf32, #tpu.memory_space<vmem>>, vector<1x1x128xf32>,
    return
  }
  func.func @transform_0(%arg0: i32) -> (i32, i32) {
    %c0_i32 = arith.constant 0 : i32
    %c0_i32_0 = arith.constant 0 : i32
    return %arg0, %c0_i32 : i32, i32
  }
  func.func @transform_1(%arg0: i32) -> (i32, i32) {
    %c0_i32 = arith.constant 0 : i32
    %c0_i32_0 = arith.constant 0 : i32
    %c0_i32_1 = arith.constant 0 : i32
    return %c0_i32, %c0_i32_0 : i32, i32
  }
  func.func @transform_2(%arg0: i32) -> (i32, i32) {
    %c0_i32 = arith.constant 0 : i32
    %c0_i32_0 = arith.constant 0 : i32
    %c0_i32_1 = arith.constant 0 : i32
    return %c0_i32, %c0_i32_0 : i32, i32
  }
  func.func @transform_3(%arg0: i32) -> (i32, i32) {
    %c0_i32 = arith.constant 0 : i32
    %c0_i32_0 = arith.constant 0 : i32
    return %arg0, %c0_i32 : i32, i32
  }
  func.func @transform_4(%arg0: i32) -> (i32, i32, i32) {
    %c0_i32 = arith.constant 0 : i32
    %c0_i32_0 = arith.constant 0 : i32
    %c0_i32_1 = arith.constant 0 : i32
    return %arg0, %c0_i32, %c0_i32_0 : i32, i32, i32
  }
  func.func @transform_5(%arg0: i32) -> (i32, i32, i32) {
    %c0_i32 = arith.constant 0 : i32
    %c0_i32_0 = arith.constant 0 : i32
    %c0_i32_1 = arith.constant 0 : i32
    return %arg0, %c0_i32, %c0_i32_0 : i32, i32, i32
  }
}

module attributes {stable_mosaic.version = 11 : i64} {
  func.func @_deconv_polyphase_kernel(%arg0: i32, %arg1: i32, %arg2: memref<1x8x8x128xf32, #tpu.memory_space<vmem>>, %arg3: memref<1x1x8x128xf32, #tpu.memory_space<vmem>>, %arg4: memref<1x128xf32, #tpu.memory_space<vmem>>, %arg5: memref<1x128xf32, #tpu.memory_space<vmem>>, %arg6: memref<512x512xf32, #tpu.memory_space<vmem>>, %arg7: memref<1x512xf32, #tpu.memory_space<vmem>>, %arg8: memref<4x1x8x8x128xf32, #tpu.memory_space<vmem>>, %arg9: memref<1x1x1x512xf32, #tpu.memory_space<vmem>>, %arg10: memref<1x1x1x512xf32, #tpu.memory_space<vmem>>) attributes {dimension_semantics = [#tpu.dimension_semantics<parallel>, #tpu.dimension_semantics<parallel>], iteration_bounds = array<i64: 2, 1>, scalar_prefetch = 0 : i64, scratch_operands = 0 : i64, tpu.core_type = #tpu.core_type<tc>, window_params = [{transform_indices = @transform_0, window_bounds = array<i64: 1, 8, 8, 128>}, {transform_indices = @transform_1, window_bounds = array<i64: 1, 1, 8, 128>}, {pipeline_mode = #tpu.pipeline_mode<synchronous>, transform_indices = @transform_2, window_bounds = array<i64: 1, 128>}, {pipeline_mode = #tpu.pipeline_mode<synchronous>, transform_indices = @transform_3, window_bounds = array<i64: 1, 128>}, {pipeline_mode = #tpu.pipeline_mode<synchronous>, transform_indices = @transform_4, window_bounds = array<i64: 512, 512>}, {pipeline_mode = #tpu.pipeline_mode<synchronous>, transform_indices = @transform_5, window_bounds = array<i64: 1, 512>}, {transform_indices = @transform_6, window_bounds = array<i64: 4, 1, 8, 8, 128>}, {transform_indices = @transform_7, window_bounds = array<i64: 1, 1, 1, 512>}, {transform_indices = @transform_8, window_bounds = array<i64: 1, 1, 1, 512>}]} {
    %c0 = arith.constant 0 : index
    %c0_0 = arith.constant 0 : index
    %0 = vector.load %arg6[%c0, %c0_0] : memref<512x512xf32, #tpu.memory_space<vmem>>, vector<512x512xf32>
    %c0_1 = arith.constant 0 : index
    %c0_2 = arith.constant 0 : index
    %1 = vector.load %arg4[%c0_1, %c0_2] : memref<1x128xf32, #tpu.memory_space<vmem>>, vector<1x128xf32>
    %c0_3 = arith.constant 0 : index
    %c0_4 = arith.constant 0 : index
    %2 = vector.load %arg5[%c0_3, %c0_4] : memref<1x128xf32, #tpu.memory_space<vmem>>, vector<1x128xf32>
    %c0_5 = arith.constant 0 : index
    %c0_6 = arith.constant 0 : index
    %c0_7 = arith.constant 0 : index
    %c0_8 = arith.constant 0 : index
    %3 = vector.load %arg2[%c0_5, %c0_6, %c0_7, %c0_8] : memref<1x8x8x128xf32, #tpu.memory_space<vmem>>, vector<1x8x8x128xf32>
    %4 = vector.shape_cast %3 : vector<1x8x8x128xf32> to vector<8x8x128xf32>
    %5 = vector.shape_cast %1 : vector<1x128xf32> to vector<1x1x128xf32>
    %6 = vector.broadcast %5 : vector<1x1x128xf32> to vector<8x8x128xf32>
    %7 = arith.mulf %4, %6 : vector<8x8x128xf32>
    %8 = vector.shape_cast %2 : vector<1x128xf32> to vector<1x1x128xf32>
    %9 = vector.broadcast %8 : vector<1x1x128xf32> to vector<8x8x128xf32>
    %10 = arith.addf %7, %9 : vector<8x8x128xf32>
    %cst = arith.constant 0.000000e+00 : f32
    %11 = vector.broadcast %cst : f32 to vector<8x8x128xf32>
    %12 = arith.maximumf %10, %11 : vector<8x8x128xf32>
    %c0_9 = arith.constant 0 : index
    %c0_10 = arith.constant 0 : index
    %c0_11 = arith.constant 0 : index
    %c0_12 = arith.constant 0 : index
    %13 = vector.load %arg3[%c0_9, %c0_10, %c0_11, %c0_12] : memref<1x1x8x128xf32, #tpu.memory_space<vmem>>, vector<1x1x8x128xf32>
    %14 = vector.shape_cast %13 : vector<1x1x8x128xf32> to vector<8x128xf32>
    %15 = vector.broadcast %1 : vector<1x128xf32> to vector<8x128xf32>
    %16 = arith.mulf %14, %15 : vector<8x128xf32>
    %17 = vector.broadcast %2 : vector<1x128xf32> to vector<8x128xf32>
    %18 = arith.addf %16, %17 : vector<8x128xf32>
    %cst_13 = arith.constant 0.000000e+00 : f32
    %19 = vector.broadcast %cst_13 : f32 to vector<8x128xf32>
    %20 = arith.maximumf %18, %19 : vector<8x128xf32>
    %c1_i32 = arith.constant 1 : i32
    %21 = arith.addi %arg1, %c1_i32 : i32
    %c1_i32_14 = arith.constant 1 : i32
    %22 = arith.cmpi slt, %21, %c1_i32_14 : i32
    %23 = arith.extui %22 : i1 to i32
    %24 = arith.sitofp %23 : i32 to f32
    %25 = vector.broadcast %24 : f32 to vector<8x128xf32>
    %26 = arith.mulf %20, %25 : vector<8x128xf32>
    %27 = vector.shape_cast %26 : vector<8x128xf32> to vector<1x8x128xf32>
    %28 = tpu.concatenate %12, %27 in 0 : vector<8x8x128xf32>, vector<1x8x128xf32> -> vector<9x8x128xf32>
    %cst_15 = arith.constant 0.000000e+00 : f32
    %29 = vector.broadcast %cst_15 : f32 to vector<9x1x128xf32>
    %30 = vector.extract_strided_slice %28 {offsets = [0, 1, 0], sizes = [9, 7, 128], strides = [1, 1, 1]} : vector<9x8x128xf32> to vector<9x7x128xf32>
    %31 = tpu.concatenate %30, %29 in 1 : vector<9x7x128xf32>, vector<9x1x128xf32> -> vector<9x8x128xf32>
    %32 = vector.extract_strided_slice %28 {offsets = [0, 0, 0], sizes = [8, 8, 128], strides = [1, 1, 1]} : vector<9x8x128xf32> to vector<8x8x128xf32>
    %33 = vector.shape_cast %32 : vector<8x8x128xf32> to vector<64x128xf32>
    %34 = vector.extract_strided_slice %31 {offsets = [0, 0, 0], sizes = [8, 8, 128], strides = [1, 1, 1]} : vector<9x8x128xf32> to vector<8x8x128xf32>
    %35 = vector.shape_cast %34 : vector<8x8x128xf32> to vector<64x128xf32>
    %36 = vector.extract_strided_slice %28 {offsets = [1, 0, 0], sizes = [8, 8, 128], strides = [1, 1, 1]} : vector<9x8x128xf32> to vector<8x8x128xf32>
    %37 = vector.shape_cast %36 : vector<8x8x128xf32> to vector<64x128xf32>
    %38 = vector.extract_strided_slice %31 {offsets = [1, 0, 0], sizes = [8, 8, 128], strides = [1, 1, 1]} : vector<9x8x128xf32> to vector<8x8x128xf32>
    %39 = vector.shape_cast %38 : vector<8x8x128xf32> to vector<64x128xf32>
    %40 = tpu.concatenate %33, %35, %37, %39 in 1 : vector<64x128xf32>, vector<64x128xf32>, vector<64x128xf32>, vector<64x128xf32> -> vector<64x512xf32>
    %cst_16 = arith.constant dense<0.000000e+00> : vector<64x512xf32>
    %41 = tpu.matmul %40, %0, %cst_16 {dimension_numbers = #tpu.dot_dimension_numbers<[1], [0], [0], [1], [0, 0, 1, 1], [], []>} : vector<64x512xf32>, vector<512x512xf32>, vector<64x512xf32> -> vector<64x512xf32>
    %c0_17 = arith.constant 0 : index
    %c0_18 = arith.constant 0 : index
    %42 = vector.load %arg7[%c0_17, %c0_18] : memref<1x512xf32, #tpu.memory_space<vmem>>, vector<1x512xf32>
    %43 = vector.broadcast %42 : vector<1x512xf32> to vector<64x512xf32>
    %44 = arith.addf %41, %43 : vector<64x512xf32>
    %cst_19 = arith.constant dense<0.000000e+00> : vector<512xf32>
    %45 = vector.multi_reduction <add>, %44, %cst_19 [0] : vector<64x512xf32> to vector<512xf32>
    %46 = vector.shape_cast %45 : vector<512xf32> to vector<1x512xf32>
    %47 = vector.shape_cast %46 : vector<1x512xf32> to vector<1x1x1x512xf32>
    %c0_20 = arith.constant 0 : index
    %c0_21 = arith.constant 0 : index
    %c0_22 = arith.constant 0 : index
    %c0_23 = arith.constant 0 : index
    %48 = vector.load %arg9[%c0_20, %c0_21, %c0_22, %c0_23] : memref<1x1x1x512xf32, #tpu.memory_space<vmem>>, vector<1x1x1x512xf32>
    tpu.vector_store %arg9[%c0_20, %c0_21, %c0_22, %c0_23], %47 {strides = array<i32>} : memref<1x1x1x512xf32, #tpu.memory_space<vmem>>, vector<1x1x1x512xf32>,
    %49 = arith.mulf %44, %44 : vector<64x512xf32>
    %cst_24 = arith.constant dense<0.000000e+00> : vector<512xf32>
    %50 = vector.multi_reduction <add>, %49, %cst_24 [0] : vector<64x512xf32> to vector<512xf32>
    %51 = vector.shape_cast %50 : vector<512xf32> to vector<1x512xf32>
    %52 = vector.shape_cast %51 : vector<1x512xf32> to vector<1x1x1x512xf32>
    %c0_25 = arith.constant 0 : index
    %c0_26 = arith.constant 0 : index
    %c0_27 = arith.constant 0 : index
    %c0_28 = arith.constant 0 : index
    %53 = vector.load %arg10[%c0_25, %c0_26, %c0_27, %c0_28] : memref<1x1x1x512xf32, #tpu.memory_space<vmem>>, vector<1x1x1x512xf32>
    tpu.vector_store %arg10[%c0_25, %c0_26, %c0_27, %c0_28], %52 {strides = array<i32>} : memref<1x1x1x512xf32, #tpu.memory_space<vmem>>, vector<1x1x1x512xf32>,
    %54 = vector.extract_strided_slice %44 {offsets = [0, 0], sizes = [64, 128], strides = [1, 1]} : vector<64x512xf32> to vector<64x128xf32>
    %55 = vector.shape_cast %54 : vector<64x128xf32> to vector<8x8x128xf32>
    %c0_29 = arith.constant 0 : index
    %c0_30 = arith.constant 0 : index
    %c0_31 = arith.constant 0 : index
    %c0_32 = arith.constant 0 : index
    %c0_33 = arith.constant 0 : index
    %56 = vector.load %arg8[%c0_29, %c0_30, %c0_31, %c0_32, %c0_33] : memref<4x1x8x8x128xf32, #tpu.memory_space<vmem>>, vector<1x1x8x8x128xf32>
    %57 = vector.shape_cast %56 : vector<1x1x8x8x128xf32> to vector<8x8x128xf32>
    %58 = vector.shape_cast %55 : vector<8x8x128xf32> to vector<1x1x8x8x128xf32>
    tpu.vector_store %arg8[%c0_29, %c0_30, %c0_31, %c0_32, %c0_33], %58 {strides = array<i32>} : memref<4x1x8x8x128xf32, #tpu.memory_space<vmem>>, vector<1x1x8x8x128xf32>,
    %59 = vector.extract_strided_slice %44 {offsets = [0, 128], sizes = [64, 128], strides = [1, 1]} : vector<64x512xf32> to vector<64x128xf32>
    %60 = vector.shape_cast %59 : vector<64x128xf32> to vector<8x8x128xf32>
    %c1 = arith.constant 1 : index
    %c0_34 = arith.constant 0 : index
    %c0_35 = arith.constant 0 : index
    %c0_36 = arith.constant 0 : index
    %c0_37 = arith.constant 0 : index
    %61 = vector.load %arg8[%c1, %c0_34, %c0_35, %c0_36, %c0_37] : memref<4x1x8x8x128xf32, #tpu.memory_space<vmem>>, vector<1x1x8x8x128xf32>
    %62 = vector.shape_cast %61 : vector<1x1x8x8x128xf32> to vector<8x8x128xf32>
    %63 = vector.shape_cast %60 : vector<8x8x128xf32> to vector<1x1x8x8x128xf32>
    tpu.vector_store %arg8[%c1, %c0_34, %c0_35, %c0_36, %c0_37], %63 {strides = array<i32>} : memref<4x1x8x8x128xf32, #tpu.memory_space<vmem>>, vector<1x1x8x8x128xf32>,
    %64 = vector.extract_strided_slice %44 {offsets = [0, 256], sizes = [64, 128], strides = [1, 1]} : vector<64x512xf32> to vector<64x128xf32>
    %65 = vector.shape_cast %64 : vector<64x128xf32> to vector<8x8x128xf32>
    %c2 = arith.constant 2 : index
    %c0_38 = arith.constant 0 : index
    %c0_39 = arith.constant 0 : index
    %c0_40 = arith.constant 0 : index
    %c0_41 = arith.constant 0 : index
    %66 = vector.load %arg8[%c2, %c0_38, %c0_39, %c0_40, %c0_41] : memref<4x1x8x8x128xf32, #tpu.memory_space<vmem>>, vector<1x1x8x8x128xf32>
    %67 = vector.shape_cast %66 : vector<1x1x8x8x128xf32> to vector<8x8x128xf32>
    %68 = vector.shape_cast %65 : vector<8x8x128xf32> to vector<1x1x8x8x128xf32>
    tpu.vector_store %arg8[%c2, %c0_38, %c0_39, %c0_40, %c0_41], %68 {strides = array<i32>} : memref<4x1x8x8x128xf32, #tpu.memory_space<vmem>>, vector<1x1x8x8x128xf32>,
    %69 = vector.extract_strided_slice %44 {offsets = [0, 384], sizes = [64, 128], strides = [1, 1]} : vector<64x512xf32> to vector<64x128xf32>
    %70 = vector.shape_cast %69 : vector<64x128xf32> to vector<8x8x128xf32>
    %c3 = arith.constant 3 : index
    %c0_42 = arith.constant 0 : index
    %c0_43 = arith.constant 0 : index
    %c0_44 = arith.constant 0 : index
    %c0_45 = arith.constant 0 : index
    %71 = vector.load %arg8[%c3, %c0_42, %c0_43, %c0_44, %c0_45] : memref<4x1x8x8x128xf32, #tpu.memory_space<vmem>>, vector<1x1x8x8x128xf32>
    %72 = vector.shape_cast %71 : vector<1x1x8x8x128xf32> to vector<8x8x128xf32>
    %73 = vector.shape_cast %70 : vector<8x8x128xf32> to vector<1x1x8x8x128xf32>
    tpu.vector_store %arg8[%c3, %c0_42, %c0_43, %c0_44, %c0_45], %73 {strides = array<i32>} : memref<4x1x8x8x128xf32, #tpu.memory_space<vmem>>, vector<1x1x8x8x128xf32>,
    return
  }
  func.func @transform_0(%arg0: i32, %arg1: i32) -> (i32, i32, i32, i32) {
    %c0_i32 = arith.constant 0 : i32
    %c0_i32_0 = arith.constant 0 : i32
    %c0_i32_1 = arith.constant 0 : i32
    return %arg0, %arg1, %c0_i32, %c0_i32_0 : i32, i32, i32, i32
  }
  func.func @transform_1(%arg0: i32, %arg1: i32) -> (i32, i32, i32, i32) {
    %c1_i32 = arith.constant 1 : i32
    %0 = arith.addi %arg1, %c1_i32 : i32
    %c8_i32 = arith.constant 8 : i32
    %1 = arith.muli %0, %c8_i32 : i32
    %c7_i32 = arith.constant 7 : i32
    %2 = arith.minsi %1, %c7_i32 : i32
    %c0_i32 = arith.constant 0 : i32
    %c0_i32_0 = arith.constant 0 : i32
    %c0_i32_1 = arith.constant 0 : i32
    return %arg0, %2, %c0_i32, %c0_i32_0 : i32, i32, i32, i32
  }
  func.func @transform_2(%arg0: i32, %arg1: i32) -> (i32, i32) {
    %c0_i32 = arith.constant 0 : i32
    %c0_i32_0 = arith.constant 0 : i32
    %c0_i32_1 = arith.constant 0 : i32
    return %c0_i32, %c0_i32_0 : i32, i32
  }
  func.func @transform_3(%arg0: i32, %arg1: i32) -> (i32, i32) {
    %c0_i32 = arith.constant 0 : i32
    %c0_i32_0 = arith.constant 0 : i32
    %c0_i32_1 = arith.constant 0 : i32
    return %c0_i32, %c0_i32_0 : i32, i32
  }
  func.func @transform_4(%arg0: i32, %arg1: i32) -> (i32, i32) {
    %c0_i32 = arith.constant 0 : i32
    %c0_i32_0 = arith.constant 0 : i32
    %c0_i32_1 = arith.constant 0 : i32
    return %c0_i32, %c0_i32_0 : i32, i32
  }
  func.func @transform_5(%arg0: i32, %arg1: i32) -> (i32, i32) {
    %c0_i32 = arith.constant 0 : i32
    %c0_i32_0 = arith.constant 0 : i32
    %c0_i32_1 = arith.constant 0 : i32
    return %c0_i32, %c0_i32_0 : i32, i32
  }
  func.func @transform_6(%arg0: i32, %arg1: i32) -> (i32, i32, i32, i32, i32) {
    %c0_i32 = arith.constant 0 : i32
    %c0_i32_0 = arith.constant 0 : i32
    %c0_i32_1 = arith.constant 0 : i32
    %c0_i32_2 = arith.constant 0 : i32
    return %c0_i32, %arg0, %arg1, %c0_i32_0, %c0_i32_1 : i32, i32, i32, i32, i32
  }
  func.func @transform_7(%arg0: i32, %arg1: i32) -> (i32, i32, i32, i32) {
    %c0_i32 = arith.constant 0 : i32
    %c0_i32_0 = arith.constant 0 : i32
    %c0_i32_1 = arith.constant 0 : i32
    return %arg0, %arg1, %c0_i32, %c0_i32_0 : i32, i32, i32, i32
  }
  func.func @transform_8(%arg0: i32, %arg1: i32) -> (i32, i32, i32, i32) {
    %c0_i32 = arith.constant 0 : i32
    %c0_i32_0 = arith.constant 0 : i32
    %c0_i32_1 = arith.constant 0 : i32
    return %arg0, %arg1, %c0_i32, %c0_i32_0 : i32, i32, i32, i32
  }
}

module attributes {stable_mosaic.version = 11 : i64} {
  func.func @_affine_relu_kernel(%arg0: i32, %arg1: memref<256x128xf32, #tpu.memory_space<vmem>>, %arg2: memref<1x128xf32, #tpu.memory_space<vmem>>, %arg3: memref<1x128xf32, #tpu.memory_space<vmem>>, %arg4: memref<256x128xf32, #tpu.memory_space<vmem>>) attributes {dimension_semantics = [#tpu.dimension_semantics<parallel>], iteration_bounds = array<i64: 2>, scalar_prefetch = 0 : i64, scratch_operands = 0 : i64, tpu.core_type = #tpu.core_type<tc>, window_params = [{transform_indices = @transform_0, window_bounds = array<i64: 256, 128>}, {pipeline_mode = #tpu.pipeline_mode<synchronous>, transform_indices = @transform_1, window_bounds = array<i64: 1, 128>}, {pipeline_mode = #tpu.pipeline_mode<synchronous>, transform_indices = @transform_2, window_bounds = array<i64: 1, 128>}, {transform_indices = @transform_3, window_bounds = array<i64: 256, 128>}]} {
    %c0 = arith.constant 0 : index
    %c0_0 = arith.constant 0 : index
    %0 = vector.load %arg1[%c0, %c0_0] : memref<256x128xf32, #tpu.memory_space<vmem>>, vector<256x128xf32>
    %c0_1 = arith.constant 0 : index
    %c0_2 = arith.constant 0 : index
    %1 = vector.load %arg2[%c0_1, %c0_2] : memref<1x128xf32, #tpu.memory_space<vmem>>, vector<1x128xf32>
    %2 = vector.broadcast %1 : vector<1x128xf32> to vector<256x128xf32>
    %3 = arith.mulf %0, %2 : vector<256x128xf32>
    %c0_3 = arith.constant 0 : index
    %c0_4 = arith.constant 0 : index
    %4 = vector.load %arg3[%c0_3, %c0_4] : memref<1x128xf32, #tpu.memory_space<vmem>>, vector<1x128xf32>
    %5 = vector.broadcast %4 : vector<1x128xf32> to vector<256x128xf32>
    %6 = arith.addf %3, %5 : vector<256x128xf32>
    %cst = arith.constant 0.000000e+00 : f32
    %7 = vector.broadcast %cst : f32 to vector<256x128xf32>
    %8 = arith.maximumf %6, %7 : vector<256x128xf32>
    %c0_5 = arith.constant 0 : index
    %c0_6 = arith.constant 0 : index
    %9 = vector.load %arg4[%c0_5, %c0_6] : memref<256x128xf32, #tpu.memory_space<vmem>>, vector<256x128xf32>
    tpu.vector_store %arg4[%c0_5, %c0_6], %8 {strides = array<i32>} : memref<256x128xf32, #tpu.memory_space<vmem>>, vector<256x128xf32>,
    return
  }
  func.func @transform_0(%arg0: i32) -> (i32, i32) {
    %c0_i32 = arith.constant 0 : i32
    %c0_i32_0 = arith.constant 0 : i32
    return %arg0, %c0_i32 : i32, i32
  }
  func.func @transform_1(%arg0: i32) -> (i32, i32) {
    %c0_i32 = arith.constant 0 : i32
    %c0_i32_0 = arith.constant 0 : i32
    %c0_i32_1 = arith.constant 0 : i32
    return %c0_i32, %c0_i32_0 : i32, i32
  }
  func.func @transform_2(%arg0: i32) -> (i32, i32) {
    %c0_i32 = arith.constant 0 : i32
    %c0_i32_0 = arith.constant 0 : i32
    %c0_i32_1 = arith.constant 0 : i32
    return %c0_i32, %c0_i32_0 : i32, i32
  }
  func.func @transform_3(%arg0: i32) -> (i32, i32) {
    %c0_i32 = arith.constant 0 : i32
    %c0_i32_0 = arith.constant 0 : i32
    return %arg0, %c0_i32 : i32, i32
  }
}

module attributes {stable_mosaic.version = 11 : i64} {
  func.func @_affine_relu_conv1x1_stats_kernel(%arg0: i32, %arg1: memref<256x128xf32, #tpu.memory_space<vmem>>, %arg2: memref<1x128xf32, #tpu.memory_space<vmem>>, %arg3: memref<1x128xf32, #tpu.memory_space<vmem>>, %arg4: memref<128x128xf32, #tpu.memory_space<vmem>>, %arg5: memref<1x128xf32, #tpu.memory_space<vmem>>, %arg6: memref<256x128xf32, #tpu.memory_space<vmem>>, %arg7: memref<1x1x128xf32, #tpu.memory_space<vmem>>, %arg8: memref<1x1x128xf32, #tpu.memory_space<vmem>>) attributes {dimension_semantics = [#tpu.dimension_semantics<parallel>], iteration_bounds = array<i64: 2>, scalar_prefetch = 0 : i64, scratch_operands = 0 : i64, tpu.core_type = #tpu.core_type<tc>, window_params = [{transform_indices = @transform_0, window_bounds = array<i64: 256, 128>}, {pipeline_mode = #tpu.pipeline_mode<synchronous>, transform_indices = @transform_1, window_bounds = array<i64: 1, 128>}, {pipeline_mode = #tpu.pipeline_mode<synchronous>, transform_indices = @transform_2, window_bounds = array<i64: 1, 128>}, {pipeline_mode = #tpu.pipeline_mode<synchronous>, transform_indices = @transform_3, window_bounds = array<i64: 128, 128>}, {pipeline_mode = #tpu.pipeline_mode<synchronous>, transform_indices = @transform_4, window_bounds = array<i64: 1, 128>}, {transform_indices = @transform_5, window_bounds = array<i64: 256, 128>}, {transform_indices = @transform_6, window_bounds = array<i64: 1, 1, 128>}, {transform_indices = @transform_7, window_bounds = array<i64: 1, 1, 128>}]} {
    %c0 = arith.constant 0 : index
    %c0_0 = arith.constant 0 : index
    %0 = vector.load %arg4[%c0, %c0_0] : memref<128x128xf32, #tpu.memory_space<vmem>>, vector<128x128xf32>
    %c0_1 = arith.constant 0 : index
    %c0_2 = arith.constant 0 : index
    %1 = vector.load %arg1[%c0_1, %c0_2] : memref<256x128xf32, #tpu.memory_space<vmem>>, vector<256x128xf32>
    %c0_3 = arith.constant 0 : index
    %c0_4 = arith.constant 0 : index
    %2 = vector.load %arg2[%c0_3, %c0_4] : memref<1x128xf32, #tpu.memory_space<vmem>>, vector<1x128xf32>
    %3 = vector.broadcast %2 : vector<1x128xf32> to vector<256x128xf32>
    %4 = arith.mulf %1, %3 : vector<256x128xf32>
    %c0_5 = arith.constant 0 : index
    %c0_6 = arith.constant 0 : index
    %5 = vector.load %arg3[%c0_5, %c0_6] : memref<1x128xf32, #tpu.memory_space<vmem>>, vector<1x128xf32>
    %6 = vector.broadcast %5 : vector<1x128xf32> to vector<256x128xf32>
    %7 = arith.addf %4, %6 : vector<256x128xf32>
    %cst = arith.constant 0.000000e+00 : f32
    %8 = vector.broadcast %cst : f32 to vector<256x128xf32>
    %9 = arith.maximumf %7, %8 : vector<256x128xf32>
    %cst_7 = arith.constant dense<0.000000e+00> : vector<256x128xf32>
    %10 = tpu.matmul %9, %0, %cst_7 {dimension_numbers = #tpu.dot_dimension_numbers<[1], [0], [0], [1], [0, 0, 1, 1], [], []>} : vector<256x128xf32>, vector<128x128xf32>, vector<256x128xf32> -> vector<256x128xf32>
    %c0_8 = arith.constant 0 : index
    %c0_9 = arith.constant 0 : index
    %11 = vector.load %arg5[%c0_8, %c0_9] : memref<1x128xf32, #tpu.memory_space<vmem>>, vector<1x128xf32>
    %12 = vector.broadcast %11 : vector<1x128xf32> to vector<256x128xf32>
    %13 = arith.addf %10, %12 : vector<256x128xf32>
    %c0_10 = arith.constant 0 : index
    %c0_11 = arith.constant 0 : index
    %14 = vector.load %arg6[%c0_10, %c0_11] : memref<256x128xf32, #tpu.memory_space<vmem>>, vector<256x128xf32>
    tpu.vector_store %arg6[%c0_10, %c0_11], %13 {strides = array<i32>} : memref<256x128xf32, #tpu.memory_space<vmem>>, vector<256x128xf32>,
    %cst_12 = arith.constant dense<0.000000e+00> : vector<128xf32>
    %15 = vector.multi_reduction <add>, %13, %cst_12 [0] : vector<256x128xf32> to vector<128xf32>
    %16 = vector.shape_cast %15 : vector<128xf32> to vector<1x128xf32>
    %17 = vector.shape_cast %16 : vector<1x128xf32> to vector<1x1x128xf32>
    %c0_13 = arith.constant 0 : index
    %c0_14 = arith.constant 0 : index
    %c0_15 = arith.constant 0 : index
    %18 = vector.load %arg7[%c0_13, %c0_14, %c0_15] : memref<1x1x128xf32, #tpu.memory_space<vmem>>, vector<1x1x128xf32>
    tpu.vector_store %arg7[%c0_13, %c0_14, %c0_15], %17 {strides = array<i32>} : memref<1x1x128xf32, #tpu.memory_space<vmem>>, vector<1x1x128xf32>,
    %19 = arith.mulf %13, %13 : vector<256x128xf32>
    %cst_16 = arith.constant dense<0.000000e+00> : vector<128xf32>
    %20 = vector.multi_reduction <add>, %19, %cst_16 [0] : vector<256x128xf32> to vector<128xf32>
    %21 = vector.shape_cast %20 : vector<128xf32> to vector<1x128xf32>
    %22 = vector.shape_cast %21 : vector<1x128xf32> to vector<1x1x128xf32>
    %c0_17 = arith.constant 0 : index
    %c0_18 = arith.constant 0 : index
    %c0_19 = arith.constant 0 : index
    %23 = vector.load %arg8[%c0_17, %c0_18, %c0_19] : memref<1x1x128xf32, #tpu.memory_space<vmem>>, vector<1x1x128xf32>
    tpu.vector_store %arg8[%c0_17, %c0_18, %c0_19], %22 {strides = array<i32>} : memref<1x1x128xf32, #tpu.memory_space<vmem>>, vector<1x1x128xf32>,
    return
  }
  func.func @transform_0(%arg0: i32) -> (i32, i32) {
    %c0_i32 = arith.constant 0 : i32
    %c0_i32_0 = arith.constant 0 : i32
    return %arg0, %c0_i32 : i32, i32
  }
  func.func @transform_1(%arg0: i32) -> (i32, i32) {
    %c0_i32 = arith.constant 0 : i32
    %c0_i32_0 = arith.constant 0 : i32
    %c0_i32_1 = arith.constant 0 : i32
    return %c0_i32, %c0_i32_0 : i32, i32
  }
  func.func @transform_2(%arg0: i32) -> (i32, i32) {
    %c0_i32 = arith.constant 0 : i32
    %c0_i32_0 = arith.constant 0 : i32
    %c0_i32_1 = arith.constant 0 : i32
    return %c0_i32, %c0_i32_0 : i32, i32
  }
  func.func @transform_3(%arg0: i32) -> (i32, i32) {
    %c0_i32 = arith.constant 0 : i32
    %c0_i32_0 = arith.constant 0 : i32
    %c0_i32_1 = arith.constant 0 : i32
    return %c0_i32, %c0_i32_0 : i32, i32
  }
  func.func @transform_4(%arg0: i32) -> (i32, i32) {
    %c0_i32 = arith.constant 0 : i32
    %c0_i32_0 = arith.constant 0 : i32
    %c0_i32_1 = arith.constant 0 : i32
    return %c0_i32, %c0_i32_0 : i32, i32
  }
  func.func @transform_5(%arg0: i32) -> (i32, i32) {
    %c0_i32 = arith.constant 0 : i32
    %c0_i32_0 = arith.constant 0 : i32
    return %arg0, %c0_i32 : i32, i32
  }
  func.func @transform_6(%arg0: i32) -> (i32, i32, i32) {
    %c0_i32 = arith.constant 0 : i32
    %c0_i32_0 = arith.constant 0 : i32
    %c0_i32_1 = arith.constant 0 : i32
    return %arg0, %c0_i32, %c0_i32_0 : i32, i32, i32
  }
  func.func @transform_7(%arg0: i32) -> (i32, i32, i32) {
    %c0_i32 = arith.constant 0 : i32
    %c0_i32_0 = arith.constant 0 : i32
    %c0_i32_1 = arith.constant 0 : i32
    return %arg0, %c0_i32, %c0_i32_0 : i32, i32, i32
  }
}

</mosaic_0001>

<llo_original>
// kernel: decoder_block_forward.4
$region0: #{decoder_block_forward.4}
  #allocation0 [shape = 'u32[]', space=smem, size = 0x4, offset = 0x4, fixed_abs, tag = 'smem constant byte address 0x4 - core index']
  #allocation1 [shape = 'u32[144,128]{1,0:T(1,128)}', space=vmem, size = 0x12000, scoped, tag = 'internal scratch']
  %s0 = inlined_call_operand.hbm [shape: f32[128,64], index: 0, kind: input, shape index: {}]
  %s1 = inlined_call_operand.hbm [shape: f32[64,128], index: 1, kind: input, shape index: {}]
  %s2 = inlined_call_operand.vmem [shape: f32[1,128], index: 2, kind: input, shape index: {}]
  %s3 = inlined_call_operand.vmem [shape: f32[128,128], index: 3, kind: output, shape index: {0}]
  %s4 = inlined_call_operand.vmem [shape: f32[2,1,128], index: 4, kind: output, shape index: {1}]
  %s5 = inlined_call_operand.vmem [shape: f32[2,1,128], index: 5, kind: output, shape index: {2}]
  %6 = xla_tuple %s3, %s4, %s5
  %s7 = sld [smem:[#allocation0]]
  $region69: #{decoder_block_forward.4} parent=0
    _
  %s9 = ssub.s32 1, %s7
  %s10 = scalar_select 0, %s9, %s7
  $region1: #{decoder_block_forward.4} parent=0
    #allocation2 [shape = 'u8[65536]{0}', space=vmem, size = 0x10000, scoped, tag = 'input window, operand 0']
    #allocation3 [shape = 's32[2]{0}', space=sflag, size = 0x8, scoped, tag = 'scoped memory for decoder_block_forward.4']
    #allocation4 [shape = 'u8[32768]{0}', space=vmem, size = 0x8000, scoped, tag = 'input window, operand 1, single buffered']
    #allocation5 [shape = 's32[1]{0}', space=sflag, size = 0x4, scoped, tag = 'scoped memory for decoder_block_forward.4']
    %11 = vsyncpa [#allocation3], 0
    %s12 = scalar_lea.sflag [#allocation3], 1
    %13 = vsyncpa %s12, 0
    %14 = vsyncpa [#allocation5], 0
    loop: start=0, step=1, limit=4
    $region2: #{decoder_block_forward.4} parent=1 // loop_pre_header
      _
    $region3: #{decoder_block_forward.4} parent=1 // loop_header
      %s16 = sphi 0, %s20
      %p17 = scmp.ge.s32.totalorder %s16, 4
      %s26 = sphi 0, %s28
      %s29 = sphi 0, %s26
      %s30 = sphi 0, %s29
      %s46 = sphi 0, %s30
      %s50 = sphi 0, %s50
      %s52 = sphi 0, %s50
      %s53 = sphi 0, %s52
      %s67 = sphi 0, %s53
      %s71 = sphi 0, %s71
      %s73 = sphi 0, %s71
      %s74 = sphi 0, %s73
      %s88 = sphi 0, %s74
      %s94 = sphi 0, %s96
      %s97 = sphi 0, %s94
      %s98 = sphi 0, %s97
      %s114 = sphi 0, %s98
      %s120 = sphi 0, %s122
      %s123 = sphi 0, %s120
      %s124 = sphi 0, %s123
      %s140 = sphi 0, %s124
      %s146 = sphi 0, %s148
      %s149 = sphi 0, %s146
      %s150 = sphi 0, %s149
      %s166 = sphi 0, %s150
    $region4: #{decoder_block_forward.4} parent=1 // loop_header_branch
      %19 = sbr.rel (%p17) target = $region8
    $region5: #{decoder_block_forward.4} parent=1 // loop_body
      %s21 = ssub.s32 %s16, 1
      %s22 = ssub.s32 %s16, 2
      %s23 = sadd.s32 %s16, 1
      %s24 = ssub.s32 %s16, %s23
      %p25 = scmp.eq.s32.totalorder %s24, 0
      %s27 = sadd.s32 %s26, 1
      %s28 = scalar_select %p25, %s26, %s27
      %p31 = pneg %p25
      %p32 = scmp.eq.s32.totalorder %s16, 1
      %p33 = por %p31, %p32
      %p34 = scmp.ne.s32.totalorder %s26, %s29
      %p35 = scmp.eq.s32.totalorder %s16, 0
      %p36 = por %p34, %p35
      %p37 = scmp.ne.s32.totalorder %s26, %s29
      %p38 = scmp.eq.s32.totalorder %s21, 1
      %p39 = por %p37, %p38
      %p40 = scmp.ne.s32.totalorder %s29, %s30
      %p41 = scmp.eq.s32.totalorder %s21, 0
      %p42 = por %p40, %p41
      %p43 = scmp.ne.s32.totalorder %s29, %s30
      %p44 = scmp.eq.s32.totalorder %s22, 1
      %p45 = por %p43, %p44
      %p47 = scmp.ne.s32.totalorder %s30, %s46
      %p48 = scmp.eq.s32.totalorder %s22, 0
      %p49 = por %p47, %p48
      %s51 = sadd.s32 %s50, 1
      %p54 = scmp.eq.s32.totalorder %s16, 1
      %p55 = scmp.ne.s32.totalorder %s50, %s52
      %p56 = scmp.eq.s32.totalorder %s16, 0
      %p57 = por %p55, %p56
      %p58 = scmp.ne.s32.totalorder %s50, %s52
      %p59 = scmp.eq.s32.totalorder %s21, 1
      %p60 = por %p58, %p59
      %p61 = scmp.ne.s32.totalorder %s52, %s53
      %p62 = scmp.eq.s32.totalorder %s21, 0
      %p63 = por %p61, %p62
      %p64 = scmp.ne.s32.totalorder %s52, %s53
      %p65 = scmp.eq.s32.totalorder %s22, 1
      %p66 = por %p64, %p65
      %p68 = scmp.ne.s32.totalorder %s53, %s67
      %p69 = scmp.eq.s32.totalorder %s22, 0
      %p70 = por %p68, %p69
      %s72 = sadd.s32 %s71, 1
      %p75 = scmp.eq.s32.totalorder %s16, 1
      %p76 = scmp.ne.s32.totalorder %s71, %s73
      %p77 = scmp.eq.s32.totalorder %s16, 0
      %p78 = por %p76, %p77
      %p79 = scmp.ne.s32.totalorder %s71, %s73
      %p80 = scmp.eq.s32.totalorder %s21, 1
      %p81 = por %p79, %p80
      %p82 = scmp.ne.s32.totalorder %s73, %s74
      %p83 = scmp.eq.s32.totalorder %s21, 0
      %p84 = por %p82, %p83
      %p85 = scmp.ne.s32.totalorder %s73, %s74
      %p86 = scmp.eq.s32.totalorder %s22, 1
      %p87 = por %p85, %p86
      %p89 = scmp.ne.s32.totalorder %s74, %s88
      %p90 = scmp.eq.s32.totalorder %s22, 0
      %p91 = por %p89, %p90
      %s92 = ssub.s32 %s16, %s23
      %p93 = scmp.eq.s32.totalorder %s92, 0
      %s95 = sadd.s32 %s94, 1
      %s96 = scalar_select %p93, %s94, %s95
      %p99 = pneg %p93
      %p100 = scmp.eq.s32.totalorder %s16, 1
      %p101 = por %p99, %p100
      %p102 = scmp.ne.s32.totalorder %s94, %s97
      %p103 = scmp.eq.s32.totalorder %s16, 0
      %p104 = por %p102, %p103
      %p105 = scmp.ne.s32.totalorder %s94, %s97
      %p106 = scmp.eq.s32.totalorder %s21, 1
      %p107 = por %p105, %p106
      %p108 = scmp.ne.s32.totalorder %s97, %s98
      %p109 = scmp.eq.s32.totalorder %s21, 0
      %p110 = por %p108, %p109
      %p111 = scmp.ne.s32.totalorder %s97, %s98
      %p112 = scmp.eq.s32.totalorder %s22, 1
      %p113 = por %p111, %p112
      %p115 = scmp.ne.s32.totalorder %s98, %s114
      %p116 = scmp.eq.s32.totalorder %s22, 0
      %p117 = por %p115, %p116
      %s118 = ssub.s32 %s16, %s23
      %p119 = scmp.eq.s32.totalorder %s118, 0
      %s121 = sadd.s32 %s120, 1
      %s122 = scalar_select %p119, %s120, %s121
      %p125 = pneg %p119
      %p126 = scmp.eq.s32.totalorder %s16, 1
      %p127 = por %p125, %p126
      %p128 = scmp.ne.s32.totalorder %s120, %s123
      %p129 = scmp.eq.s32.totalorder %s16, 0
      %p130 = por %p128, %p129
      %p131 = scmp.ne.s32.totalorder %s120, %s123
      %p132 = scmp.eq.s32.totalorder %s21, 1
      %p133 = por %p131, %p132
      %p134 = scmp.ne.s32.totalorder %s123, %s124
      %p135 = scmp.eq.s32.totalorder %s21, 0
      %p136 = por %p134, %p135
      %p137 = scmp.ne.s32.totalorder %s123, %s124
      %p138 = scmp.eq.s32.totalorder %s22, 1
      %p139 = por %p137, %p138
      %p141 = scmp.ne.s32.totalorder %s124, %s140
      %p142 = scmp.eq.s32.totalorder %s22, 0
      %p143 = por %p141, %p142
      %s144 = ssub.s32 %s16, %s23
      %p145 = scmp.eq.s32.totalorder %s144, 0
      %s147 = sadd.s32 %s146, 1
      %s148 = scalar_select %p145, %s146, %s147
      %p151 = pneg %p145
      %p152 = scmp.eq.s32.totalorder %s16, 1
      %p153 = por %p151, %p152
      %p154 = scmp.ne.s32.totalorder %s146, %s149
      %p155 = scmp.eq.s32.totalorder %s16, 0
      %p156 = por %p154, %p155
      %p157 = scmp.ne.s32.totalorder %s146, %s149
      %p158 = scmp.eq.s32.totalorder %s21, 1
      %p159 = por %p157, %p158
      %p160 = scmp.ne.s32.totalorder %s149, %s150
      %p161 = scmp.eq.s32.totalorder %s21, 0
      %p162 = por %p160, %p161
      %p163 = scmp.ne.s32.totalorder %s149, %s150
      %p164 = scmp.eq.s32.totalorder %s22, 1
      %p165 = por %p163, %p164
      %p167 = scmp.ne.s32.totalorder %s150, %s166
      %p168 = scmp.eq.s32.totalorder %s22, 0
      %p169 = por %p167, %p168
      %p170 = scmp.le.s32.totalorder 1, %s16
      %p171 = scmp.lt.s32.totalorder %s16, 3
      %p172 = pnand %p170, %p171
      %p173 = pneg %p172
      // Predicated region
      $region9: #{decoder_block_forward.4} parent=5 // pred_check
        _
      $region10: #{decoder_block_forward.4} parent=5 // pred_check_branch
        %175 = sbr.rel (%p172) target = $region12
      $region11: #{decoder_block_forward.4} parent=5 // pred_region
        %s176 = ssub.s32 %s16, 1
        // Predicated region
        $region13: #{decoder_block_forward.4} parent=11 // pred_check
          %p177 = pneg %p63
        $region14: #{decoder_block_forward.4} parent=11 // pred_check_branch
          %179 = sbr.rel (%p177) target = $region16
        $region15: #{decoder_block_forward.4} parent=11 // pred_region
          %s181 = ssub.s32 1024, 1024
          %182 = vsyncadd [#allocation5], %s181
          %s183 = sshll.u32 [#allocation4], 4
          %s184 = int_to_ptr.vmem [resolvable:$true] %s183
          %189 = dma.hbm_to_vmem [thread:$0]  %s1, 1024, %s184, [#allocation5], 128, 128, 8
        $region16: #{decoder_block_forward.4} parent=11 // pred_fallthru
          _
        // Predicated region
        $region17: #{decoder_block_forward.4} parent=11 // pred_check
          %p190 = pneg %p84
        $region18: #{decoder_block_forward.4} parent=11 // pred_check_branch
          %192 = sbr.rel (%p190) target = $region20
        $region19: #{decoder_block_forward.4} parent=11 // pred_region
          _
        $region20: #{decoder_block_forward.4} parent=11 // pred_fallthru
          _
      $region12: #{decoder_block_forward.4} parent=5 // pred_fallthru
        _
      %p193 = scmp.lt.s32.totalorder %s16, 2
      // Predicated region
      $region21: #{decoder_block_forward.4} parent=5 // pred_check
        %p194 = pneg %p193
      $region22: #{decoder_block_forward.4} parent=5 // pred_check_branch
        %196 = sbr.rel (%p194) target = $region24
      $region23: #{decoder_block_forward.4} parent=5 // pred_region
        // Predicated region
        $region25: #{decoder_block_forward.4} parent=23 // pred_check
          %p197 = pneg %p36
        $region26: #{decoder_block_forward.4} parent=23 // pred_check_branch
          %199 = sbr.rel (%p197) target = $region28
        $region27: #{decoder_block_forward.4} parent=23 // pred_region
          %s200 = sand.u32 %s26, 1
          %s201 = scalar_lea.sflag [#allocation3], %s200
          %s202 = sand.u32 %s26, 1
          %s203 = smul.addr %s202, 64
          %s204 = scalar_lea.vmem [#allocation2], %s203
          %s205 = smul.u32 8, %s16
          %s207 = ssub.s32 1024, 1024
          %208 = vsyncadd %s201, %s207
          %s209 = smul.addr %s205, 128
          %s210 = scalar_lea.hbm %s0, %s209
          %s211 = sshll.u32 %s204, 4
          %s212 = int_to_ptr.vmem [resolvable:$true] %s211
          %217 = dma.hbm_to_vmem [thread:$0]  %s210, 1024, %s212, %s201, 128, 128, 8
        $region28: #{decoder_block_forward.4} parent=23 // pred_fallthru
          _
      $region24: #{decoder_block_forward.4} parent=5 // pred_fallthru
        _
      %p218 = scmp.le.s32.totalorder 1, %s16
      %p219 = scmp.lt.s32.totalorder %s16, 3
      %p220 = pnand %p218, %p219
      %p221 = pneg %p220
      // Predicated region
      $region29: #{decoder_block_forward.4} parent=5 // pred_check
        _
      $region30: #{decoder_block_forward.4} parent=5 // pred_check_branch
        %223 = sbr.rel (%p220) target = $region32
      $region31: #{decoder_block_forward.4} parent=5 // pred_region
        %s224 = ssub.s32 %s16, 1
        %s225 = sand.u32 %s29, 1
        %s226 = scalar_lea.sflag [#allocation3], %s225
        %s227 = sand.u32 %s29, 1
        %s228 = smul.addr %s227, 64
        %s229 = scalar_lea.vmem [#allocation2], %s228
        // Predicated region
        $region33: #{decoder_block_forward.4} parent=31 // pred_check
          %p230 = pneg %p42
        $region34: #{decoder_block_forward.4} parent=31 // pred_check_branch
          %232 = sbr.rel (%p230) target = $region36
        $region35: #{decoder_block_forward.4} parent=31 // pred_region
          %233 = dma.done %s226, 1024
        $region36: #{decoder_block_forward.4} parent=31 // pred_fallthru
          _
        // Predicated region
        $region37: #{decoder_block_forward.4} parent=31 // pred_check
          %p234 = pneg %p63
        $region38: #{decoder_block_forward.4} parent=31 // pred_check_branch
          %236 = sbr.rel (%p234) target = $region40
        $region39: #{decoder_block_forward.4} parent=31 // pred_region
          %237 = dma.done [#allocation5], 1024
        $region40: #{decoder_block_forward.4} parent=31 // pred_fallthru
          _
        %s238 = sand.u32 %s29, 1
        %s239 = scalar_lea.sflag [#allocation3], %s238
        %s240 = sand.u32 %s29, 1
        %s241 = smul.addr %s240, 64
        %s242 = scalar_lea.vmem [#allocation2], %s241
        %p243 = pneg %p42
        %p244 = pneg %p39
        %p245 = pneg %p63
        %p246 = pneg %p60
        %p247 = pneg %p84
        %p248 = pneg %p81
        %p249 = pneg %p110
        %p250 = pneg %p107
        %s251 = smul.u32 8, %s21
        %p252 = scmp.lt.s32.totalorder %s251, 15
        %s253 = scalar_select %p252, %s251, 15
        %s254 = smul.addr %s253, 8
        %s255 = scalar_lea.vmem %s3, %s254
        %p256 = pneg %p136
        %p257 = pneg %p133
        %p258 = scmp.lt.s32.totalorder %s21, 1
        %s259 = scalar_select %p258, %s21, 1
        %s260 = scalar_lea.vmem %s4, %s259
        %p261 = pneg %p162
        %p262 = pneg %p159
        %p263 = scmp.lt.s32.totalorder %s21, 1
        %s264 = scalar_select %p263, %s21, 1
        %s265 = scalar_lea.vmem %s5, %s264
        %s266 = smul.u32 8, %s21
        %s267 = smul.u32 8, %s21
        %p268 = scmp.lt.s32.totalorder %s267, 15
        %s269 = scalar_select %p268, %s267, 15
        %s270 = smul.addr %s269, 8
        %s271 = scalar_lea.vmem %s3, %s270
        %s272 = smul.u32 8, %s21
        %p273 = scmp.lt.s32.totalorder %s21, 1
        %s274 = scalar_select %p273, %s21, 1
        %s275 = scalar_lea.vmem %s4, %s274
        %p276 = scmp.lt.s32.totalorder %s21, 1
        %s277 = scalar_select %p276, %s21, 1
        %s278 = scalar_lea.vmem %s5, %s277
        %v279 = vld [vmem:[%s229] sm:$0xff]
        %v280 = vld [vmem:[%s229 + $0x8] sm:$0xff]
        %v281 = vld [vmem:[%s229 + $0x10] sm:$0xff]
        %v282 = vld [vmem:[%s229 + $0x18] sm:$0xff]
        %v283 = vld [vmem:[%s229 + $0x20] sm:$0xff]
        %v284 = vld [vmem:[%s229 + $0x28] sm:$0xff]
        %v285 = vld [vmem:[%s229 + $0x30] sm:$0xff]
        %v286 = vld [vmem:[%s229 + $0x38] sm:$0xff]
        %v287 = vld [vmem:[#allocation4] sm:$0xff]
        %v288 = vld [vmem:[#allocation4 + $0x8] sm:$0xff]
        %v289 = vld [vmem:[#allocation4 + $0x10] sm:$0xff]
        %v290 = vld [vmem:[#allocation4 + $0x18] sm:$0xff]
        %v291 = vld [vmem:[#allocation4 + $0x20] sm:$0xff]
        %v292 = vld [vmem:[#allocation4 + $0x28] sm:$0xff]
        %v293 = vld [vmem:[#allocation4 + $0x30] sm:$0xff]
        %v294 = vld [vmem:[#allocation4 + $0x38] sm:$0xff]
        %v295 = vld [vmem:[%s2] sm:$0x1]
        %v297 = vlaneseq
        %v298 = vshrl.u32 %v297, 7
        %v299 = vsub.s32 0, %v298
        %v300 = vrot.slane %v295, %v299
        %vm302 = vcmask 523264
        %v304 = vsel %vm302, %v279, 0
        %v307 = vsel %vm302, %v280, 0
        %v310 = vsel %vm302, %v281, 0
        %v313 = vsel %vm302, %v282, 0
        %v316 = vsel %vm302, %v283, 0
        %v319 = vsel %vm302, %v284, 0
        %v322 = vsel %vm302, %v285, 0
        %v325 = vsel %vm302, %v286, 0
        %327 = vmatprep.subr.mxu0 0.0
        %328 = vmatpush1.msra.mxu0 0.0
        %329 = vmatprep.subr.mxu0 0.0
        %330 = vmatpush1.msra.mxu0 0.0
        %331 = vmatprep.subr.mxu0 0.0
        %332 = vmatpush1.msra.mxu0 0.0
        %333 = vmatprep.subr.mxu0 0.0
        %334 = vmatpush1.msra.mxu0 0.0
        %335 = vmatprep.subr.mxu0 0.0
        %336 = vmatpush1.msra.mxu0 0.0
        %337 = vmatprep.subr.mxu0 0.0
        %338 = vmatpush1.msra.mxu0 0.0
        %339 = vmatprep.subr.mxu0 0.0
        %340 = vmatpush1.msra.mxu0 0.0
        %341 = vmatprep.subr.mxu0 0.0
        %342 = vmatpush1.msra.mxu0 0.0
        %343 = vmatprep.subr.mxu0 0.0
        %344 = vmatpush1.msra.mxu0 %v294
        %345 = vmatprep.subr.mxu0 0.0
        %346 = vmatpush1.msra.mxu0 %v293
        %347 = vmatprep.subr.mxu0 0.0
        %348 = vmatpush1.msra.mxu0 %v292
        %349 = vmatprep.subr.mxu0 0.0
        %350 = vmatpush1.msra.mxu0 %v291
        %351 = vmatprep.subr.mxu0 0.0
        %352 = vmatpush1.msra.mxu0 %v290
        %353 = vmatprep.subr.mxu0 0.0
        %354 = vmatpush1.msra.mxu0 %v289
        %355 = vmatprep.subr.mxu0 0.0
        %356 = vmatpush1.msra.mxu0 %v288
        %357 = vmatprep.subr.mxu0 0.0
        %358 = vmatpush1.msra.mxu0 %v287
        %359 = vmatprep.subr.mxu0 0.0
        %360 = vmatpush2.msra.mxu0 0.0
        %361 = vmatprep.subr.mxu0 0.0
        %362 = vmatpush2.msra.mxu0 0.0
        %363 = vmatprep.subr.mxu0 0.0
        %364 = vmatpush2.msra.mxu0 0.0
        %365 = vmatprep.subr.mxu0 0.0
        %366 = vmatpush2.msra.mxu0 0.0
        %367 = vmatprep.subr.mxu0 0.0
        %368 = vmatpush2.msra.mxu0 0.0
        %369 = vmatprep.subr.mxu0 0.0
        %370 = vmatpush2.msra.mxu0 0.0
        %371 = vmatprep.subr.mxu0 0.0
        %372 = vmatpush2.msra.mxu0 0.0
        %373 = vmatprep.subr.mxu0 0.0
        %374 = vmatpush2.msra.mxu0 0.0
        %375 = vmatprep.subr.mxu0 0.0
        %376 = vmatpush2.msra.mxu0 0.0
        %377 = vmatprep.subr.mxu0 0.0
        %378 = vmatpush2.msra.mxu0 0.0
        %379 = vmatprep.subr.mxu0 0.0
        %380 = vmatpush2.msra.mxu0 0.0
        %381 = vmatprep.subr.mxu0 0.0
        %382 = vmatpush2.msra.mxu0 0.0
        %383 = vmatprep.subr.mxu0 0.0
        %384 = vmatpush2.msra.mxu0 0.0
        %385 = vmatprep.subr.mxu0 0.0
        %386 = vmatpush2.msra.mxu0 0.0
        %387 = vmatprep.subr.mxu0 0.0
        %388 = vmatpush2.msra.mxu0 0.0
        %389 = vmatprep.subr.mxu0 0.0
        %390 = vmatpush2.msra.mxu0 0.0
        %391 = vmatprep.mubr.f32.mxu0 0.0
        %392 = vmatmul.mubr.f32.gmra.mxu0 %v304
        %v393 = vpop.f32.mrf.mxu0
        %v394 = vadd.f32 %v300, %v393
        %v395 = vpop.f32.mrf.mxu0
        %396 = vmatprep.mubr.f32.mxu0 0.0
        %397 = vmatmul.mubr.f32.gmra.mxu0 %v307
        %v398 = vpop.f32.mrf.mxu0
        %v399 = vadd.f32 %v300, %v398
        %v400 = vpop.f32.mrf.mxu0
        %401 = vmatprep.mubr.f32.mxu0 0.0
        %402 = vmatmul.mubr.f32.gmra.mxu0 %v310
        %v403 = vpop.f32.mrf.mxu0
        %v404 = vadd.f32 %v300, %v403
        %v405 = vpop.f32.mrf.mxu0
        %406 = vmatprep.mubr.f32.mxu0 0.0
        %407 = vmatmul.mubr.f32.gmra.mxu0 %v313
        %v408 = vpop.f32.mrf.mxu0
        %v409 = vadd.f32 %v300, %v408
        %v410 = vpop.f32.mrf.mxu0
        %411 = vmatprep.mubr.f32.mxu0 0.0
        %412 = vmatmul.mubr.f32.gmra.mxu0 %v316
        %v413 = vpop.f32.mrf.mxu0
        %v414 = vadd.f32 %v300, %v413
        %v415 = vpop.f32.mrf.mxu0
        %416 = vmatprep.mubr.f32.mxu0 0.0
        %417 = vmatmul.mubr.f32.gmra.mxu0 %v319
        %v418 = vpop.f32.mrf.mxu0
        %v419 = vadd.f32 %v300, %v418
        %v420 = vpop.f32.mrf.mxu0
        %421 = vmatprep.mubr.f32.mxu0 0.0
        %422 = vmatmul.mubr.f32.gmra.mxu0 %v322
        %v423 = vpop.f32.mrf.mxu0
        %v424 = vadd.f32 %v300, %v423
        %v425 = vpop.f32.mrf.mxu0
        %426 = vmatprep.mubr.f32.mxu0 0.0
        %427 = vmatmul.mubr.f32.gmra.mxu0 %v325
        %v428 = vpop.f32.mrf.mxu0
        %v429 = vadd.f32 %v300, %v428
        %v430 = vpop.f32.mrf.mxu0
        %431 = vdwg.mxu0
        %432 = vst [vmem:[%s271] sm:$0xff] %v394
        %433 = vst [vmem:[%s271 + $0x8] sm:$0xff] %v399
        %434 = vst [vmem:[%s271 + $0x10] sm:$0xff] %v404
        %435 = vst [vmem:[%s271 + $0x18] sm:$0xff] %v409
        %436 = vst [vmem:[%s271 + $0x20] sm:$0xff] %v414
        %437 = vst [vmem:[%s271 + $0x28] sm:$0xff] %v419
        %438 = vst [vmem:[%s271 + $0x30] sm:$0xff] %v424
        %439 = vst [vmem:[%s271 + $0x38] sm:$0xff] %v429
        %v440 = vadd.f32 %v394, %v399
        %v441 = vadd.f32 %v440, %v404
        %v442 = vadd.f32 %v441, %v409
        %v443 = vadd.f32 %v442, %v414
        %v444 = vadd.f32 %v443, %v419
        %v445 = vadd.f32 %v444, %v424
        %v446 = vadd.f32 %v445, %v429
        %v447 = vrot.slane %v446, 4
        %v448 = vadd.f32 %v446, %v447
        %v449 = vrot.slane %v448, 2
        %v450 = vadd.f32 %v448, %v449
        %v451 = vrot.slane %v450, 1
        %v452 = vadd.f32 %v450, %v451
        %453 = vst [vmem:[%s275] sm:$0x1] %v452
        %v454 = vmul.f32 %v394, %v394
        %v455 = vmul.f32 %v399, %v399
        %v456 = vmul.f32 %v404, %v404
        %v457 = vmul.f32 %v409, %v409
        %v458 = vmul.f32 %v414, %v414
        %v459 = vmul.f32 %v419, %v419
        %v460 = vmul.f32 %v424, %v424
        %v461 = vmul.f32 %v429, %v429
        %v462 = vadd.f32 %v454, %v455
        %v463 = vadd.f32 %v462, %v456
        %v464 = vadd.f32 %v463, %v457
        %v465 = vadd.f32 %v464, %v458
        %v466 = vadd.f32 %v465, %v459
        %v467 = vadd.f32 %v466, %v460
        %v468 = vadd.f32 %v467, %v461
        %v469 = vrot.slane %v468, 4
        %v470 = vadd.f32 %v468, %v469
        %v471 = vrot.slane %v470, 2
        %v472 = vadd.f32 %v470, %v471
        %v473 = vrot.slane %v472, 1
        %v474 = vadd.f32 %v472, %v473
        %475 = vst [vmem:[%s278] sm:$0x1] %v474
        %s476 = smul.u32 8, %s21
        %p477 = scmp.lt.s32.totalorder %s476, 15
        %s478 = scalar_select %p477, %s476, 15
        %s479 = smul.addr %s478, 8
        %s480 = scalar_lea.vmem %s3, %s479
        %p481 = scmp.lt.s32.totalorder %s21, 1
        %s482 = scalar_select %p481, %s21, 1
        %s483 = scalar_lea.vmem %s4, %s482
        %p484 = scmp.lt.s32.totalorder %s21, 1
        %s485 = scalar_select %p484, %s21, 1
        %s486 = scalar_lea.vmem %s5, %s485
        // Predicated region
        $region41: #{decoder_block_forward.4} parent=31 // pred_check
          %p487 = pneg %p107
        $region42: #{decoder_block_forward.4} parent=31 // pred_check_branch
          %489 = sbr.rel (%p487) target = $region44
        $region43: #{decoder_block_forward.4} parent=31 // pred_region
          %s490 = smul.u32 8, %s21
        $region44: #{decoder_block_forward.4} parent=31 // pred_fallthru
          _
        // Predicated region
        $region45: #{decoder_block_forward.4} parent=31 // pred_check
          %p491 = pneg %p133
        $region46: #{decoder_block_forward.4} parent=31 // pred_check_branch
          %493 = sbr.rel (%p491) target = $region48
        $region47: #{decoder_block_forward.4} parent=31 // pred_region
          _
        $region48: #{decoder_block_forward.4} parent=31 // pred_fallthru
          _
        // Predicated region
        $region49: #{decoder_block_forward.4} parent=31 // pred_check
          %p494 = pneg %p159
        $region50: #{decoder_block_forward.4} parent=31 // pred_check_branch
          %496 = sbr.rel (%p494) target = $region52
        $region51: #{decoder_block_forward.4} parent=31 // pred_region
          _
        $region52: #{decoder_block_forward.4} parent=31 // pred_fallthru
          _
      $region32: #{decoder_block_forward.4} parent=5 // pred_fallthru
        _
      %p497 = scmp.le.s32.totalorder 2, %s16
      // Predicated region
      $region53: #{decoder_block_forward.4} parent=5 // pred_check
        %p498 = pneg %p497
      $region54: #{decoder_block_forward.4} parent=5 // pred_check_branch
        %500 = sbr.rel (%p498) target = $region56
      $region55: #{decoder_block_forward.4} parent=5 // pred_region
        %s501 = ssub.s32 %s16, 2
        // Predicated region
        $region57: #{decoder_block_forward.4} parent=55 // pred_check
          %p502 = pneg %p113
        $region58: #{decoder_block_forward.4} parent=55 // pred_check_branch
          %504 = sbr.rel (%p502) target = $region60
        $region59: #{decoder_block_forward.4} parent=55 // pred_region
          %s505 = smul.u32 8, %s22
          %p506 = scmp.lt.s32.totalorder %s505, 15
          %s507 = scalar_select %p506, %s505, 15
          %s508 = smul.addr %s507, 8
          %s509 = scalar_lea.vmem %s3, %s508
        $region60: #{decoder_block_forward.4} parent=55 // pred_fallthru
          _
        // Predicated region
        $region61: #{decoder_block_forward.4} parent=55 // pred_check
          %p510 = pneg %p139
        $region62: #{decoder_block_forward.4} parent=55 // pred_check_branch
          %512 = sbr.rel (%p510) target = $region64
        $region63: #{decoder_block_forward.4} parent=55 // pred_region
          %p513 = scmp.lt.s32.totalorder %s22, 1
          %s514 = scalar_select %p513, %s22, 1
          %s515 = scalar_lea.vmem %s4, %s514
        $region64: #{decoder_block_forward.4} parent=55 // pred_fallthru
          _
        // Predicated region
        $region65: #{decoder_block_forward.4} parent=55 // pred_check
          %p516 = pneg %p165
        $region66: #{decoder_block_forward.4} parent=55 // pred_check_branch
          %518 = sbr.rel (%p516) target = $region68
        $region67: #{decoder_block_forward.4} parent=55 // pred_region
          %p519 = scmp.lt.s32.totalorder %s22, 1
          %s520 = scalar_select %p519, %s22, 1
          %s521 = scalar_lea.vmem %s5, %s520
        $region68: #{decoder_block_forward.4} parent=55 // pred_fallthru
          _
      $region56: #{decoder_block_forward.4} parent=5 // pred_fallthru
        _
    $region6: #{decoder_block_forward.4} parent=1 // loop_footer
      %s20 = sadd.s32 1, %s16
    $region7: #{decoder_block_forward.4} parent=1 // loop_footer_branch
      %15 = sbr.rel target = $region3
    $region8: #{decoder_block_forward.4} parent=1 // loop_exit
      _
    %522 = vsyncpa [#allocation3], 1
    %s523 = scalar_lea.sflag [#allocation3], 1
    %524 = vsyncpa %s523, 1
    %525 = vsyncpa [#allocation5], 1

// kernel: decoder_block_forward.7
$region0: #{decoder_block_forward.7}
  #allocation0 [shape = 'u32[]', space=smem, size = 0x4, offset = 0x4, fixed_abs, tag = 'smem constant byte address 0x4 - core index']
  #allocation1 [shape = 'u32[144,128]{1,0:T(1,128)}', space=vmem, size = 0x12000, scoped, tag = 'internal scratch']
  %s0 = inlined_call_operand.vmem [shape: f32[512,128], index: 0, kind: input, shape index: {}]
  %s1 = inlined_call_operand.vmem [shape: f32[1,128], index: 1, kind: input, shape index: {}]
  %s2 = inlined_call_operand.vmem [shape: f32[1,128], index: 2, kind: input, shape index: {}]
  %s3 = inlined_call_operand.vmem [shape: f32[512,128], index: 3, kind: output, shape index: {}]
  %s4 = sld [smem:[#allocation0]]
  $region45: #{decoder_block_forward.7} parent=0
    _
  %s6 = ssub.s32 1, %s4
  %s7 = scalar_select 0, %s6, %s4
  loop: start=0, step=1, limit=4
  $region2: #{decoder_block_forward.7} parent=0 // loop_pre_header
    _
  $region3: #{decoder_block_forward.7} parent=0 // loop_header
    %s9 = sphi 0, %s13
    %p10 = scmp.ge.s32.totalorder %s9, 4
    %s19 = sphi 0, %s21
    %s22 = sphi 0, %s19
    %s23 = sphi 0, %s22
    %s39 = sphi 0, %s23
    %s43 = sphi 0, %s43
    %s45 = sphi 0, %s43
    %s46 = sphi 0, %s45
    %s60 = sphi 0, %s46
    %s64 = sphi 0, %s64
    %s66 = sphi 0, %s64
    %s67 = sphi 0, %s66
    %s81 = sphi 0, %s67
    %s87 = sphi 0, %s89
    %s90 = sphi 0, %s87
    %s91 = sphi 0, %s90
    %s107 = sphi 0, %s91
  $region4: #{decoder_block_forward.7} parent=0 // loop_header_branch
    %12 = sbr.rel (%p10) target = $region8
  $region5: #{decoder_block_forward.7} parent=0 // loop_body
    %s14 = ssub.s32 %s9, 1
    %s15 = ssub.s32 %s9, 2
    %s16 = sadd.s32 %s9, 1
    %s17 = ssub.s32 %s9, %s16
    %p18 = scmp.eq.s32.totalorder %s17, 0
    %s20 = sadd.s32 %s19, 1
    %s21 = scalar_select %p18, %s19, %s20
    %p24 = pneg %p18
    %p25 = scmp.eq.s32.totalorder %s9, 1
    %p26 = por %p24, %p25
    %p27 = scmp.ne.s32.totalorder %s19, %s22
    %p28 = scmp.eq.s32.totalorder %s9, 0
    %p29 = por %p27, %p28
    %p30 = scmp.ne.s32.totalorder %s19, %s22
    %p31 = scmp.eq.s32.totalorder %s14, 1
    %p32 = por %p30, %p31
    %p33 = scmp.ne.s32.totalorder %s22, %s23
    %p34 = scmp.eq.s32.totalorder %s14, 0
    %p35 = por %p33, %p34
    %p36 = scmp.ne.s32.totalorder %s22, %s23
    %p37 = scmp.eq.s32.totalorder %s15, 1
    %p38 = por %p36, %p37
    %p40 = scmp.ne.s32.totalorder %s23, %s39
    %p41 = scmp.eq.s32.totalorder %s15, 0
    %p42 = por %p40, %p41
    %s44 = sadd.s32 %s43, 1
    %p47 = scmp.eq.s32.totalorder %s9, 1
    %p48 = scmp.ne.s32.totalorder %s43, %s45
    %p49 = scmp.eq.s32.totalorder %s9, 0
    %p50 = por %p48, %p49
    %p51 = scmp.ne.s32.totalorder %s43, %s45
    %p52 = scmp.eq.s32.totalorder %s14, 1
    %p53 = por %p51, %p52
    %p54 = scmp.ne.s32.totalorder %s45, %s46
    %p55 = scmp.eq.s32.totalorder %s14, 0
    %p56 = por %p54, %p55
    %p57 = scmp.ne.s32.totalorder %s45, %s46
    %p58 = scmp.eq.s32.totalorder %s15, 1
    %p59 = por %p57, %p58
    %p61 = scmp.ne.s32.totalorder %s46, %s60
    %p62 = scmp.eq.s32.totalorder %s15, 0
    %p63 = por %p61, %p62
    %s65 = sadd.s32 %s64, 1
    %p68 = scmp.eq.s32.totalorder %s9, 1
    %p69 = scmp.ne.s32.totalorder %s64, %s66
    %p70 = scmp.eq.s32.totalorder %s9, 0
    %p71 = por %p69, %p70
    %p72 = scmp.ne.s32.totalorder %s64, %s66
    %p73 = scmp.eq.s32.totalorder %s14, 1
    %p74 = por %p72, %p73
    %p75 = scmp.ne.s32.totalorder %s66, %s67
    %p76 = scmp.eq.s32.totalorder %s14, 0
    %p77 = por %p75, %p76
    %p78 = scmp.ne.s32.totalorder %s66, %s67
    %p79 = scmp.eq.s32.totalorder %s15, 1
    %p80 = por %p78, %p79
    %p82 = scmp.ne.s32.totalorder %s67, %s81
    %p83 = scmp.eq.s32.totalorder %s15, 0
    %p84 = por %p82, %p83
    %s85 = ssub.s32 %s9, %s16
    %p86 = scmp.eq.s32.totalorder %s85, 0
    %s88 = sadd.s32 %s87, 1
    %s89 = scalar_select %p86, %s87, %s88
    %p92 = pneg %p86
    %p93 = scmp.eq.s32.totalorder %s9, 1
    %p94 = por %p92, %p93
    %p95 = scmp.ne.s32.totalorder %s87, %s90
    %p96 = scmp.eq.s32.totalorder %s9, 0
    %p97 = por %p95, %p96
    %p98 = scmp.ne.s32.totalorder %s87, %s90
    %p99 = scmp.eq.s32.totalorder %s14, 1
    %p100 = por %p98, %p99
    %p101 = scmp.ne.s32.totalorder %s90, %s91
    %p102 = scmp.eq.s32.totalorder %s14, 0
    %p103 = por %p101, %p102
    %p104 = scmp.ne.s32.totalorder %s90, %s91
    %p105 = scmp.eq.s32.totalorder %s15, 1
    %p106 = por %p104, %p105
    %p108 = scmp.ne.s32.totalorder %s91, %s107
    %p109 = scmp.eq.s32.totalorder %s15, 0
    %p110 = por %p108, %p109
    %p111 = scmp.le.s32.totalorder 1, %s9
    %p112 = scmp.lt.s32.totalorder %s9, 3
    %p113 = pnand %p111, %p112
    %p114 = pneg %p113
    // Predicated region
    $region9: #{decoder_block_forward.7} parent=5 // pred_check
      _
    $region10: #{decoder_block_forward.7} parent=5 // pred_check_branch
      %116 = sbr.rel (%p113) target = $region12
    $region11: #{decoder_block_forward.7} parent=5 // pred_region
      %s117 = ssub.s32 %s9, 1
      // Predicated region
      $region13: #{decoder_block_forward.7} parent=11 // pred_check
        %p118 = pneg %p56
      $region14: #{decoder_block_forward.7} parent=11 // pred_check_branch
        %120 = sbr.rel (%p118) target = $region16
      $region15: #{decoder_block_forward.7} parent=11 // pred_region
        _
      $region16: #{decoder_block_forward.7} parent=11 // pred_fallthru
        _
      // Predicated region
      $region17: #{decoder_block_forward.7} parent=11 // pred_check
        %p121 = pneg %p77
      $region18: #{decoder_block_forward.7} parent=11 // pred_check_branch
        %123 = sbr.rel (%p121) target = $region20
      $region19: #{decoder_block_forward.7} parent=11 // pred_region
        _
      $region20: #{decoder_block_forward.7} parent=11 // pred_fallthru
        _
    $region12: #{decoder_block_forward.7} parent=5 // pred_fallthru
      _
    %p124 = scmp.lt.s32.totalorder %s9, 2
    // Predicated region
    $region21: #{decoder_block_forward.7} parent=5 // pred_check
      %p125 = pneg %p124
    $region22: #{decoder_block_forward.7} parent=5 // pred_check_branch
      %127 = sbr.rel (%p125) target = $region24
    $region23: #{decoder_block_forward.7} parent=5 // pred_region
      // Predicated region
      $region25: #{decoder_block_forward.7} parent=23 // pred_check
        %p128 = pneg %p29
      $region26: #{decoder_block_forward.7} parent=23 // pred_check_branch
        %130 = sbr.rel (%p128) target = $region28
      $region27: #{decoder_block_forward.7} parent=23 // pred_region
        %s131 = smul.u32 32, %s9
        %p132 = scmp.lt.s32.totalorder %s131, 63
        %s133 = scalar_select %p132, %s131, 63
        %s134 = smul.addr %s133, 8
        %s135 = scalar_lea.vmem %s0, %s134
        %s136 = smul.u32 32, %s9
      $region28: #{decoder_block_forward.7} parent=23 // pred_fallthru
        _
    $region24: #{decoder_block_forward.7} parent=5 // pred_fallthru
      _
    %p137 = scmp.le.s32.totalorder 1, %s9
    %p138 = scmp.lt.s32.totalorder %s9, 3
    %p139 = pnand %p137, %p138
    %p140 = pneg %p139
    // Predicated region
    $region29: #{decoder_block_forward.7} parent=5 // pred_check
      _
    $region30: #{decoder_block_forward.7} parent=5 // pred_check_branch
      %142 = sbr.rel (%p139) target = $region32
    $region31: #{decoder_block_forward.7} parent=5 // pred_region
      %s143 = ssub.s32 %s9, 1
      %s144 = smul.u32 32, %s14
      %p145 = scmp.lt.s32.totalorder %s144, 63
      %s146 = scalar_select %p145, %s144, 63
      %s147 = smul.addr %s146, 8
      %s148 = scalar_lea.vmem %s0, %s147
      %p149 = pneg %p35
      %p150 = pneg %p32
      %p151 = pneg %p56
      %p152 = pneg %p53
      %p153 = pneg %p77
      %p154 = pneg %p74
      %p155 = pneg %p103
      %p156 = pneg %p100
      %s157 = smul.u32 32, %s14
      %p158 = scmp.lt.s32.totalorder %s157, 63
      %s159 = scalar_select %p158, %s157, 63
      %s160 = smul.addr %s159, 8
      %s161 = scalar_lea.vmem %s3, %s160
      %s162 = smul.u32 32, %s14
      %p163 = scmp.lt.s32.totalorder %s162, 63
      %s164 = scalar_select %p163, %s162, 63
      %s165 = smul.addr %s164, 8
      %s166 = scalar_lea.vmem %s0, %s165
      %s167 = smul.u32 32, %s14
      %s168 = smul.u32 32, %s14
      %p169 = scmp.lt.s32.totalorder %s168, 63
      %s170 = scalar_select %p169, %s168, 63
      %s171 = smul.addr %s170, 8
      %s172 = scalar_lea.vmem %s3, %s171
      %s173 = smul.u32 32, %s14
      %v174 = vld [vmem:[%s166] sm:$0xff]
      %v175 = vld [vmem:[%s166 + $0x8] sm:$0xff]
      %v176 = vld [vmem:[%s166 + $0x10] sm:$0xff]
      %v177 = vld [vmem:[%s166 + $0x18] sm:$0xff]
      %v178 = vld [vmem:[%s166 + $0x20] sm:$0xff]
      %v179 = vld [vmem:[%s166 + $0x28] sm:$0xff]
      %v180 = vld [vmem:[%s166 + $0x30] sm:$0xff]
      %v181 = vld [vmem:[%s166 + $0x38] sm:$0xff]
      %v182 = vld [vmem:[%s166 + $0x40] sm:$0xff]
      %v183 = vld [vmem:[%s166 + $0x48] sm:$0xff]
      %v184 = vld [vmem:[%s166 + $0x50] sm:$0xff]
      %v185 = vld [vmem:[%s166 + $0x58] sm:$0xff]
      %v186 = vld [vmem:[%s166 + $0x60] sm:$0xff]
      %v187 = vld [vmem:[%s166 + $0x68] sm:$0xff]
      %v188 = vld [vmem:[%s166 + $0x70] sm:$0xff]
      %v189 = vld [vmem:[%s166 + $0x78] sm:$0xff]
      %v190 = vld [vmem:[%s166 + $0x80] sm:$0xff]
      %v191 = vld [vmem:[%s166 + $0x88] sm:$0xff]
      %v192 = vld [vmem:[%s166 + $0x90] sm:$0xff]
      %v193 = vld [vmem:[%s166 + $0x98] sm:$0xff]
      %v194 = vld [vmem:[%s166 + $0xa0] sm:$0xff]
      %v195 = vld [vmem:[%s166 + $0xa8] sm:$0xff]
      %v196 = vld [vmem:[%s166 + $0xb0] sm:$0xff]
      %v197 = vld [vmem:[%s166 + $0xb8] sm:$0xff]
      %v198 = vld [vmem:[%s166 + $0xc0] sm:$0xff]
      %v199 = vld [vmem:[%s166 + $0xc8] sm:$0xff]
      %v200 = vld [vmem:[%s166 + $0xd0] sm:$0xff]
      %v201 = vld [vmem:[%s166 + $0xd8] sm:$0xff]
      %v202 = vld [vmem:[%s166 + $0xe0] sm:$0xff]
      %v203 = vld [vmem:[%s166 + $0xe8] sm:$0xff]
      %v204 = vld [vmem:[%s166 + $0xf0] sm:$0xff]
      %v205 = vld [vmem:[%s166 + $0xf8] sm:$0xff]
      %v206 = vld [vmem:[%s1] sm:$0x1]
      %v208 = vlaneseq
      %v209 = vshrl.u32 %v208, 7
      %v210 = vsub.s32 0, %v209
      %v211 = vrot.slane %v206, %v210
      %v213 = vmul.f32 %v174, %v211
      %v214 = vmul.f32 %v175, %v211
      %v215 = vmul.f32 %v176, %v211
      %v216 = vmul.f32 %v177, %v211
      %v217 = vmul.f32 %v178, %v211
      %v218 = vmul.f32 %v179, %v211
      %v219 = vmul.f32 %v180, %v211
      %v220 = vmul.f32 %v181, %v211
      %v221 = vmul.f32 %v182, %v211
      %v222 = vmul.f32 %v183, %v211
      %v223 = vmul.f32 %v184, %v211
      %v224 = vmul.f32 %v185, %v211
      %v225 = vmul.f32 %v186, %v211
      %v226 = vmul.f32 %v187, %v211
      %v227 = vmul.f32 %v188, %v211
      %v228 = vmul.f32 %v189, %v211
      %v229 = vmul.f32 %v190, %v211
      %v230 = vmul.f32 %v191, %v211
      %v231 = vmul.f32 %v192, %v211
      %v232 = vmul.f32 %v193, %v211
      %v233 = vmul.f32 %v194, %v211
      %v234 = vmul.f32 %v195, %v211
      %v235 = vmul.f32 %v196, %v211
      %v236 = vmul.f32 %v197, %v211
      %v237 = vmul.f32 %v198, %v211
      %v238 = vmul.f32 %v199, %v211
      %v239 = vmul.f32 %v200, %v211
      %v240 = vmul.f32 %v201, %v211
      %v241 = vmul.f32 %v202, %v211
      %v242 = vmul.f32 %v203, %v211
      %v243 = vmul.f32 %v204, %v211
      %v244 = vmul.f32 %v205, %v211
      %v245 = vld [vmem:[%s2] sm:$0x1]
      %v247 = vlaneseq
      %v248 = vshrl.u32 %v247, 7
      %v249 = vsub.s32 0, %v248
      %v250 = vrot.slane %v245, %v249
      %v252 = vadd.f32 %v213, %v250
      %v253 = vadd.f32 %v214, %v250
      %v254 = vadd.f32 %v215, %v250
      %v255 = vadd.f32 %v216, %v250
      %v256 = vadd.f32 %v217, %v250
      %v257 = vadd.f32 %v218, %v250
      %v258 = vadd.f32 %v219, %v250
      %v259 = vadd.f32 %v220, %v250
      %v260 = vadd.f32 %v221, %v250
      %v261 = vadd.f32 %v222, %v250
      %v262 = vadd.f32 %v223, %v250
      %v263 = vadd.f32 %v224, %v250
      %v264 = vadd.f32 %v225, %v250
      %v265 = vadd.f32 %v226, %v250
      %v266 = vadd.f32 %v227, %v250
      %v267 = vadd.f32 %v228, %v250
      %v268 = vadd.f32 %v229, %v250
      %v269 = vadd.f32 %v230, %v250
      %v270 = vadd.f32 %v231, %v250
      %v271 = vadd.f32 %v232, %v250
      %v272 = vadd.f32 %v233, %v250
      %v273 = vadd.f32 %v234, %v250
      %v274 = vadd.f32 %v235, %v250
      %v275 = vadd.f32 %v236, %v250
      %v276 = vadd.f32 %v237, %v250
      %v277 = vadd.f32 %v238, %v250
      %v278 = vadd.f32 %v239, %v250
      %v279 = vadd.f32 %v240, %v250
      %v280 = vadd.f32 %v241, %v250
      %v281 = vadd.f32 %v242, %v250
      %v282 = vadd.f32 %v243, %v250
      %v283 = vadd.f32 %v244, %v250
      %v284 = vmax.f32 %v252, 0.0
      %v285 = vmax.f32 %v253, 0.0
      %v286 = vmax.f32 %v254, 0.0
      %v287 = vmax.f32 %v255, 0.0
      %v288 = vmax.f32 %v256, 0.0
      %v289 = vmax.f32 %v257, 0.0
      %v290 = vmax.f32 %v258, 0.0
      %v291 = vmax.f32 %v259, 0.0
      %v292 = vmax.f32 %v260, 0.0
      %v293 = vmax.f32 %v261, 0.0
      %v294 = vmax.f32 %v262, 0.0
      %v295 = vmax.f32 %v263, 0.0
      %v296 = vmax.f32 %v264, 0.0
      %v297 = vmax.f32 %v265, 0.0
      %v298 = vmax.f32 %v266, 0.0
      %v299 = vmax.f32 %v267, 0.0
      %v300 = vmax.f32 %v268, 0.0
      %v301 = vmax.f32 %v269, 0.0
      %v302 = vmax.f32 %v270, 0.0
      %v303 = vmax.f32 %v271, 0.0
      %v304 = vmax.f32 %v272, 0.0
      %v305 = vmax.f32 %v273, 0.0
      %v306 = vmax.f32 %v274, 0.0
      %v307 = vmax.f32 %v275, 0.0
      %v308 = vmax.f32 %v276, 0.0
      %v309 = vmax.f32 %v277, 0.0
      %v310 = vmax.f32 %v278, 0.0
      %v311 = vmax.f32 %v279, 0.0
      %v312 = vmax.f32 %v280, 0.0
      %v313 = vmax.f32 %v281, 0.0
      %v314 = vmax.f32 %v282, 0.0
      %v315 = vmax.f32 %v283, 0.0
      %316 = vst [vmem:[%s172] sm:$0xff] %v284
      %317 = vst [vmem:[%s172 + $0x8] sm:$0xff] %v285
      %318 = vst [vmem:[%s172 + $0x10] sm:$0xff] %v286
      %319 = vst [vmem:[%s172 + $0x18] sm:$0xff] %v287
      %320 = vst [vmem:[%s172 + $0x20] sm:$0xff] %v288
      %321 = vst [vmem:[%s172 + $0x28] sm:$0xff] %v289
      %322 = vst [vmem:[%s172 + $0x30] sm:$0xff] %v290
      %323 = vst [vmem:[%s172 + $0x38] sm:$0xff] %v291
      %324 = vst [vmem:[%s172 + $0x40] sm:$0xff] %v292
      %325 = vst [vmem:[%s172 + $0x48] sm:$0xff] %v293
      %326 = vst [vmem:[%s172 + $0x50] sm:$0xff] %v294
      %327 = vst [vmem:[%s172 + $0x58] sm:$0xff] %v295
      %328 = vst [vmem:[%s172 + $0x60] sm:$0xff] %v296
      %329 = vst [vmem:[%s172 + $0x68] sm:$0xff] %v297
      %330 = vst [vmem:[%s172 + $0x70] sm:$0xff] %v298
      %331 = vst [vmem:[%s172 + $0x78] sm:$0xff] %v299
      %332 = vst [vmem:[%s172 + $0x80] sm:$0xff] %v300
      %333 = vst [vmem:[%s172 + $0x88] sm:$0xff] %v301
      %334 = vst [vmem:[%s172 + $0x90] sm:$0xff] %v302
      %335 = vst [vmem:[%s172 + $0x98] sm:$0xff] %v303
      %336 = vst [vmem:[%s172 + $0xa0] sm:$0xff] %v304
      %337 = vst [vmem:[%s172 + $0xa8] sm:$0xff] %v305
      %338 = vst [vmem:[%s172 + $0xb0] sm:$0xff] %v306
      %339 = vst [vmem:[%s172 + $0xb8] sm:$0xff] %v307
      %340 = vst [vmem:[%s172 + $0xc0] sm:$0xff] %v308
      %341 = vst [vmem:[%s172 + $0xc8] sm:$0xff] %v309
      %342 = vst [vmem:[%s172 + $0xd0] sm:$0xff] %v310
      %343 = vst [vmem:[%s172 + $0xd8] sm:$0xff] %v311
      %344 = vst [vmem:[%s172 + $0xe0] sm:$0xff] %v312
      %345 = vst [vmem:[%s172 + $0xe8] sm:$0xff] %v313
      %346 = vst [vmem:[%s172 + $0xf0] sm:$0xff] %v314
      %347 = vst [vmem:[%s172 + $0xf8] sm:$0xff] %v315
      %s348 = smul.u32 32, %s14
      %p349 = scmp.lt.s32.totalorder %s348, 63
      %s350 = scalar_select %p349, %s348, 63
      %s351 = smul.addr %s350, 8
      %s352 = scalar_lea.vmem %s3, %s351
      // Predicated region
      $region33: #{decoder_block_forward.7} parent=31 // pred_check
        %p353 = pneg %p100
      $region34: #{decoder_block_forward.7} parent=31 // pred_check_branch
        %355 = sbr.rel (%p353) target = $region36
      $region35: #{decoder_block_forward.7} parent=31 // pred_region
        %s356 = smul.u32 32, %s14
      $region36: #{decoder_block_forward.7} parent=31 // pred_fallthru
        _
    $region32: #{decoder_block_forward.7} parent=5 // pred_fallthru
      _
    %p357 = scmp.le.s32.totalorder 2, %s9
    // Predicated region
    $region37: #{decoder_block_forward.7} parent=5 // pred_check
      %p358 = pneg %p357
    $region38: #{decoder_block_forward.7} parent=5 // pred_check_branch
      %360 = sbr.rel (%p358) target = $region40
    $region39: #{decoder_block_forward.7} parent=5 // pred_region
      %s361 = ssub.s32 %s9, 2
      // Predicated region
      $region41: #{decoder_block_forward.7} parent=39 // pred_check
        %p362 = pneg %p106
      $region42: #{decoder_block_forward.7} parent=39 // pred_check_branch
        %364 = sbr.rel (%p362) target = $region44
      $region43: #{decoder_block_forward.7} parent=39 // pred_region
        %s365 = smul.u32 32, %s15
        %p366 = scmp.lt.s32.totalorder %s365, 63
        %s367 = scalar_select %p366, %s365, 63
        %s368 = smul.addr %s367, 8
        %s369 = scalar_lea.vmem %s3, %s368
      $region44: #{decoder_block_forward.7} parent=39 // pred_fallthru
        _
    $region40: #{decoder_block_forward.7} parent=5 // pred_fallthru
      _
  $region6: #{decoder_block_forward.7} parent=0 // loop_footer
    %s13 = sadd.s32 1, %s9
  $region7: #{decoder_block_forward.7} parent=0 // loop_footer_branch
    %8 = sbr.rel target = $region3
  $region8: #{decoder_block_forward.7} parent=0 // loop_exit
    _

// kernel: decoder_block_forward.5
$region0: #{decoder_block_forward.5}
  #allocation0 [shape = 'u32[]', space=smem, size = 0x4, offset = 0x4, fixed_abs, tag = 'smem constant byte address 0x4 - core index']
  #allocation1 [shape = 'u32[144,128]{1,0:T(1,128)}', space=vmem, size = 0x12000, scoped, tag = 'internal scratch']
  %s0 = inlined_call_operand.vmem [shape: f32[2,8,8,128], index: 0, kind: input, shape index: {}, may-alias: {0,1}]
  %s1 = inlined_call_operand.vmem [shape: f32[2,8,8,128], index: 1, kind: input, shape index: {}, may-alias: {0,1}]
  %s2 = inlined_call_operand.vmem [shape: f32[1,128], index: 2, kind: input, shape index: {}]
  %s3 = inlined_call_operand.vmem [shape: f32[1,128], index: 3, kind: input, shape index: {}]
  %s4 = inlined_call_operand.hbm [shape: f32[512,512], index: 4, kind: input, shape index: {}]
  %s5 = inlined_call_operand.vmem [shape: f32[1,512], index: 5, kind: input, shape index: {}]
  %s6 = inlined_call_operand.vmem [shape: f32[4,2,8,8,128], index: 6, kind: output, shape index: {0}]
  %s7 = inlined_call_operand.vmem [shape: f32[2,1,1,512], index: 7, kind: output, shape index: {1}]
  %s8 = inlined_call_operand.vmem [shape: f32[2,1,1,512], index: 8, kind: output, shape index: {2}]
  %9 = xla_tuple %s6, %s7, %s8
  %s10 = sld [smem:[#allocation0]]
  $region111: #{decoder_block_forward.5} parent=0
    _
  %s12 = ssub.s32 1, %s10
  %s13 = scalar_select 0, %s12, %s10
  $region1: #{decoder_block_forward.5} parent=0
    #allocation2 [shape = 'u8[1048576]{0}', space=vmem, size = 0x100000, scoped, tag = 'input window, operand 4, single buffered']
    #allocation3 [shape = 's32[2]{0}', space=sflag, size = 0x8, scoped, tag = 'scoped memory for decoder_block_forward.5']
    #allocation4 [shape = 'u8[262144]{0}', space=vmem, size = 0x40000, scoped, tag = 'output window, operand 0']
    %14 = vsyncpa [#allocation3], 0
    loop: start=0, step=1, limit=4
    $region2: #{decoder_block_forward.5} parent=1 // loop_pre_header
      _
    $region3: #{decoder_block_forward.5} parent=1 // loop_header
      %s16 = sphi 0, %s20
      %p17 = scmp.ge.s32.totalorder %s16, 4
      %s23 = sphi 0, %s35
      %s24 = sphi 0, %s31
      %s25 = sphi 0, %s23
      %s26 = sphi 0, %s24
      %s27 = sphi 0, %s25
      %s28 = sphi 0, %s26
      %s40 = sphi 0, %s42
      %s43 = sphi 0, %s40
      %s44 = sphi 0, %s43
      %s60 = sphi 0, %s44
      %s76 = sphi 0, %s78
      %s79 = sphi 0, %s76
      %s80 = sphi 0, %s79
      %s96 = sphi 0, %s80
      %s100 = sphi 0, %s100
      %s102 = sphi 0, %s100
      %s103 = sphi 0, %s102
      %s117 = sphi 0, %s103
      %s121 = sphi 0, %s121
      %s123 = sphi 0, %s121
      %s124 = sphi 0, %s123
      %s138 = sphi 0, %s124
      %s142 = sphi 0, %s142
      %s144 = sphi 0, %s142
      %s145 = sphi 0, %s144
      %s159 = sphi 0, %s145
      %s163 = sphi 0, %s163
      %s165 = sphi 0, %s163
      %s166 = sphi 0, %s165
      %s180 = sphi 0, %s166
      %s188 = sphi 0, %s190
      %s191 = sphi 0, %s188
      %s192 = sphi 0, %s191
      %s208 = sphi 0, %s192
      %s216 = sphi 0, %s218
      %s219 = sphi 0, %s216
      %s220 = sphi 0, %s219
      %s236 = sphi 0, %s220
      %s244 = sphi 0, %s246
      %s247 = sphi 0, %s244
      %s248 = sphi 0, %s247
      %s264 = sphi 0, %s248
    $region4: #{decoder_block_forward.5} parent=1 // loop_header_branch
      %19 = sbr.rel (%p17) target = $region8
    $region5: #{decoder_block_forward.5} parent=1 // loop_body
      %s21 = ssub.s32 %s16, 1
      %s22 = ssub.s32 %s16, 2
      %s29 = sadd.s32 1, %s24
      %p30 = scmp.ge.s32.totalorder %s29, 1
      %s31 = scalar_select %p30, 0, %s29
      %s32 = sadd.s32 1, %s23
      %s33 = scalar_select %p30, %s32, %s23
      %p34 = scmp.ge.s32.totalorder %s33, 2
      %s35 = scalar_select %p34, 0, %s33
      %s36 = ssub.s32 %s23, %s35
      %s37 = ssub.s32 %s24, %s31
      %s38 = sor.u32 %s36, %s37
      %p39 = scmp.eq.s32.totalorder %s38, 0
      %s41 = sadd.s32 %s40, 1
      %s42 = scalar_select %p39, %s40, %s41
      %p45 = pneg %p39
      %p46 = scmp.eq.s32.totalorder %s16, 1
      %p47 = por %p45, %p46
      %p48 = scmp.ne.s32.totalorder %s40, %s43
      %p49 = scmp.eq.s32.totalorder %s16, 0
      %p50 = por %p48, %p49
      %p51 = scmp.ne.s32.totalorder %s40, %s43
      %p52 = scmp.eq.s32.totalorder %s21, 1
      %p53 = por %p51, %p52
      %p54 = scmp.ne.s32.totalorder %s43, %s44
      %p55 = scmp.eq.s32.totalorder %s21, 0
      %p56 = por %p54, %p55
      %p57 = scmp.ne.s32.totalorder %s43, %s44
      %p58 = scmp.eq.s32.totalorder %s22, 1
      %p59 = por %p57, %p58
      %p61 = scmp.ne.s32.totalorder %s44, %s60
      %p62 = scmp.eq.s32.totalorder %s22, 0
      %p63 = por %p61, %p62
      %s64 = sadd.s32 %s24, 1
      %s65 = smul.u32 %s64, 8
      %p66 = scmp.lt.s32.totalorder %s65, 7
      %s67 = scalar_select %p66, %s65, 7
      %s68 = sadd.s32 %s31, 1
      %s69 = smul.u32 %s68, 8
      %p70 = scmp.lt.s32.totalorder %s69, 7
      %s71 = scalar_select %p70, %s69, 7
      %s72 = ssub.s32 %s23, %s35
      %s73 = ssub.s32 %s67, %s71
      %s74 = sor.u32 %s72, %s73
      %p75 = scmp.eq.s32.totalorder %s74, 0
      %s77 = sadd.s32 %s76, 1
      %s78 = scalar_select %p75, %s76, %s77
      %p81 = pneg %p75
      %p82 = scmp.eq.s32.totalorder %s16, 1
      %p83 = por %p81, %p82
      %p84 = scmp.ne.s32.totalorder %s76, %s79
      %p85 = scmp.eq.s32.totalorder %s16, 0
      %p86 = por %p84, %p85
      %p87 = scmp.ne.s32.totalorder %s76, %s79
      %p88 = scmp.eq.s32.totalorder %s21, 1
      %p89 = por %p87, %p88
      %p90 = scmp.ne.s32.totalorder %s79, %s80
      %p91 = scmp.eq.s32.totalorder %s21, 0
      %p92 = por %p90, %p91
      %p93 = scmp.ne.s32.totalorder %s79, %s80
      %p94 = scmp.eq.s32.totalorder %s22, 1
      %p95 = por %p93, %p94
      %p97 = scmp.ne.s32.totalorder %s80, %s96
      %p98 = scmp.eq.s32.totalorder %s22, 0
      %p99 = por %p97, %p98
      %s101 = sadd.s32 %s100, 1
      %p104 = scmp.eq.s32.totalorder %s16, 1
      %p105 = scmp.ne.s32.totalorder %s100, %s102
      %p106 = scmp.eq.s32.totalorder %s16, 0
      %p107 = por %p105, %p106
      %p108 = scmp.ne.s32.totalorder %s100, %s102
      %p109 = scmp.eq.s32.totalorder %s21, 1
      %p110 = por %p108, %p109
      %p111 = scmp.ne.s32.totalorder %s102, %s103
      %p112 = scmp.eq.s32.totalorder %s21, 0
      %p113 = por %p111, %p112
      %p114 = scmp.ne.s32.totalorder %s102, %s103
      %p115 = scmp.eq.s32.totalorder %s22, 1
      %p116 = por %p114, %p115
      %p118 = scmp.ne.s32.totalorder %s103, %s117
      %p119 = scmp.eq.s32.totalorder %s22, 0
      %p120 = por %p118, %p119
      %s122 = sadd.s32 %s121, 1
      %p125 = scmp.eq.s32.totalorder %s16, 1
      %p126 = scmp.ne.s32.totalorder %s121, %s123
      %p127 = scmp.eq.s32.totalorder %s16, 0
      %p128 = por %p126, %p127
      %p129 = scmp.ne.s32.totalorder %s121, %s123
      %p130 = scmp.eq.s32.totalorder %s21, 1
      %p131 = por %p129, %p130
      %p132 = scmp.ne.s32.totalorder %s123, %s124
      %p133 = scmp.eq.s32.totalorder %s21, 0
      %p134 = por %p132, %p133
      %p135 = scmp.ne.s32.totalorder %s123, %s124
      %p136 = scmp.eq.s32.totalorder %s22, 1
      %p137 = por %p135, %p136
      %p139 = scmp.ne.s32.totalorder %s124, %s138
      %p140 = scmp.eq.s32.totalorder %s22, 0
      %p141 = por %p139, %p140
      %s143 = sadd.s32 %s142, 1
      %p146 = scmp.eq.s32.totalorder %s16, 1
      %p147 = scmp.ne.s32.totalorder %s142, %s144
      %p148 = scmp.eq.s32.totalorder %s16, 0
      %p149 = por %p147, %p148
      %p150 = scmp.ne.s32.totalorder %s142, %s144
      %p151 = scmp.eq.s32.totalorder %s21, 1
      %p152 = por %p150, %p151
      %p153 = scmp.ne.s32.totalorder %s144, %s145
      %p154 = scmp.eq.s32.totalorder %s21, 0
      %p155 = por %p153, %p154
      %p156 = scmp.ne.s32.totalorder %s144, %s145
      %p157 = scmp.eq.s32.totalorder %s22, 1
      %p158 = por %p156, %p157
      %p160 = scmp.ne.s32.totalorder %s145, %s159
      %p161 = scmp.eq.s32.totalorder %s22, 0
      %p162 = por %p160, %p161
      %s164 = sadd.s32 %s163, 1
      %p167 = scmp.eq.s32.totalorder %s16, 1
      %p168 = scmp.ne.s32.totalorder %s163, %s165
      %p169 = scmp.eq.s32.totalorder %s16, 0
      %p170 = por %p168, %p169
      %p171 = scmp.ne.s32.totalorder %s163, %s165
      %p172 = scmp.eq.s32.totalorder %s21, 1
      %p173 = por %p171, %p172
      %p174 = scmp.ne.s32.totalorder %s165, %s166
      %p175 = scmp.eq.s32.totalorder %s21, 0
      %p176 = por %p174, %p175
      %p177 = scmp.ne.s32.totalorder %s165, %s166
      %p178 = scmp.eq.s32.totalorder %s22, 1
      %p179 = por %p177, %p178
      %p181 = scmp.ne.s32.totalorder %s166, %s180
      %p182 = scmp.eq.s32.totalorder %s22, 0
      %p183 = por %p181, %p182
      %s184 = ssub.s32 %s23, %s35
      %s185 = ssub.s32 %s24, %s31
      %s186 = sor.u32 %s184, %s185
      %p187 = scmp.eq.s32.totalorder %s186, 0
      %s189 = sadd.s32 %s188, 1
      %s190 = scalar_select %p187, %s188, %s189
      %p193 = pneg %p187
      %p194 = scmp.eq.s32.totalorder %s16, 1
      %p195 = por %p193, %p194
      %p196 = scmp.ne.s32.totalorder %s188, %s191
      %p197 = scmp.eq.s32.totalorder %s16, 0
      %p198 = por %p196, %p197
      %p199 = scmp.ne.s32.totalorder %s188, %s191
      %p200 = scmp.eq.s32.totalorder %s21, 1
      %p201 = por %p199, %p200
      %p202 = scmp.ne.s32.totalorder %s191, %s192
      %p203 = scmp.eq.s32.totalorder %s21, 0
      %p204 = por %p202, %p203
      %p205 = scmp.ne.s32.totalorder %s191, %s192
      %p206 = scmp.eq.s32.totalorder %s22, 1
      %p207 = por %p205, %p206
      %p209 = scmp.ne.s32.totalorder %s192, %s208
      %p210 = scmp.eq.s32.totalorder %s22, 0
      %p211 = por %p209, %p210
      %s212 = ssub.s32 %s23, %s35
      %s213 = ssub.s32 %s24, %s31
      %s214 = sor.u32 %s212, %s213
      %p215 = scmp.eq.s32.totalorder %s214, 0
      %s217 = sadd.s32 %s216, 1
      %s218 = scalar_select %p215, %s216, %s217
      %p221 = pneg %p215
      %p222 = scmp.eq.s32.totalorder %s16, 1
      %p223 = por %p221, %p222
      %p224 = scmp.ne.s32.totalorder %s216, %s219
      %p225 = scmp.eq.s32.totalorder %s16, 0
      %p226 = por %p224, %p225
      %p227 = scmp.ne.s32.totalorder %s216, %s219
      %p228 = scmp.eq.s32.totalorder %s21, 1
      %p229 = por %p227, %p228
      %p230 = scmp.ne.s32.totalorder %s219, %s220
      %p231 = scmp.eq.s32.totalorder %s21, 0
      %p232 = por %p230, %p231
      %p233 = scmp.ne.s32.totalorder %s219, %s220
      %p234 = scmp.eq.s32.totalorder %s22, 1
      %p235 = por %p233, %p234
      %p237 = scmp.ne.s32.totalorder %s220, %s236
      %p238 = scmp.eq.s32.totalorder %s22, 0
      %p239 = por %p237, %p238
      %s240 = ssub.s32 %s23, %s35
      %s241 = ssub.s32 %s24, %s31
      %s242 = sor.u32 %s240, %s241
      %p243 = scmp.eq.s32.totalorder %s242, 0
      %s245 = sadd.s32 %s244, 1
      %s246 = scalar_select %p243, %s244, %s245
      %p249 = pneg %p243
      %p250 = scmp.eq.s32.totalorder %s16, 1
      %p251 = por %p249, %p250
      %p252 = scmp.ne.s32.totalorder %s244, %s247
      %p253 = scmp.eq.s32.totalorder %s16, 0
      %p254 = por %p252, %p253
      %p255 = scmp.ne.s32.totalorder %s244, %s247
      %p256 = scmp.eq.s32.totalorder %s21, 1
      %p257 = por %p255, %p256
      %p258 = scmp.ne.s32.totalorder %s247, %s248
      %p259 = scmp.eq.s32.totalorder %s21, 0
      %p260 = por %p258, %p259
      %p261 = scmp.ne.s32.totalorder %s247, %s248
      %p262 = scmp.eq.s32.totalorder %s22, 1
      %p263 = por %p261, %p262
      %p265 = scmp.ne.s32.totalorder %s248, %s264
      %p266 = scmp.eq.s32.totalorder %s22, 0
      %p267 = por %p265, %p266
      %p268 = scmp.le.s32.totalorder 1, %s16
      %p269 = scmp.lt.s32.totalorder %s16, 3
      %p270 = pnand %p268, %p269
      %p271 = pneg %p270
      // Predicated region
      $region9: #{decoder_block_forward.5} parent=5 // pred_check
        _
      $region10: #{decoder_block_forward.5} parent=5 // pred_check_branch
        %273 = sbr.rel (%p270) target = $region12
      $region11: #{decoder_block_forward.5} parent=5 // pred_region
        %s274 = ssub.s32 %s16, 1
        // Predicated region
        $region13: #{decoder_block_forward.5} parent=11 // pred_check
          %p275 = pneg %p113
        $region14: #{decoder_block_forward.5} parent=11 // pred_check_branch
          %277 = sbr.rel (%p275) target = $region16
        $region15: #{decoder_block_forward.5} parent=11 // pred_region
          _
        $region16: #{decoder_block_forward.5} parent=11 // pred_fallthru
          _
        // Predicated region
        $region17: #{decoder_block_forward.5} parent=11 // pred_check
          %p278 = pneg %p134
        $region18: #{decoder_block_forward.5} parent=11 // pred_check_branch
          %280 = sbr.rel (%p278) target = $region20
        $region19: #{decoder_block_forward.5} parent=11 // pred_region
          _
        $region20: #{decoder_block_forward.5} parent=11 // pred_fallthru
          _
        // Predicated region
        $region21: #{decoder_block_forward.5} parent=11 // pred_check
          %p281 = pneg %p155
        $region22: #{decoder_block_forward.5} parent=11 // pred_check_branch
          %283 = sbr.rel (%p281) target = $region24
        $region23: #{decoder_block_forward.5} parent=11 // pred_region
          %s285 = ssub.s32 32768, 32768
          %286 = vsyncadd [#allocation3], %s285
          %s287 = sshll.u32 [#allocation2], 4
          %s288 = int_to_ptr.vmem [resolvable:$true] %s287
          %293 = dma.hbm_to_vmem [thread:$0]  %s4, 32768, %s288, [#allocation3], 512, 512, 32
        $region24: #{decoder_block_forward.5} parent=11 // pred_fallthru
          _
        // Predicated region
        $region25: #{decoder_block_forward.5} parent=11 // pred_check
          %p294 = pneg %p176
        $region26: #{decoder_block_forward.5} parent=11 // pred_check_branch
          %296 = sbr.rel (%p294) target = $region28
        $region27: #{decoder_block_forward.5} parent=11 // pred_region
          _
        $region28: #{decoder_block_forward.5} parent=11 // pred_fallthru
          _
      $region12: #{decoder_block_forward.5} parent=5 // pred_fallthru
        _
      %p297 = scmp.lt.s32.totalorder %s16, 2
      // Predicated region
      $region29: #{decoder_block_forward.5} parent=5 // pred_check
        %p298 = pneg %p297
      $region30: #{decoder_block_forward.5} parent=5 // pred_check_branch
        %300 = sbr.rel (%p298) target = $region32
      $region31: #{decoder_block_forward.5} parent=5 // pred_region
        // Predicated region
        $region33: #{decoder_block_forward.5} parent=31 // pred_check
          %p301 = pneg %p50
        $region34: #{decoder_block_forward.5} parent=31 // pred_check_branch
          %303 = sbr.rel (%p301) target = $region36
        $region35: #{decoder_block_forward.5} parent=31 // pred_region
          %s304 = smul.u32 8, %s24
          %p305 = scmp.lt.s32.totalorder %s23, 1
          %s306 = scalar_select %p305, %s23, 1
          %p307 = scmp.lt.s32.totalorder %s304, 7
          %s308 = scalar_select %p307, %s304, 7
          %s309 = smul.addr %s306, 8
          %s310 = sadd.s32 %s308, %s309
          %s311 = smul.addr %s310, 8
          %s312 = scalar_lea.vmem %s0, %s311
          %s313 = smul.u32 8, %s24
        $region36: #{decoder_block_forward.5} parent=31 // pred_fallthru
          _
        // Predicated region
        $region37: #{decoder_block_forward.5} parent=31 // pred_check
          %p314 = pneg %p86
        $region38: #{decoder_block_forward.5} parent=31 // pred_check_branch
          %316 = sbr.rel (%p314) target = $region40
        $region39: #{decoder_block_forward.5} parent=31 // pred_region
          %s317 = sadd.s32 %s24, 1
          %s318 = smul.u32 %s317, 8
          %p319 = scmp.lt.s32.totalorder %s318, 7
          %s320 = scalar_select %p319, %s318, 7
          %p321 = scmp.lt.s32.totalorder %s23, 1
          %s322 = scalar_select %p321, %s23, 1
          %p323 = scmp.lt.s32.totalorder %s320, 7
          %s324 = scalar_select %p323, %s320, 7
          %s325 = smul.addr %s322, 8
          %s326 = sadd.s32 %s324, %s325
          %s327 = smul.addr %s326, 8
          %s328 = scalar_lea.vmem %s1, %s327
          %s329 = sadd.s32 %s24, 1
          %s330 = smul.u32 %s329, 8
          %p331 = scmp.lt.s32.totalorder %s330, 7
          %s332 = scalar_select %p331, %s330, 7
        $region40: #{decoder_block_forward.5} parent=31 // pred_fallthru
          _
      $region32: #{decoder_block_forward.5} parent=5 // pred_fallthru
        _
      %p333 = scmp.le.s32.totalorder 1, %s16
      %p334 = scmp.lt.s32.totalorder %s16, 3
      %p335 = pnand %p333, %p334
      %p336 = pneg %p335
      // Predicated region
      $region41: #{decoder_block_forward.5} parent=5 // pred_check
        _
      $region42: #{decoder_block_forward.5} parent=5 // pred_check_branch
        %338 = sbr.rel (%p335) target = $region44
      $region43: #{decoder_block_forward.5} parent=5 // pred_region
        %s339 = ssub.s32 %s16, 1
        // Predicated region
        $region45: #{decoder_block_forward.5} parent=43 // pred_check
          %p340 = pneg %p155
        $region46: #{decoder_block_forward.5} parent=43 // pred_check_branch
          %342 = sbr.rel (%p340) target = $region48
        $region47: #{decoder_block_forward.5} parent=43 // pred_region
          %343 = dma.done [#allocation3], 32768
        $region48: #{decoder_block_forward.5} parent=43 // pred_fallthru
          _
        %s344 = smul.u32 8, %s26
        %p345 = scmp.lt.s32.totalorder %s25, 1
        %s346 = scalar_select %p345, %s25, 1
        %p347 = scmp.lt.s32.totalorder %s344, 7
        %s348 = scalar_select %p347, %s344, 7
        %s349 = smul.addr %s346, 8
        %s350 = sadd.s32 %s348, %s349
        %s351 = smul.addr %s350, 8
        %s352 = scalar_lea.vmem %s0, %s351
        %p353 = pneg %p56
        %p354 = pneg %p53
        %s355 = sadd.s32 %s26, 1
        %s356 = smul.u32 %s355, 8
        %p357 = scmp.lt.s32.totalorder %s356, 7
        %s358 = scalar_select %p357, %s356, 7
        %p359 = scmp.lt.s32.totalorder %s25, 1
        %s360 = scalar_select %p359, %s25, 1
        %p361 = scmp.lt.s32.totalorder %s358, 7
        %s362 = scalar_select %p361, %s358, 7
        %s363 = smul.addr %s360, 8
        %s364 = sadd.s32 %s362, %s363
        %s365 = smul.addr %s364, 8
        %s366 = scalar_lea.vmem %s1, %s365
        %p367 = pneg %p92
        %p368 = pneg %p89
        %p369 = pneg %p113
        %p370 = pneg %p110
        %p371 = pneg %p134
        %p372 = pneg %p131
        %p373 = pneg %p155
        %p374 = pneg %p152
        %p375 = pneg %p176
        %p376 = pneg %p173
        %p377 = pneg %p204
        %p378 = pneg %p201
        %s379 = sand.u32 %s191, 1
        %s380 = sand.u32 %s191, 1
        %s381 = smul.addr %s380, 256
        %s382 = scalar_lea.vmem [#allocation4], %s381
        %p383 = pneg %p232
        %p384 = pneg %p229
        %p385 = scmp.lt.s32.totalorder %s25, 1
        %s386 = scalar_select %p385, %s25, 1
        %p387 = scmp.lt.s32.totalorder %s26, 0
        %s388 = scalar_select %p387, %s26, 0
        %s389 = smul.addr %s388, 4
        %s390 = smul.addr %s386, 4
        %s391 = sadd.s32 %s389, %s390
        %s392 = scalar_lea.vmem %s7, %s391
        %p393 = pneg %p260
        %p394 = pneg %p257
        %p395 = scmp.lt.s32.totalorder %s25, 1
        %s396 = scalar_select %p395, %s25, 1
        %p397 = scmp.lt.s32.totalorder %s26, 0
        %s398 = scalar_select %p397, %s26, 0
        %s399 = smul.addr %s398, 4
        %s400 = smul.addr %s396, 4
        %s401 = sadd.s32 %s399, %s400
        %s402 = scalar_lea.vmem %s8, %s401
        %s403 = smul.u32 8, %s26
        %p404 = scmp.lt.s32.totalorder %s25, 1
        %s405 = scalar_select %p404, %s25, 1
        %p406 = scmp.lt.s32.totalorder %s403, 7
        %s407 = scalar_select %p406, %s403, 7
        %s408 = smul.addr %s405, 8
        %s409 = sadd.s32 %s407, %s408
        %s410 = smul.addr %s409, 8
        %s411 = scalar_lea.vmem %s0, %s410
        %s412 = smul.u32 8, %s26
        %s413 = sadd.s32 %s26, 1
        %s414 = smul.u32 %s413, 8
        %p415 = scmp.lt.s32.totalorder %s414, 7
        %s416 = scalar_select %p415, %s414, 7
        %p417 = scmp.lt.s32.totalorder %s25, 1
        %s418 = scalar_select %p417, %s25, 1
        %p419 = scmp.lt.s32.totalorder %s416, 7
        %s420 = scalar_select %p419, %s416, 7
        %s421 = smul.addr %s418, 8
        %s422 = sadd.s32 %s420, %s421
        %s423 = smul.addr %s422, 8
        %s424 = scalar_lea.vmem %s1, %s423
        %s425 = sadd.s32 %s26, 1
        %s426 = smul.u32 %s425, 8
        %p427 = scmp.lt.s32.totalorder %s426, 7
        %s428 = scalar_select %p427, %s426, 7
        %s429 = smul.u32 8, %s26
        %p430 = scmp.lt.s32.totalorder %s25, 1
        %s431 = scalar_select %p430, %s25, 1
        %p432 = scmp.lt.s32.totalorder %s26, 0
        %s433 = scalar_select %p432, %s26, 0
        %s434 = smul.addr %s433, 4
        %s435 = smul.addr %s431, 4
        %s436 = sadd.s32 %s434, %s435
        %s437 = scalar_lea.vmem %s7, %s436
        %p438 = scmp.lt.s32.totalorder %s25, 1
        %s439 = scalar_select %p438, %s25, 1
        %p440 = scmp.lt.s32.totalorder %s26, 0
        %s441 = scalar_select %p440, %s26, 0
        %s442 = smul.addr %s441, 4
        %s443 = smul.addr %s439, 4
        %s444 = sadd.s32 %s442, %s443
        %s445 = scalar_lea.vmem %s8, %s444
        %v446 = vld [vmem:[#allocation2] sm:$0xff]
        %v447 = vld [vmem:[#allocation2 + $0x8] sm:$0xff]
        %v448 = vld [vmem:[#allocation2 + $0x10] sm:$0xff]
        %v449 = vld [vmem:[#allocation2 + $0x18] sm:$0xff]
        %v450 = vld [vmem:[#allocation2 + $0x20] sm:$0xff]
        %v451 = vld [vmem:[#allocation2 + $0x28] sm:$0xff]
        %v452 = vld [vmem:[#allocation2 + $0x30] sm:$0xff]
        %v453 = vld [vmem:[#allocation2 + $0x38] sm:$0xff]
        %v454 = vld [vmem:[#allocation2 + $0x40] sm:$0xff]
        %v455 = vld [vmem:[#allocation2 + $0x48] sm:$0xff]
        %v456 = vld [vmem:[#allocation2 + $0x50] sm:$0xff]
        %v457 = vld [vmem:[#allocation2 + $0x58] sm:$0xff]
        %v458 = vld [vmem:[#allocation2 + $0x60] sm:$0xff]
        %v459 = vld [vmem:[#allocation2 + $0x68] sm:$0xff]
        %v460 = vld [vmem:[#allocation2 + $0x70] sm:$0xff]
        %v461 = vld [vmem:[#allocation2 + $0x78] sm:$0xff]
        %v462 = vld [vmem:[#allocation2 + $0x80] sm:$0xff]
        %v463 = vld [vmem:[#allocation2 + $0x88] sm:$0xff]
        %v464 = vld [vmem:[#allocation2 + $0x90] sm:$0xff]
        %v465 = vld [vmem:[#allocation2 + $0x98] sm:$0xff]
        %v466 = vld [vmem:[#allocation2 + $0xa0] sm:$0xff]
        %v467 = vld [vmem:[#allocation2 + $0xa8] sm:$0xff]
        %v468 = vld [vmem:[#allocation2 + $0xb0] sm:$0xff]
        %v469 = vld [vmem:[#allocation2 + $0xb8] sm:$0xff]
        %v470 = vld [vmem:[#allocation2 + $0xc0] sm:$0xff]
        %v471 = vld [vmem:[#allocation2 + $0xc8] sm:$0xff]
        %v472 = vld [vmem:[#allocation2 + $0xd0] sm:$0xff]
        %v473 = vld [vmem:[#allocation2 + $0xd8] sm:$0xff]
        %v474 = vld [vmem:[#allocation2 + $0xe0] sm:$0xff]
        %v475 = vld [vmem:[#allocation2 + $0xe8] sm:$0xff]
        %v476 = vld [vmem:[#allocation2 + $0xf0] sm:$0xff]
        %v477 = vld [vmem:[#allocation2 + $0xf8] sm:$0xff]
        %v478 = vld [vmem:[#allocation2 + $0x100] sm:$0xff]
        %v479 = vld [vmem:[#allocation2 + $0x108] sm:$0xff]
        %v480 = vld [vmem:[#allocation2 + $0x110] sm:$0xff]
        %v481 = vld [vmem:[#allocation2 + $0x118] sm:$0xff]
        %v482 = vld [vmem:[#allocation2 + $0x120] sm:$0xff]
        %v483 = vld [vmem:[#allocation2 + $0x128] sm:$0xff]
        %v484 = vld [vmem:[#allocation2 + $0x130] sm:$0xff]
        %v485 = vld [vmem:[#allocation2 + $0x138] sm:$0xff]
        %v486 = vld [vmem:[#allocation2 + $0x140] sm:$0xff]
        %v487 = vld [vmem:[#allocation2 + $0x148] sm:$0xff]
        %v488 = vld [vmem:[#allocation2 + $0x150] sm:$0xff]
        %v489 = vld [vmem:[#allocation2 + $0x158] sm:$0xff]
        %v490 = vld [vmem:[#allocation2 + $0x160] sm:$0xff]
        %v491 = vld [vmem:[#allocation2 + $0x168] sm:$0xff]
        %v492 = vld [vmem:[#allocation2 + $0x170] sm:$0xff]
        %v493 = vld [vmem:[#allocation2 + $0x178] sm:$0xff]
        %v494 = vld [vmem:[#allocation2 + $0x180] sm:$0xff]
        %v495 = vld [vmem:[#allocation2 + $0x188] sm:$0xff]
        %v496 = vld [vmem:[#allocation2 + $0x190] sm:$0xff]
        %v497 = vld [vmem:[#allocation2 + $0x198] sm:$0xff]
        %v498 = vld [vmem:[#allocation2 + $0x1a0] sm:$0xff]
        %v499 = vld [vmem:[#allocation2 + $0x1a8] sm:$0xff]
        %v500 = vld [vmem:[#allocation2 + $0x1b0] sm:$0xff]
        %v501 = vld [vmem:[#allocation2 + $0x1b8] sm:$0xff]
        %v502 = vld [vmem:[#allocation2 + $0x1c0] sm:$0xff]
        %v503 = vld [vmem:[#allocation2 + $0x1c8] sm:$0xff]
        %v504 = vld [vmem:[#allocation2 + $0x1d0] sm:$0xff]
        %v505 = vld [vmem:[#allocation2 + $0x1d8] sm:$0xff]
        %v506 = vld [vmem:[#allocation2 + $0x1e0] sm:$0xff]
        %v507 = vld [vmem:[#allocation2 + $0x1e8] sm:$0xff]
        %v508 = vld [vmem:[#allocation2 + $0x1f0] sm:$0xff]
        %v509 = vld [vmem:[#allocation2 + $0x1f8] sm:$0xff]
        %v510 = vld [vmem:[#allocation2 + $0x200] sm:$0xff]
        %v511 = vld [vmem:[#allocation2 + $0x208] sm:$0xff]
        %v512 = vld [vmem:[#allocation2 + $0x210] sm:$0xff]
        %v513 = vld [vmem:[#allocation2 + $0x218] sm:$0xff]
        %v514 = vld [vmem:[#allocation2 + $0x220] sm:$0xff]
        %v515 = vld [vmem:[#allocation2 + $0x228] sm:$0xff]
        %v516 = vld [vmem:[#allocation2 + $0x230] sm:$0xff]
        %v517 = vld [vmem:[#allocation2 + $0x238] sm:$0xff]
        %v518 = vld [vmem:[#allocation2 + $0x240] sm:$0xff]
        %v519 = vld [vmem:[#allocation2 + $0x248] sm:$0xff]
        %v520 = vld [vmem:[#allocation2 + $0x250] sm:$0xff]
        %v521 = vld [vmem:[#allocation2 + $0x258] sm:$0xff]
        %v522 = vld [vmem:[#allocation2 + $0x260] sm:$0xff]
        %v523 = vld [vmem:[#allocation2 + $0x268] sm:$0xff]
        %v524 = vld [vmem:[#allocation2 + $0x270] sm:$0xff]
        %v525 = vld [vmem:[#allocation2 + $0x278] sm:$0xff]
        %v526 = vld [vmem:[#allocation2 + $0x280] sm:$0xff]
        %v527 = vld [vmem:[#allocation2 + $0x288] sm:$0xff]
        %v528 = vld [vmem:[#allocation2 + $0x290] sm:$0xff]
        %v529 = vld [vmem:[#allocation2 + $0x298] sm:$0xff]
        %v530 = vld [vmem:[#allocation2 + $0x2a0] sm:$0xff]
        %v531 = vld [vmem:[#allocation2 + $0x2a8] sm:$0xff]
        %v532 = vld [vmem:[#allocation2 + $0x2b0] sm:$0xff]
        %v533 = vld [vmem:[#allocation2 + $0x2b8] sm:$0xff]
        %v534 = vld [vmem:[#allocation2 + $0x2c0] sm:$0xff]
        %v535 = vld [vmem:[#allocation2 + $0x2c8] sm:$0xff]
        %v536 = vld [vmem:[#allocation2 + $0x2d0] sm:$0xff]
        %v537 = vld [vmem:[#allocation2 + $0x2d8] sm:$0xff]
        %v538 = vld [vmem:[#allocation2 + $0x2e0] sm:$0xff]
        %v539 = vld [vmem:[#allocation2 + $0x2e8] sm:$0xff]
        %v540 = vld [vmem:[#allocation2 + $0x2f0] sm:$0xff]
        %v541 = vld [vmem:[#allocation2 + $0x2f8] sm:$0xff]
        %v542 = vld [vmem:[#allocation2 + $0x300] sm:$0xff]
        %v543 = vld [vmem:[#allocation2 + $0x308] sm:$0xff]
        %v544 = vld [vmem:[#allocation2 + $0x310] sm:$0xff]
        %v545 = vld [vmem:[#allocation2 + $0x318] sm:$0xff]
        %v546 = vld [vmem:[#allocation2 + $0x320] sm:$0xff]
        %v547 = vld [vmem:[#allocation2 + $0x328] sm:$0xff]
        %v548 = vld [vmem:[#allocation2 + $0x330] sm:$0xff]
        %v549 = vld [vmem:[#allocation2 + $0x338] sm:$0xff]
        %v550 = vld [vmem:[#allocation2 + $0x340] sm:$0xff]
        %v551 = vld [vmem:[#allocation2 + $0x348] sm:$0xff]
        %v552 = vld [vmem:[#allocation2 + $0x350] sm:$0xff]
        %v553 = vld [vmem:[#allocation2 + $0x358] sm:$0xff]
        %v554 = vld [vmem:[#allocation2 + $0x360] sm:$0xff]
        %v555 = vld [vmem:[#allocation2 + $0x368] sm:$0xff]
        %v556 = vld [vmem:[#allocation2 + $0x370] sm:$0xff]
        %v557 = vld [vmem:[#allocation2 + $0x378] sm:$0xff]
        %v558 = vld [vmem:[#allocation2 + $0x380] sm:$0xff]
        %v559 = vld [vmem:[#allocation2 + $0x388] sm:$0xff]
        %v560 = vld [vmem:[#allocation2 + $0x390] sm:$0xff]
        %v561 = vld [vmem:[#allocation2 + $0x398] sm:$0xff]
        %v562 = vld [vmem:[#allocation2 + $0x3a0] sm:$0xff]
        %v563 = vld [vmem:[#allocation2 + $0x3a8] sm:$0xff]
        %v564 = vld [vmem:[#allocation2 + $0x3b0] sm:$0xff]
        %v565 = vld [vmem:[#allocation2 + $0x3b8] sm:$0xff]
        %v566 = vld [vmem:[#allocation2 + $0x3c0] sm:$0xff]
        %v567 = vld [vmem:[#allocation2 + $0x3c8] sm:$0xff]
        %v568 = vld [vmem:[#allocation2 + $0x3d0] sm:$0xff]
        %v569 = vld [vmem:[#allocation2 + $0x3d8] sm:$0xff]
        %v570 = vld [vmem:[#allocation2 + $0x3e0] sm:$0xff]
        %v571 = vld [vmem:[#allocation2 + $0x3e8] sm:$0xff]
        %v572 = vld [vmem:[#allocation2 + $0x3f0] sm:$0xff]
        %v573 = vld [vmem:[#allocation2 + $0x3f8] sm:$0xff]
        %v574 = vld [vmem:[#allocation2 + $0x400] sm:$0xff]
        %v575 = vld [vmem:[#allocation2 + $0x408] sm:$0xff]
        %v576 = vld [vmem:[#allocation2 + $0x410] sm:$0xff]
        %v577 = vld [vmem:[#allocation2 + $0x418] sm:$0xff]
        %v578 = vld [vmem:[#allocation2 + $0x420] sm:$0xff]
        %v579 = vld [vmem:[#allocation2 + $0x428] sm:$0xff]
        %v580 = vld [vmem:[#allocation2 + $0x430] sm:$0xff]
        %v581 = vld [vmem:[#allocation2 + $0x438] sm:$0xff]
        %v582 = vld [vmem:[#allocation2 + $0x440] sm:$0xff]
        %v583 = vld [vmem:[#allocation2 + $0x448] sm:$0xff]
        %v584 = vld [vmem:[#allocation2 + $0x450] sm:$0xff]
        %v585 = vld [vmem:[#allocation2 + $0x458] sm:$0xff]
        %v586 = vld [vmem:[#allocation2 + $0x460] sm:$0xff]
        %v587 = vld [vmem:[#allocation2 + $0x468] sm:$0xff]
        %v588 = vld [vmem:[#allocation2 + $0x470] sm:$0xff]
        %v589 = vld [vmem:[#allocation2 + $0x478] sm:$0xff]
        %v590 = vld [vmem:[#allocation2 + $0x480] sm:$0xff]
        %v591 = vld [vmem:[#allocation2 + $0x488] sm:$0xff]
        %v592 = vld [vmem:[#allocation2 + $0x490] sm:$0xff]
        %v593 = vld [vmem:[#allocation2 + $0x498] sm:$0xff]
        %v594 = vld [vmem:[#allocation2 + $0x4a0] sm:$0xff]
        %v595 = vld [vmem:[#allocation2 + $0x4a8] sm:$0xff]
        %v596 = vld [vmem:[#allocation2 + $0x4b0] sm:$0xff]
        %v597 = vld [vmem:[#allocation2 + $0x4b8] sm:$0xff]
        %v598 = vld [vmem:[#allocation2 + $0x4c0] sm:$0xff]
        %v599 = vld [vmem:[#allocation2 + $0x4c8] sm:$0xff]
        %v600 = vld [vmem:[#allocation2 + $0x4d0] sm:$0xff]
        %v601 = vld [vmem:[#allocation2 + $0x4d8] sm:$0xff]
        %v602 = vld [vmem:[#allocation2 + $0x4e0] sm:$0xff]
        %v603 = vld [vmem:[#allocation2 + $0x4e8] sm:$0xff]
        %v604 = vld [vmem:[#allocation2 + $0x4f0] sm:$0xff]
        %v605 = vld [vmem:[#allocation2 + $0x4f8] sm:$0xff]
        %v606 = vld [vmem:[#allocation2 + $0x500] sm:$0xff]
        %v607 = vld [vmem:[#allocation2 + $0x508] sm:$0xff]
        %v608 = vld [vmem:[#allocation2 + $0x510] sm:$0xff]
        %v609 = vld [vmem:[#allocation2 + $0x518] sm:$0xff]
        %v610 = vld [vmem:[#allocation2 + $0x520] sm:$0xff]
        %v611 = vld [vmem:[#allocation2 + $0x528] sm:$0xff]
        %v612 = vld [vmem:[#allocation2 + $0x530] sm:$0xff]
        %v613 = vld [vmem:[#allocation2 + $0x538] sm:$0xff]
        %v614 = vld [vmem:[#allocation2 + $0x540] sm:$0xff]
        %v615 = vld [vmem:[#allocation2 + $0x548] sm:$0xff]
        %v616 = vld [vmem:[#allocation2 + $0x550] sm:$0xff]
        %v617 = vld [vmem:[#allocation2 + $0x558] sm:$0xff]
        %v618 = vld [vmem:[#allocation2 + $0x560] sm:$0xff]
        %v619 = vld [vmem:[#allocation2 + $0x568] sm:$0xff]
        %v620 = vld [vmem:[#allocation2 + $0x570] sm:$0xff]
        %v621 = vld [vmem:[#allocation2 + $0x578] sm:$0xff]
        %v622 = vld [vmem:[#allocation2 + $0x580] sm:$0xff]
        %v623 = vld [vmem:[#allocation2 + $0x588] sm:$0xff]
        %v624 = vld [vmem:[#allocation2 + $0x590] sm:$0xff]
        %v625 = vld [vmem:[#allocation2 + $0x598] sm:$0xff]
        %v626 = vld [vmem:[#allocation2 + $0x5a0] sm:$0xff]
        %v627 = vld [vmem:[#allocation2 + $0x5a8] sm:$0xff]
        %v628 = vld [vmem:[#allocation2 + $0x5b0] sm:$0xff]
        %v629 = vld [vmem:[#allocation2 + $0x5b8] sm:$0xff]
        %v630 = vld [vmem:[#allocation2 + $0x5c0] sm:$0xff]
        %v631 = vld [vmem:[#allocation2 + $0x5c8] sm:$0xff]
        %v632 = vld [vmem:[#allocation2 + $0x5d0] sm:$0xff]
        %v633 = vld [vmem:[#allocation2 + $0x5d8] sm:$0xff]
        %v634 = vld [vmem:[#allocation2 + $0x5e0] sm:$0xff]
        %v635 = vld [vmem:[#allocation2 + $0x5e8] sm:$0xff]
        %v636 = vld [vmem:[#allocation2 + $0x5f0] sm:$0xff]
        %v637 = vld [vmem:[#allocation2 + $0x5f8] sm:$0xff]
        %v638 = vld [vmem:[#allocation2 + $0x600] sm:$0xff]
        %v639 = vld [vmem:[#allocation2 + $0x608] sm:$0xff]
        %v640 = vld [vmem:[#allocation2 + $0x610] sm:$0xff]
        %v641 = vld [vmem:[#allocation2 + $0x618] sm:$0xff]
        %v642 = vld [vmem:[#allocation2 + $0x620] sm:$0xff]
        %v643 = vld [vmem:[#allocation2 + $0x628] sm:$0xff]
        %v644 = vld [vmem:[#allocation2 + $0x630] sm:$0xff]
        %v645 = vld [vmem:[#allocation2 + $0x638] sm:$0xff]
        %v646 = vld [vmem:[#allocation2 + $0x640] sm:$0xff]
        %v647 = vld [vmem:[#allocation2 + $0x648] sm:$0xff]
        %v648 = vld [vmem:[#allocation2 + $0x650] sm:$0xff]
        %v649 = vld [vmem:[#allocation2 + $0x658] sm:$0xff]
        %v650 = vld [vmem:[#allocation2 + $0x660] sm:$0xff]
        %v651 = vld [vmem:[#allocation2 + $0x668] sm:$0xff]
        %v652 = vld [vmem:[#allocation2 + $0x670] sm:$0xff]
        %v653 = vld [vmem:[#allocation2 + $0x678] sm:$0xff]
        %v654 = vld [vmem:[#allocation2 + $0x680] sm:$0xff]
        %v655 = vld [vmem:[#allocation2 + $0x688] sm:$0xff]
        %v656 = vld [vmem:[#allocation2 + $0x690] sm:$0xff]
        %v657 = vld [vmem:[#allocation2 + $0x698] sm:$0xff]
        %v658 = vld [vmem:[#allocation2 + $0x6a0] sm:$0xff]
        %v659 = vld [vmem:[#allocation2 + $0x6a8] sm:$0xff]
        %v660 = vld [vmem:[#allocation2 + $0x6b0] sm:$0xff]
        %v661 = vld [vmem:[#allocation2 + $0x6b8] sm:$0xff]
        %v662 = vld [vmem:[#allocation2 + $0x6c0] sm:$0xff]
        %v663 = vld [vmem:[#allocation2 + $0x6c8] sm:$0xff]
        %v664 = vld [vmem:[#allocation2 + $0x6d0] sm:$0xff]
        %v665 = vld [vmem:[#allocation2 + $0x6d8] sm:$0xff]
        %v666 = vld [vmem:[#allocation2 + $0x6e0] sm:$0xff]
        %v667 = vld [vmem:[#allocation2 + $0x6e8] sm:$0xff]
        %v668 = vld [vmem:[#allocation2 + $0x6f0] sm:$0xff]
        %v669 = vld [vmem:[#allocation2 + $0x6f8] sm:$0xff]
        %v670 = vld [vmem:[#allocation2 + $0x700] sm:$0xff]
        %v671 = vld [vmem:[#allocation2 + $0x708] sm:$0xff]
        %v672 = vld [vmem:[#allocation2 + $0x710] sm:$0xff]
        %v673 = vld [vmem:[#allocation2 + $0x718] sm:$0xff]
        %v674 = vld [vmem:[#allocation2 + $0x720] sm:$0xff]
        %v675 = vld [vmem:[#allocation2 + $0x728] sm:$0xff]
        %v676 = vld [vmem:[#allocation2 + $0x730] sm:$0xff]
        %v677 = vld [vmem:[#allocation2 + $0x738] sm:$0xff]
        %v678 = vld [vmem:[#allocation2 + $0x740] sm:$0xff]
        %v679 = vld [vmem:[#allocation2 + $0x748] sm:$0xff]
        %v680 = vld [vmem:[#allocation2 + $0x750] sm:$0xff]
        %v681 = vld [vmem:[#allocation2 + $0x758] sm:$0xff]
        %v682 = vld [vmem:[#allocation2 + $0x760] sm:$0xff]
        %v683 = vld [vmem:[#allocation2 + $0x768] sm:$0xff]
        %v684 = vld [vmem:[#allocation2 + $0x770] sm:$0xff]
        %v685 = vld [vmem:[#allocation2 + $0x778] sm:$0xff]
        %v686 = vld [vmem:[#allocation2 + $0x780] sm:$0xff]
        %v687 = vld [vmem:[#allocation2 + $0x788] sm:$0xff]
        %v688 = vld [vmem:[#allocation2 + $0x790] sm:$0xff]
        %v689 = vld [vmem:[#allocation2 + $0x798] sm:$0xff]
        %v690 = vld [vmem:[#allocation2 + $0x7a0] sm:$0xff]
        %v691 = vld [vmem:[#allocation2 + $0x7a8] sm:$0xff]
        %v692 = vld [vmem:[#allocation2 + $0x7b0] sm:$0xff]
        %v693 = vld [vmem:[#allocation2 + $0x7b8] sm:$0xff]
        %v694 = vld [vmem:[#allocation2 + $0x7c0] sm:$0xff]
        %v695 = vld [vmem:[#allocation2 + $0x7c8] sm:$0xff]
        %v696 = vld [vmem:[#allocation2 + $0x7d0] sm:$0xff]
        %v697 = vld [vmem:[#allocation2 + $0x7d8] sm:$0xff]
        %v698 = vld [vmem:[#allocation2 + $0x7e0] sm:$0xff]
        %v699 = vld [vmem:[#allocation2 + $0x7e8] sm:$0xff]
        %v700 = vld [vmem:[#allocation2 + $0x7f0] sm:$0xff]
        %v701 = vld [vmem:[#allocation2 + $0x7f8] sm:$0xff]
        %v702 = vld [vmem:[%s2] sm:$0x1]
        %v703 = vld [vmem:[%s3] sm:$0x1]
        %v704 = vld [vmem:[%s411] sm:$0xff]
        %v705 = vld [vmem:[%s411 + $0x8] sm:$0xff]
        %v706 = vld [vmem:[%s411 + $0x10] sm:$0xff]
        %v707 = vld [vmem:[%s411 + $0x18] sm:$0xff]
        %v708 = vld [vmem:[%s411 + $0x20] sm:$0xff]
        %v709 = vld [vmem:[%s411 + $0x28] sm:$0xff]
        %v710 = vld [vmem:[%s411 + $0x30] sm:$0xff]
        %v711 = vld [vmem:[%s411 + $0x38] sm:$0xff]
        %v713 = vlaneseq
        %v714 = vshrl.u32 %v713, 7
        %v715 = vsub.s32 0, %v714
        %v716 = vrot.slane %v702, %v715
        %v718 = vmul.f32 %v704, %v716
        %v719 = vmul.f32 %v705, %v716
        %v720 = vmul.f32 %v706, %v716
        %v721 = vmul.f32 %v707, %v716
        %v722 = vmul.f32 %v708, %v716
        %v723 = vmul.f32 %v709, %v716
        %v724 = vmul.f32 %v710, %v716
        %v725 = vmul.f32 %v711, %v716
        %v727 = vlaneseq
        %v728 = vshrl.u32 %v727, 7
        %v729 = vsub.s32 0, %v728
        %v730 = vrot.slane %v703, %v729
        %v732 = vadd.f32 %v718, %v730
        %v733 = vadd.f32 %v719, %v730
        %v734 = vadd.f32 %v720, %v730
        %v735 = vadd.f32 %v721, %v730
        %v736 = vadd.f32 %v722, %v730
        %v737 = vadd.f32 %v723, %v730
        %v738 = vadd.f32 %v724, %v730
        %v739 = vadd.f32 %v725, %v730
        %v740 = vmax.f32 %v732, 0.0
        %v741 = vmax.f32 %v733, 0.0
        %v742 = vmax.f32 %v734, 0.0
        %v743 = vmax.f32 %v735, 0.0
        %v744 = vmax.f32 %v736, 0.0
        %v745 = vmax.f32 %v737, 0.0
        %v746 = vmax.f32 %v738, 0.0
        %v747 = vmax.f32 %v739, 0.0
        %v748 = vld [vmem:[%s424] sm:$0xff]
        %v749 = vmul.f32 %v748, %v716
        %v750 = vadd.f32 %v749, %v730
        %v751 = vmax.f32 %v750, 0.0
        %s752 = sadd.s32 %s26, 1
        %p753 = scmp.lt.s32.totalorder %s752, 1
        %s754 = scalar_select %p753, 1, 0
        %s755 = scvt.s32.f32 %s754
        %v756 = vstv %s755
        %v757 = vmul.f32 %v751, %v756
        %v767 = vrot.slane %v740, 1
        %v768 = vrot.slane %v741, 1
        %v769 = vrot.slane %v742, 1
        %v770 = vrot.slane %v743, 1
        %v771 = vrot.slane %v744, 1
        %v772 = vrot.slane %v745, 1
        %v773 = vrot.slane %v746, 1
        %v774 = vrot.slane %v747, 1
        %v775 = vrot.slane %v757, 1
        %vm785 = vcmask 1046528
        %v786 = vsel %vm785, %v767, 0.0
        %v787 = vsel %vm785, %v768, 0.0
        %v788 = vsel %vm785, %v769, 0.0
        %v789 = vsel %vm785, %v770, 0.0
        %v790 = vsel %vm785, %v771, 0.0
        %v791 = vsel %vm785, %v772, 0.0
        %v792 = vsel %vm785, %v773, 0.0
        %v793 = vsel %vm785, %v774, 0.0
        %v794 = vsel %vm785, %v775, 0.0
        %v795 = vld [vmem:[%s5] sm:$0xf]
        %v797 = vlaneseq
        %v798 = vshrl.u32 %v797, 7
        %v799 = vsub.s32 0, %v798
        %v800 = vrot.slane %v795, %v799
        %v801 = vlaneseq
        %v802 = vshrl.u32 %v801, 7
        %v803 = vsub.s32 1, %v802
        %v804 = vrot.slane %v795, %v803
        %v805 = vlaneseq
        %v806 = vshrl.u32 %v805, 7
        %v807 = vsub.s32 2, %v806
        %v808 = vrot.slane %v795, %v807
        %v809 = vlaneseq
        %v810 = vshrl.u32 %v809, 7
        %v811 = vsub.s32 3, %v810
        %v812 = vrot.slane %v795, %v811
        %817 = vmatprep.subr.mxu0 %v507
        %818 = vmatpush1.msra.mxu0 %v506
        %819 = vmatprep.subr.mxu0 %v503
        %820 = vmatpush1.msra.mxu0 %v502
        %821 = vmatprep.subr.mxu0 %v499
        %822 = vmatpush1.msra.mxu0 %v498
        %823 = vmatprep.subr.mxu0 %v495
        %824 = vmatpush1.msra.mxu0 %v494
        %825 = vmatprep.subr.mxu0 %v491
        %826 = vmatpush1.msra.mxu0 %v490
        %827 = vmatprep.subr.mxu0 %v487
        %828 = vmatpush1.msra.mxu0 %v486
        %829 = vmatprep.subr.mxu0 %v483
        %830 = vmatpush1.msra.mxu0 %v482
        %831 = vmatprep.subr.mxu0 %v479
        %832 = vmatpush1.msra.mxu0 %v478
        %833 = vmatprep.subr.mxu0 %v475
        %834 = vmatpush1.msra.mxu0 %v474
        %835 = vmatprep.subr.mxu0 %v471
        %836 = vmatpush1.msra.mxu0 %v470
        %837 = vmatprep.subr.mxu0 %v467
        %838 = vmatpush1.msra.mxu0 %v466
        %839 = vmatprep.subr.mxu0 %v463
        %840 = vmatpush1.msra.mxu0 %v462
        %841 = vmatprep.subr.mxu0 %v459
        %842 = vmatpush1.msra.mxu0 %v458
        %843 = vmatprep.subr.mxu0 %v455
        %844 = vmatpush1.msra.mxu0 %v454
        %845 = vmatprep.subr.mxu0 %v451
        %846 = vmatpush1.msra.mxu0 %v450
        %847 = vmatprep.subr.mxu0 %v447
        %848 = vmatpush1.msra.mxu0 %v446
        %849 = vmatprep.subr.mxu0 %v571
        %850 = vmatpush2.msra.mxu0 %v570
        %851 = vmatprep.subr.mxu0 %v567
        %852 = vmatpush2.msra.mxu0 %v566
        %853 = vmatprep.subr.mxu0 %v563
        %854 = vmatpush2.msra.mxu0 %v562
        %855 = vmatprep.subr.mxu0 %v559
        %856 = vmatpush2.msra.mxu0 %v558
        %857 = vmatprep.subr.mxu0 %v555
        %858 = vmatpush2.msra.mxu0 %v554
        %859 = vmatprep.subr.mxu0 %v551
        %860 = vmatpush2.msra.mxu0 %v550
        %861 = vmatprep.subr.mxu0 %v547
        %862 = vmatpush2.msra.mxu0 %v546
        %863 = vmatprep.subr.mxu0 %v543
        %864 = vmatpush2.msra.mxu0 %v542
        %865 = vmatprep.subr.mxu0 %v539
        %866 = vmatpush2.msra.mxu0 %v538
        %867 = vmatprep.subr.mxu0 %v535
        %868 = vmatpush2.msra.mxu0 %v534
        %869 = vmatprep.subr.mxu0 %v531
        %870 = vmatpush2.msra.mxu0 %v530
        %871 = vmatprep.subr.mxu0 %v527
        %872 = vmatpush2.msra.mxu0 %v526
        %873 = vmatprep.subr.mxu0 %v523
        %874 = vmatpush2.msra.mxu0 %v522
        %875 = vmatprep.subr.mxu0 %v519
        %876 = vmatpush2.msra.mxu0 %v518
        %877 = vmatprep.subr.mxu0 %v515
        %878 = vmatpush2.msra.mxu0 %v514
        %879 = vmatprep.subr.mxu0 %v511
        %880 = vmatpush2.msra.mxu0 %v510
        %881 = vmatprep.mubr.f32.mxu0 %v786
        %882 = vmatmul.mubr.f32.gmra.mxu0 %v740
        %v883 = vpop.f32.mrf.mxu0
        %v884 = vadd.f32 %v800, %v883
        %v885 = vpop.f32.mrf.mxu0
        %v886 = vadd.f32 %v804, %v885
        %887 = vmatprep.mubr.f32.mxu0 %v787
        %888 = vmatmul.mubr.f32.gmra.mxu0 %v741
        %v889 = vpop.f32.mrf.mxu0
        %v890 = vadd.f32 %v800, %v889
        %v891 = vpop.f32.mrf.mxu0
        %v892 = vadd.f32 %v804, %v891
        %893 = vmatprep.mubr.f32.mxu0 %v788
        %894 = vmatmul.mubr.f32.gmra.mxu0 %v742
        %v895 = vpop.f32.mrf.mxu0
        %v896 = vadd.f32 %v800, %v895
        %v897 = vpop.f32.mrf.mxu0
        %v898 = vadd.f32 %v804, %v897
        %899 = vmatprep.mubr.f32.mxu0 %v789
        %900 = vmatmul.mubr.f32.gmra.mxu0 %v743
        %v901 = vpop.f32.mrf.mxu0
        %v902 = vadd.f32 %v800, %v901
        %v903 = vpop.f32.mrf.mxu0
        %v904 = vadd.f32 %v804, %v903
        %905 = vmatprep.mubr.f32.mxu0 %v790
        %906 = vmatmul.mubr.f32.gmra.mxu0 %v744
        %v907 = vpop.f32.mrf.mxu0
        %v908 = vadd.f32 %v800, %v907
        %v909 = vpop.f32.mrf.mxu0
        %v910 = vadd.f32 %v804, %v909
        %911 = vmatprep.mubr.f32.mxu0 %v791
        %912 = vmatmul.mubr.f32.gmra.mxu0 %v745
        %v913 = vpop.f32.mrf.mxu0
        %v914 = vadd.f32 %v800, %v913
        %v915 = vpop.f32.mrf.mxu0
        %v916 = vadd.f32 %v804, %v915
        %917 = vmatprep.mubr.f32.mxu0 %v792
        %918 = vmatmul.mubr.f32.gmra.mxu0 %v746
        %v919 = vpop.f32.mrf.mxu0
        %v920 = vadd.f32 %v800, %v919
        %v921 = vpop.f32.mrf.mxu0
        %v922 = vadd.f32 %v804, %v921
        %923 = vmatprep.mubr.f32.mxu0 %v793
        %924 = vmatmul.mubr.f32.gmra.mxu0 %v747
        %v925 = vpop.f32.mrf.mxu0
        %v926 = vadd.f32 %v800, %v925
        %v927 = vpop.f32.mrf.mxu0
        %v928 = vadd.f32 %v804, %v927
        %929 = vdwg.mxu0
        %930 = vmatprep.subr.mxu0 %v635
        %931 = vmatpush1.msra.mxu0 %v634
        %932 = vmatprep.subr.mxu0 %v631
        %933 = vmatpush1.msra.mxu0 %v630
        %934 = vmatprep.subr.mxu0 %v627
        %935 = vmatpush1.msra.mxu0 %v626
        %936 = vmatprep.subr.mxu0 %v623
        %937 = vmatpush1.msra.mxu0 %v622
        %938 = vmatprep.subr.mxu0 %v619
        %939 = vmatpush1.msra.mxu0 %v618
        %940 = vmatprep.subr.mxu0 %v615
        %941 = vmatpush1.msra.mxu0 %v614
        %942 = vmatprep.subr.mxu0 %v611
        %943 = vmatpush1.msra.mxu0 %v610
        %944 = vmatprep.subr.mxu0 %v607
        %945 = vmatpush1.msra.mxu0 %v606
        %946 = vmatprep.subr.mxu0 %v603
        %947 = vmatpush1.msra.mxu0 %v602
        %948 = vmatprep.subr.mxu0 %v599
        %949 = vmatpush1.msra.mxu0 %v598
        %950 = vmatprep.subr.mxu0 %v595
        %951 = vmatpush1.msra.mxu0 %v594
        %952 = vmatprep.subr.mxu0 %v591
        %953 = vmatpush1.msra.mxu0 %v590
        %954 = vmatprep.subr.mxu0 %v587
        %955 = vmatpush1.msra.mxu0 %v586
        %956 = vmatprep.subr.mxu0 %v583
        %957 = vmatpush1.msra.mxu0 %v582
        %958 = vmatprep.subr.mxu0 %v579
        %959 = vmatpush1.msra.mxu0 %v578
        %960 = vmatprep.subr.mxu0 %v575
        %961 = vmatpush1.msra.mxu0 %v574
        %962 = vmatprep.subr.mxu0 %v699
        %963 = vmatpush2.msra.mxu0 %v698
        %964 = vmatprep.subr.mxu0 %v695
        %965 = vmatpush2.msra.mxu0 %v694
        %966 = vmatprep.subr.mxu0 %v691
        %967 = vmatpush2.msra.mxu0 %v690
        %968 = vmatprep.subr.mxu0 %v687
        %969 = vmatpush2.msra.mxu0 %v686
        %970 = vmatprep.subr.mxu0 %v683
        %971 = vmatpush2.msra.mxu0 %v682
        %972 = vmatprep.subr.mxu0 %v679
        %973 = vmatpush2.msra.mxu0 %v678
        %974 = vmatprep.subr.mxu0 %v675
        %975 = vmatpush2.msra.mxu0 %v674
        %976 = vmatprep.subr.mxu0 %v671
        %977 = vmatpush2.msra.mxu0 %v670
        %978 = vmatprep.subr.mxu0 %v667
        %979 = vmatpush2.msra.mxu0 %v666
        %980 = vmatprep.subr.mxu0 %v663
        %981 = vmatpush2.msra.mxu0 %v662
        %982 = vmatprep.subr.mxu0 %v659
        %983 = vmatpush2.msra.mxu0 %v658
        %984 = vmatprep.subr.mxu0 %v655
        %985 = vmatpush2.msra.mxu0 %v654
        %986 = vmatprep.subr.mxu0 %v651
        %987 = vmatpush2.msra.mxu0 %v650
        %988 = vmatprep.subr.mxu0 %v647
        %989 = vmatpush2.msra.mxu0 %v646
        %990 = vmatprep.subr.mxu0 %v643
        %991 = vmatpush2.msra.mxu0 %v642
        %992 = vmatprep.subr.mxu0 %v639
        %993 = vmatpush2.msra.mxu0 %v638
        %994 = vmatprep.mubr.f32.mxu0 %v787
        %995 = vmatmul.mubr.f32.gmra.mxu0 %v741
        %v996 = vpop.f32.mrf.mxu0
        %v997 = vadd.f32 %v884, %v996
        %v998 = vpop.f32.mrf.mxu0
        %v999 = vadd.f32 %v886, %v998
        %1000 = vmatprep.mubr.f32.mxu0 %v788
        %1001 = vmatmul.mubr.f32.gmra.mxu0 %v742
        %v1002 = vpop.f32.mrf.mxu0
        %v1003 = vadd.f32 %v890, %v1002
        %v1004 = vpop.f32.mrf.mxu0
        %v1005 = vadd.f32 %v892, %v1004
        %1006 = vmatprep.mubr.f32.mxu0 %v789
        %1007 = vmatmul.mubr.f32.gmra.mxu0 %v743
        %v1008 = vpop.f32.mrf.mxu0
        %v1009 = vadd.f32 %v896, %v1008
        %v1010 = vpop.f32.mrf.mxu0
        %v1011 = vadd.f32 %v898, %v1010
        %1012 = vmatprep.mubr.f32.mxu0 %v790
        %1013 = vmatmul.mubr.f32.gmra.mxu0 %v744
        %v1014 = vpop.f32.mrf.mxu0
        %v1015 = vadd.f32 %v902, %v1014
        %v1016 = vpop.f32.mrf.mxu0
        %v1017 = vadd.f32 %v904, %v1016
        %1018 = vmatprep.mubr.f32.mxu0 %v791
        %1019 = vmatmul.mubr.f32.gmra.mxu0 %v745
        %v1020 = vpop.f32.mrf.mxu0
        %v1021 = vadd.f32 %v908, %v1020
        %v1022 = vpop.f32.mrf.mxu0
        %v1023 = vadd.f32 %v910, %v1022
        %1024 = vmatprep.mubr.f32.mxu0 %v792
        %1025 = vmatmul.mubr.f32.gmra.mxu0 %v746
        %v1026 = vpop.f32.mrf.mxu0
        %v1027 = vadd.f32 %v914, %v1026
        %v1028 = vpop.f32.mrf.mxu0
        %v1029 = vadd.f32 %v916, %v1028
        %1030 = vmatprep.mubr.f32.mxu0 %v793
        %1031 = vmatmul.mubr.f32.gmra.mxu0 %v747
        %v1032 = vpop.f32.mrf.mxu0
        %v1033 = vadd.f32 %v920, %v1032
        %v1034 = vpop.f32.mrf.mxu0
        %v1035 = vadd.f32 %v922, %v1034
        %1036 = vmatprep.mubr.f32.mxu0 %v794
        %1037 = vmatmul.mubr.f32.gmra.mxu0 %v757
        %v1038 = vpop.f32.mrf.mxu0
        %v1039 = vadd.f32 %v926, %v1038
        %v1040 = vpop.f32.mrf.mxu0
        %v1041 = vadd.f32 %v928, %v1040
        %1042 = vdwg.mxu0
        %1043 = vmatprep.subr.mxu0 %v509
        %1044 = vmatpush1.msra.mxu0 %v508
        %1045 = vmatprep.subr.mxu0 %v505
        %1046 = vmatpush1.msra.mxu0 %v504
        %1047 = vmatprep.subr.mxu0 %v501
        %1048 = vmatpush1.msra.mxu0 %v500
        %1049 = vmatprep.subr.mxu0 %v497
        %1050 = vmatpush1.msra.mxu0 %v496
        %1051 = vmatprep.subr.mxu0 %v493
        %1052 = vmatpush1.msra.mxu0 %v492
        %1053 = vmatprep.subr.mxu0 %v489
        %1054 = vmatpush1.msra.mxu0 %v488
        %1055 = vmatprep.subr.mxu0 %v485
        %1056 = vmatpush1.msra.mxu0 %v484
        %1057 = vmatprep.subr.mxu0 %v481
        %1058 = vmatpush1.msra.mxu0 %v480
        %1059 = vmatprep.subr.mxu0 %v477
        %1060 = vmatpush1.msra.mxu0 %v476
        %1061 = vmatprep.subr.mxu0 %v473
        %1062 = vmatpush1.msra.mxu0 %v472
        %1063 = vmatprep.subr.mxu0 %v469
        %1064 = vmatpush1.msra.mxu0 %v468
        %1065 = vmatprep.subr.mxu0 %v465
        %1066 = vmatpush1.msra.mxu0 %v464
        %1067 = vmatprep.subr.mxu0 %v461
        %1068 = vmatpush1.msra.mxu0 %v460
        %1069 = vmatprep.subr.mxu0 %v457
        %1070 = vmatpush1.msra.mxu0 %v456
        %1071 = vmatprep.subr.mxu0 %v453
        %1072 = vmatpush1.msra.mxu0 %v452
        %1073 = vmatprep.subr.mxu0 %v449
        %1074 = vmatpush1.msra.mxu0 %v448
        %1075 = vmatprep.subr.mxu0 %v573
        %1076 = vmatpush2.msra.mxu0 %v572
        %1077 = vmatprep.subr.mxu0 %v569
        %1078 = vmatpush2.msra.mxu0 %v568
        %1079 = vmatprep.subr.mxu0 %v565
        %1080 = vmatpush2.msra.mxu0 %v564
        %1081 = vmatprep.subr.mxu0 %v561
        %1082 = vmatpush2.msra.mxu0 %v560
        %1083 = vmatprep.subr.mxu0 %v557
        %1084 = vmatpush2.msra.mxu0 %v556
        %1085 = vmatprep.subr.mxu0 %v553
        %1086 = vmatpush2.msra.mxu0 %v552
        %1087 = vmatprep.subr.mxu0 %v549
        %1088 = vmatpush2.msra.mxu0 %v548
        %1089 = vmatprep.subr.mxu0 %v545
        %1090 = vmatpush2.msra.mxu0 %v544
        %1091 = vmatprep.subr.mxu0 %v541
        %1092 = vmatpush2.msra.mxu0 %v540
        %1093 = vmatprep.subr.mxu0 %v537
        %1094 = vmatpush2.msra.mxu0 %v536
        %1095 = vmatprep.subr.mxu0 %v533
        %1096 = vmatpush2.msra.mxu0 %v532
        %1097 = vmatprep.subr.mxu0 %v529
        %1098 = vmatpush2.msra.mxu0 %v528
        %1099 = vmatprep.subr.mxu0 %v525
        %1100 = vmatpush2.msra.mxu0 %v524
        %1101 = vmatprep.subr.mxu0 %v521
        %1102 = vmatpush2.msra.mxu0 %v520
        %1103 = vmatprep.subr.mxu0 %v517
        %1104 = vmatpush2.msra.mxu0 %v516
        %1105 = vmatprep.subr.mxu0 %v513
        %1106 = vmatpush2.msra.mxu0 %v512
        %1107 = vmatprep.mubr.f32.mxu0 %v786
        %1108 = vmatmul.mubr.f32.gmra.mxu0 %v740
        %v1109 = vpop.f32.mrf.mxu0
        %v1110 = vadd.f32 %v808, %v1109
        %v1111 = vpop.f32.mrf.mxu0
        %v1112 = vadd.f32 %v812, %v1111
        %1113 = vmatprep.mubr.f32.mxu0 %v787
        %1114 = vmatmul.mubr.f32.gmra.mxu0 %v741
        %v1115 = vpop.f32.mrf.mxu0
        %v1116 = vadd.f32 %v808, %v1115
        %v1117 = vpop.f32.mrf.mxu0
        %v1118 = vadd.f32 %v812, %v1117
        %1119 = vmatprep.mubr.f32.mxu0 %v788
        %1120 = vmatmul.mubr.f32.gmra.mxu0 %v742
        %v1121 = vpop.f32.mrf.mxu0
        %v1122 = vadd.f32 %v808, %v1121
        %v1123 = vpop.f32.mrf.mxu0
        %v1124 = vadd.f32 %v812, %v1123
        %1125 = vmatprep.mubr.f32.mxu0 %v789
        %1126 = vmatmul.mubr.f32.gmra.mxu0 %v743
        %v1127 = vpop.f32.mrf.mxu0
        %v1128 = vadd.f32 %v808, %v1127
        %v1129 = vpop.f32.mrf.mxu0
        %v1130 = vadd.f32 %v812, %v1129
        %1131 = vmatprep.mubr.f32.mxu0 %v790
        %1132 = vmatmul.mubr.f32.gmra.mxu0 %v744
        %v1133 = vpop.f32.mrf.mxu0
        %v1134 = vadd.f32 %v808, %v1133
        %v1135 = vpop.f32.mrf.mxu0
        %v1136 = vadd.f32 %v812, %v1135
        %1137 = vmatprep.mubr.f32.mxu0 %v791
        %1138 = vmatmul.mubr.f32.gmra.mxu0 %v745
        %v1139 = vpop.f32.mrf.mxu0
        %v1140 = vadd.f32 %v808, %v1139
        %v1141 = vpop.f32.mrf.mxu0
        %v1142 = vadd.f32 %v812, %v1141
        %1143 = vmatprep.mubr.f32.mxu0 %v792
        %1144 = vmatmul.mubr.f32.gmra.mxu0 %v746
        %v1145 = vpop.f32.mrf.mxu0
        %v1146 = vadd.f32 %v808, %v1145
        %v1147 = vpop.f32.mrf.mxu0
        %v1148 = vadd.f32 %v812, %v1147
        %1149 = vmatprep.mubr.f32.mxu0 %v793
        %1150 = vmatmul.mubr.f32.gmra.mxu0 %v747
        %v1151 = vpop.f32.mrf.mxu0
        %v1152 = vadd.f32 %v808, %v1151
        %v1153 = vpop.f32.mrf.mxu0
        %v1154 = vadd.f32 %v812, %v1153
        %1155 = vdwg.mxu0
        %1156 = vmatprep.subr.mxu0 %v637
        %1157 = vmatpush1.msra.mxu0 %v636
        %1158 = vmatprep.subr.mxu0 %v633
        %1159 = vmatpush1.msra.mxu0 %v632
        %1160 = vmatprep.subr.mxu0 %v629
        %1161 = vmatpush1.msra.mxu0 %v628
        %1162 = vmatprep.subr.mxu0 %v625
        %1163 = vmatpush1.msra.mxu0 %v624
        %1164 = vmatprep.subr.mxu0 %v621
        %1165 = vmatpush1.msra.mxu0 %v620
        %1166 = vmatprep.subr.mxu0 %v617
        %1167 = vmatpush1.msra.mxu0 %v616
        %1168 = vmatprep.subr.mxu0 %v613
        %1169 = vmatpush1.msra.mxu0 %v612
        %1170 = vmatprep.subr.mxu0 %v609
        %1171 = vmatpush1.msra.mxu0 %v608
        %1172 = vmatprep.subr.mxu0 %v605
        %1173 = vmatpush1.msra.mxu0 %v604
        %1174 = vmatprep.subr.mxu0 %v601
        %1175 = vmatpush1.msra.mxu0 %v600
        %1176 = vmatprep.subr.mxu0 %v597
        %1177 = vmatpush1.msra.mxu0 %v596
        %1178 = vmatprep.subr.mxu0 %v593
        %1179 = vmatpush1.msra.mxu0 %v592
        %1180 = vmatprep.subr.mxu0 %v589
        %1181 = vmatpush1.msra.mxu0 %v588
        %1182 = vmatprep.subr.mxu0 %v585
        %1183 = vmatpush1.msra.mxu0 %v584
        %1184 = vmatprep.subr.mxu0 %v581
        %1185 = vmatpush1.msra.mxu0 %v580
        %1186 = vmatprep.subr.mxu0 %v577
        %1187 = vmatpush1.msra.mxu0 %v576
        %1188 = vmatprep.subr.mxu0 %v701
        %1189 = vmatpush2.msra.mxu0 %v700
        %1190 = vmatprep.subr.mxu0 %v697
        %1191 = vmatpush2.msra.mxu0 %v696
        %1192 = vmatprep.subr.mxu0 %v693
        %1193 = vmatpush2.msra.mxu0 %v692
        %1194 = vmatprep.subr.mxu0 %v689
        %1195 = vmatpush2.msra.mxu0 %v688
        %1196 = vmatprep.subr.mxu0 %v685
        %1197 = vmatpush2.msra.mxu0 %v684
        %1198 = vmatprep.subr.mxu0 %v681
        %1199 = vmatpush2.msra.mxu0 %v680
        %1200 = vmatprep.subr.mxu0 %v677
        %1201 = vmatpush2.msra.mxu0 %v676
        %1202 = vmatprep.subr.mxu0 %v673
        %1203 = vmatpush2.msra.mxu0 %v672
        %1204 = vmatprep.subr.mxu0 %v669
        %1205 = vmatpush2.msra.mxu0 %v668
        %1206 = vmatprep.subr.mxu0 %v665
        %1207 = vmatpush2.msra.mxu0 %v664
        %1208 = vmatprep.subr.mxu0 %v661
        %1209 = vmatpush2.msra.mxu0 %v660
        %1210 = vmatprep.subr.mxu0 %v657
        %1211 = vmatpush2.msra.mxu0 %v656
        %1212 = vmatprep.subr.mxu0 %v653
        %1213 = vmatpush2.msra.mxu0 %v652
        %1214 = vmatprep.subr.mxu0 %v649
        %1215 = vmatpush2.msra.mxu0 %v648
        %1216 = vmatprep.subr.mxu0 %v645
        %1217 = vmatpush2.msra.mxu0 %v644
        %1218 = vmatprep.subr.mxu0 %v641
        %1219 = vmatpush2.msra.mxu0 %v640
        %1220 = vmatprep.mubr.f32.mxu0 %v787
        %1221 = vmatmul.mubr.f32.gmra.mxu0 %v741
        %v1222 = vpop.f32.mrf.mxu0
        %v1223 = vadd.f32 %v1110, %v1222
        %v1224 = vpop.f32.mrf.mxu0
        %v1225 = vadd.f32 %v1112, %v1224
        %1226 = vmatprep.mubr.f32.mxu0 %v788
        %1227 = vmatmul.mubr.f32.gmra.mxu0 %v742
        %v1228 = vpop.f32.mrf.mxu0
        %v1229 = vadd.f32 %v1116, %v1228
        %v1230 = vpop.f32.mrf.mxu0
        %v1231 = vadd.f32 %v1118, %v1230
        %1232 = vmatprep.mubr.f32.mxu0 %v789
        %1233 = vmatmul.mubr.f32.gmra.mxu0 %v743
        %v1234 = vpop.f32.mrf.mxu0
        %v1235 = vadd.f32 %v1122, %v1234
        %v1236 = vpop.f32.mrf.mxu0
        %v1237 = vadd.f32 %v1124, %v1236
        %1238 = vmatprep.mubr.f32.mxu0 %v790
        %1239 = vmatmul.mubr.f32.gmra.mxu0 %v744
        %v1240 = vpop.f32.mrf.mxu0
        %v1241 = vadd.f32 %v1128, %v1240
        %v1242 = vpop.f32.mrf.mxu0
        %v1243 = vadd.f32 %v1130, %v1242
        %1244 = vmatprep.mubr.f32.mxu0 %v791
        %1245 = vmatmul.mubr.f32.gmra.mxu0 %v745
        %v1246 = vpop.f32.mrf.mxu0
        %v1247 = vadd.f32 %v1134, %v1246
        %v1248 = vpop.f32.mrf.mxu0
        %v1249 = vadd.f32 %v1136, %v1248
        %1250 = vmatprep.mubr.f32.mxu0 %v792
        %1251 = vmatmul.mubr.f32.gmra.mxu0 %v746
        %v1252 = vpop.f32.mrf.mxu0
        %v1253 = vadd.f32 %v1140, %v1252
        %v1254 = vpop.f32.mrf.mxu0
        %v1255 = vadd.f32 %v1142, %v1254
        %1256 = vmatprep.mubr.f32.mxu0 %v793
        %1257 = vmatmul.mubr.f32.gmra.mxu0 %v747
        %v1258 = vpop.f32.mrf.mxu0
        %v1259 = vadd.f32 %v1146, %v1258
        %v1260 = vpop.f32.mrf.mxu0
        %v1261 = vadd.f32 %v1148, %v1260
        %1262 = vmatprep.mubr.f32.mxu0 %v794
        %1263 = vmatmul.mubr.f32.gmra.mxu0 %v757
        %v1264 = vpop.f32.mrf.mxu0
        %v1265 = vadd.f32 %v1152, %v1264
        %v1266 = vpop.f32.mrf.mxu0
        %v1267 = vadd.f32 %v1154, %v1266
        %1268 = vdwg.mxu0
        %v1269 = vadd.f32 %v997, %v1003
        %v1270 = vadd.f32 %v1269, %v1009
        %v1271 = vadd.f32 %v1270, %v1015
        %v1272 = vadd.f32 %v1271, %v1021
        %v1273 = vadd.f32 %v1272, %v1027
        %v1274 = vadd.f32 %v1273, %v1033
        %v1275 = vadd.f32 %v1274, %v1039
        %v1276 = vrot.slane %v1275, 4
        %v1277 = vadd.f32 %v1275, %v1276
        %v1278 = vrot.slane %v1277, 2
        %v1279 = vadd.f32 %v1277, %v1278
        %v1280 = vrot.slane %v1279, 1
        %v1281 = vadd.f32 %v1279, %v1280
        %v1282 = vadd.f32 %v999, %v1005
        %v1283 = vadd.f32 %v1282, %v1011
        %v1284 = vadd.f32 %v1283, %v1017
        %v1285 = vadd.f32 %v1284, %v1023
        %v1286 = vadd.f32 %v1285, %v1029
        %v1287 = vadd.f32 %v1286, %v1035
        %v1288 = vadd.f32 %v1287, %v1041
        %v1289 = vrot.slane %v1288, 4
        %v1290 = vadd.f32 %v1288, %v1289
        %v1291 = vrot.slane %v1290, 2
        %v1292 = vadd.f32 %v1290, %v1291
        %v1293 = vrot.slane %v1292, 1
        %v1294 = vadd.f32 %v1292, %v1293
        %v1295 = vadd.f32 %v1223, %v1229
        %v1296 = vadd.f32 %v1295, %v1235
        %v1297 = vadd.f32 %v1296, %v1241
        %v1298 = vadd.f32 %v1297, %v1247
        %v1299 = vadd.f32 %v1298, %v1253
        %v1300 = vadd.f32 %v1299, %v1259
        %v1301 = vadd.f32 %v1300, %v1265
        %v1302 = vrot.slane %v1301, 4
        %v1303 = vadd.f32 %v1301, %v1302
        %v1304 = vrot.slane %v1303, 2
        %v1305 = vadd.f32 %v1303, %v1304
        %v1306 = vrot.slane %v1305, 1
        %v1307 = vadd.f32 %v1305, %v1306
        %v1308 = vadd.f32 %v1225, %v1231
        %v1309 = vadd.f32 %v1308, %v1237
        %v1310 = vadd.f32 %v1309, %v1243
        %v1311 = vadd.f32 %v1310, %v1249
        %v1312 = vadd.f32 %v1311, %v1255
        %v1313 = vadd.f32 %v1312, %v1261
        %v1314 = vadd.f32 %v1313, %v1267
        %v1315 = vrot.slane %v1314, 4
        %v1316 = vadd.f32 %v1314, %v1315
        %v1317 = vrot.slane %v1316, 2
        %v1318 = vadd.f32 %v1316, %v1317
        %v1319 = vrot.slane %v1318, 1
        %v1320 = vadd.f32 %v1318, %v1319
        %v1325 = vcombine.low %v1281, %v1294
        %v1326 = vcombine.low %v1307, %v1320
        %v1328 = vunpack.c.l.s4 1966171168
        %v1329 = vunpack.c.0.s8 %v1328
        %v1330 = vlaneseq
        %v1331 = vshrl.u32 %v1330, 7
        %v1332 = vsub.s32 %v1329, %v1331
        %v1333 = vrot.slane %v1325, %v1332
        %v1335 = vunpack.c.l.s4 1966171168
        %v1336 = vunpack.c.0.s8 %v1335
        %v1337 = vlaneseq
        %v1338 = vshrl.u32 %v1337, 7
        %v1339 = vsub.s32 %v1336, %v1338
        %v1340 = vrot.slane %v1326, %v1339
        %v1341 = vcombine.low %v1333, %v1340
        %v1343 = vunpack.c.l.s4 1966171168
        %v1344 = vunpack.c.0.s8 %v1343
        %v1345 = vlaneseq
        %v1346 = vshrl.u32 %v1345, 7
        %v1347 = vsub.s32 %v1344, %v1346
        %v1348 = vrot.slane %v1341, %v1347
        %v1350 = vlaneseq
        %vm1351 = vcmp.ge.s32.totalorder %v1350, 0
        %vm1352 = vcmp.lt.s32.totalorder %v1350, 512
        %vm1353 = vmand %vm1351, %vm1352
        %1354 = vst.msk [vmem:[%s437] sm:$0xf] %vm1353, %v1348
        %v1355 = vmul.f32 %v997, %v997
        %v1356 = vmul.f32 %v999, %v999
        %v1357 = vmul.f32 %v1223, %v1223
        %v1358 = vmul.f32 %v1225, %v1225
        %v1359 = vmul.f32 %v1003, %v1003
        %v1360 = vmul.f32 %v1005, %v1005
        %v1361 = vmul.f32 %v1229, %v1229
        %v1362 = vmul.f32 %v1231, %v1231
        %v1363 = vmul.f32 %v1009, %v1009
        %v1364 = vmul.f32 %v1011, %v1011
        %v1365 = vmul.f32 %v1235, %v1235
        %v1366 = vmul.f32 %v1237, %v1237
        %v1367 = vmul.f32 %v1015, %v1015
        %v1368 = vmul.f32 %v1017, %v1017
        %v1369 = vmul.f32 %v1241, %v1241
        %v1370 = vmul.f32 %v1243, %v1243
        %v1371 = vmul.f32 %v1021, %v1021
        %v1372 = vmul.f32 %v1023, %v1023
        %v1373 = vmul.f32 %v1247, %v1247
        %v1374 = vmul.f32 %v1249, %v1249
        %v1375 = vmul.f32 %v1027, %v1027
        %v1376 = vmul.f32 %v1029, %v1029
        %v1377 = vmul.f32 %v1253, %v1253
        %v1378 = vmul.f32 %v1255, %v1255
        %v1379 = vmul.f32 %v1033, %v1033
        %v1380 = vmul.f32 %v1035, %v1035
        %v1381 = vmul.f32 %v1259, %v1259
        %v1382 = vmul.f32 %v1261, %v1261
        %v1383 = vmul.f32 %v1039, %v1039
        %v1384 = vmul.f32 %v1041, %v1041
        %v1385 = vmul.f32 %v1265, %v1265
        %v1386 = vmul.f32 %v1267, %v1267
        %v1387 = vadd.f32 %v1355, %v1359
        %v1388 = vadd.f32 %v1387, %v1363
        %v1389 = vadd.f32 %v1388, %v1367
        %v1390 = vadd.f32 %v1389, %v1371
        %v1391 = vadd.f32 %v1390, %v1375
        %v1392 = vadd.f32 %v1391, %v1379
        %v1393 = vadd.f32 %v1392, %v1383
        %v1394 = vrot.slane %v1393, 4
        %v1395 = vadd.f32 %v1393, %v1394
        %v1396 = vrot.slane %v1395, 2
        %v1397 = vadd.f32 %v1395, %v1396
        %v1398 = vrot.slane %v1397, 1
        %v1399 = vadd.f32 %v1397, %v1398
        %v1400 = vadd.f32 %v1356, %v1360
        %v1401 = vadd.f32 %v1400, %v1364
        %v1402 = vadd.f32 %v1401, %v1368
        %v1403 = vadd.f32 %v1402, %v1372
        %v1404 = vadd.f32 %v1403, %v1376
        %v1405 = vadd.f32 %v1404, %v1380
        %v1406 = vadd.f32 %v1405, %v1384
        %v1407 = vrot.slane %v1406, 4
        %v1408 = vadd.f32 %v1406, %v1407
        %v1409 = vrot.slane %v1408, 2
        %v1410 = vadd.f32 %v1408, %v1409
        %v1411 = vrot.slane %v1410, 1
        %v1412 = vadd.f32 %v1410, %v1411
        %v1413 = vadd.f32 %v1357, %v1361
        %v1414 = vadd.f32 %v1413, %v1365
        %v1415 = vadd.f32 %v1414, %v1369
        %v1416 = vadd.f32 %v1415, %v1373
        %v1417 = vadd.f32 %v1416, %v1377
        %v1418 = vadd.f32 %v1417, %v1381
        %v1419 = vadd.f32 %v1418, %v1385
        %v1420 = vrot.slane %v1419, 4
        %v1421 = vadd.f32 %v1419, %v1420
        %v1422 = vrot.slane %v1421, 2
        %v1423 = vadd.f32 %v1421, %v1422
        %v1424 = vrot.slane %v1423, 1
        %v1425 = vadd.f32 %v1423, %v1424
        %v1426 = vadd.f32 %v1358, %v1362
        %v1427 = vadd.f32 %v1426, %v1366
        %v1428 = vadd.f32 %v1427, %v1370
        %v1429 = vadd.f32 %v1428, %v1374
        %v1430 = vadd.f32 %v1429, %v1378
        %v1431 = vadd.f32 %v1430, %v1382
        %v1432 = vadd.f32 %v1431, %v1386
        %v1433 = vrot.slane %v1432, 4
        %v1434 = vadd.f32 %v1432, %v1433
        %v1435 = vrot.slane %v1434, 2
        %v1436 = vadd.f32 %v1434, %v1435
        %v1437 = vrot.slane %v1436, 1
        %v1438 = vadd.f32 %v1436, %v1437
        %v1443 = vcombine.low %v1399, %v1412
        %v1444 = vcombine.low %v1425, %v1438
        %v1446 = vunpack.c.l.s4 1966171168
        %v1447 = vunpack.c.0.s8 %v1446
        %v1448 = vlaneseq
        %v1449 = vshrl.u32 %v1448, 7
        %v1450 = vsub.s32 %v1447, %v1449
        %v1451 = vrot.slane %v1443, %v1450
        %v1453 = vunpack.c.l.s4 1966171168
        %v1454 = vunpack.c.0.s8 %v1453
        %v1455 = vlaneseq
        %v1456 = vshrl.u32 %v1455, 7
        %v1457 = vsub.s32 %v1454, %v1456
        %v1458 = vrot.slane %v1444, %v1457
        %v1459 = vcombine.low %v1451, %v1458
        %v1461 = vunpack.c.l.s4 1966171168
        %v1462 = vunpack.c.0.s8 %v1461
        %v1463 = vlaneseq
        %v1464 = vshrl.u32 %v1463, 7
        %v1465 = vsub.s32 %v1462, %v1464
        %v1466 = vrot.slane %v1459, %v1465
        %1468 = vst.msk [vmem:[%s445] sm:$0xf] %vm1353, %v1466
        %1469 = vst [vmem:[%s382] sm:$0xff] %v997
        %1470 = vst [vmem:[%s382 + $0x8] sm:$0xff] %v1003
        %1471 = vst [vmem:[%s382 + $0x10] sm:$0xff] %v1009
        %1472 = vst [vmem:[%s382 + $0x18] sm:$0xff] %v1015
        %1473 = vst [vmem:[%s382 + $0x20] sm:$0xff] %v1021
        %1474 = vst [vmem:[%s382 + $0x28] sm:$0xff] %v1027
        %1475 = vst [vmem:[%s382 + $0x30] sm:$0xff] %v1033
        %1476 = vst [vmem:[%s382 + $0x38] sm:$0xff] %v1039
        %s1477 = scalar_lea.vmem %s382, 64 [#allocation4]
        %1478 = vst [vmem:[%s1477] sm:$0xff] %v999
        %1479 = vst [vmem:[%s1477 + $0x8] sm:$0xff] %v1005
        %1480 = vst [vmem:[%s1477 + $0x10] sm:$0xff] %v1011
        %1481 = vst [vmem:[%s1477 + $0x18] sm:$0xff] %v1017
        %1482 = vst [vmem:[%s1477 + $0x20] sm:$0xff] %v1023
        %1483 = vst [vmem:[%s1477 + $0x28] sm:$0xff] %v1029
        %1484 = vst [vmem:[%s1477 + $0x30] sm:$0xff] %v1035
        %1485 = vst [vmem:[%s1477 + $0x38] sm:$0xff] %v1041
        %s1486 = scalar_lea.vmem %s382, 128 [#allocation4]
        %1487 = vst [vmem:[%s1486] sm:$0xff] %v1223
        %1488 = vst [vmem:[%s1486 + $0x8] sm:$0xff] %v1229
        %1489 = vst [vmem:[%s1486 + $0x10] sm:$0xff] %v1235
        %1490 = vst [vmem:[%s1486 + $0x18] sm:$0xff] %v1241
        %1491 = vst [vmem:[%s1486 + $0x20] sm:$0xff] %v1247
        %1492 = vst [vmem:[%s1486 + $0x28] sm:$0xff] %v1253
        %1493 = vst [vmem:[%s1486 + $0x30] sm:$0xff] %v1259
        %1494 = vst [vmem:[%s1486 + $0x38] sm:$0xff] %v1265
        %s1495 = scalar_lea.vmem %s382, 192 [#allocation4]
        %1496 = vst [vmem:[%s1495] sm:$0xff] %v1225
        %1497 = vst [vmem:[%s1495 + $0x8] sm:$0xff] %v1231
        %1498 = vst [vmem:[%s1495 + $0x10] sm:$0xff] %v1237
        %1499 = vst [vmem:[%s1495 + $0x18] sm:$0xff] %v1243
        %1500 = vst [vmem:[%s1495 + $0x20] sm:$0xff] %v1249
        %1501 = vst [vmem:[%s1495 + $0x28] sm:$0xff] %v1255
        %1502 = vst [vmem:[%s1495 + $0x30] sm:$0xff] %v1261
        %1503 = vst [vmem:[%s1495 + $0x38] sm:$0xff] %v1267
        %s1504 = sand.u32 %s191, 1
        %s1505 = sand.u32 %s191, 1
        %s1506 = smul.addr %s1505, 256
        %s1507 = scalar_lea.vmem [#allocation4], %s1506
        %p1508 = scmp.lt.s32.totalorder %s25, 1
        %s1509 = scalar_select %p1508, %s25, 1
        %p1510 = scmp.lt.s32.totalorder %s26, 0
        %s1511 = scalar_select %p1510, %s26, 0
        %s1512 = smul.addr %s1511, 4
        %s1513 = smul.addr %s1509, 4
        %s1514 = sadd.s32 %s1512, %s1513
        %s1515 = scalar_lea.vmem %s7, %s1514
        %p1516 = scmp.lt.s32.totalorder %s25, 1
        %s1517 = scalar_select %p1516, %s25, 1
        %p1518 = scmp.lt.s32.totalorder %s26, 0
        %s1519 = scalar_select %p1518, %s26, 0
        %s1520 = smul.addr %s1519, 4
        %s1521 = smul.addr %s1517, 4
        %s1522 = sadd.s32 %s1520, %s1521
        %s1523 = scalar_lea.vmem %s8, %s1522
        // Predicated region
        $region49: #{decoder_block_forward.5} parent=43 // pred_check
          %p1524 = pneg %p201
        $region50: #{decoder_block_forward.5} parent=43 // pred_check_branch
          %1526 = sbr.rel (%p1524) target = $region52
        $region51: #{decoder_block_forward.5} parent=43 // pred_region
          %s1527 = smul.u32 8, %s26
          %s1528 = smul.addr %s25, 8
          %s1529 = sadd.s32 %s1527, %s1528
          %s1530 = smul.addr %s1529, 8
          %s1531 = scalar_lea.vmem %s6, %s1530
          // Predicated region
          $region53: #{decoder_block_forward.5} parent=51 // pred_check
            _
          $region54: #{decoder_block_forward.5} parent=51 // pred_check_branch
            %1533 = sbr.rel (0) target = $region56
          $region55: #{decoder_block_forward.5} parent=51 // pred_region
            // Predicated region
            $region57: #{decoder_block_forward.5} parent=55 // pred_check
              _
            $region58: #{decoder_block_forward.5} parent=55 // pred_check_branch
              %1535 = sbr.rel (0) target = $region60
            $region59: #{decoder_block_forward.5} parent=55 // pred_region
              // Predicated region
              $region72: #{decoder_block_forward.5} parent=59 // pred_check
                _
              $region73: #{decoder_block_forward.5} parent=59 // pred_check_branch
                %1613 = sbr.rel (0) target = $region75
              $region74: #{decoder_block_forward.5} parent=59 // pred_region
                loop: start=0, step=1, limit=1
                $region76: #{decoder_block_forward.5} parent=74 // loop_pre_header
                  _
                $region77: #{decoder_block_forward.5} parent=74 // loop_header
                  %s1615 = sphi 0, %s1619
                  %p1616 = scmp.ge.s32.totalorder %s1615, 1
                  %s1620 = sphi %s1507, %s1507
                  %s1621 = sphi %s1531, %s1531
                $region78: #{decoder_block_forward.5} parent=74 // loop_header_branch
                  %1618 = sbr.rel (%p1616) target = $region82
                $region79: #{decoder_block_forward.5} parent=74 // loop_body
                  %v1622 = vld [vmem:[%s1620] sm:$0xff]
                  %1623 = vst [vmem:[%s1621] sm:$0xff] %v1622
                  %v1624 = vld [vmem:[%s1620 + $0x8] sm:$0xff]
                  %1625 = vst [vmem:[%s1621 + $0x8] sm:$0xff] %v1624
                  %v1626 = vld [vmem:[%s1620 + $0x10] sm:$0xff]
                  %1627 = vst [vmem:[%s1621 + $0x10] sm:$0xff] %v1626
                  %v1628 = vld [vmem:[%s1620 + $0x18] sm:$0xff]
                  %1629 = vst [vmem:[%s1621 + $0x18] sm:$0xff] %v1628
                  %v1630 = vld [vmem:[%s1620 + $0x20] sm:$0xff]
                  %1631 = vst [vmem:[%s1621 + $0x20] sm:$0xff] %v1630
                  %v1632 = vld [vmem:[%s1620 + $0x28] sm:$0xff]
                  %1633 = vst [vmem:[%s1621 + $0x28] sm:$0xff] %v1632
                  %v1634 = vld [vmem:[%s1620 + $0x30] sm:$0xff]
                  %1635 = vst [vmem:[%s1621 + $0x30] sm:$0xff] %v1634
                  %v1636 = vld [vmem:[%s1620 + $0x38] sm:$0xff]
                  %1637 = vst [vmem:[%s1621 + $0x38] sm:$0xff] %v1636
                  %v1638 = vld [vmem:[%s1620 + $0x40] sm:$0xff]
                  %1639 = vst [vmem:[%s1621 + $0x80] sm:$0xff] %v1638
                  %v1640 = vld [vmem:[%s1620 + $0x48] sm:$0xff]
                  %1641 = vst [vmem:[%s1621 + $0x88] sm:$0xff] %v1640
                  %v1642 = vld [vmem:[%s1620 + $0x50] sm:$0xff]
                  %1643 = vst [vmem:[%s1621 + $0x90] sm:$0xff] %v1642
                  %v1644 = vld [vmem:[%s1620 + $0x58] sm:$0xff]
                  %1645 = vst [vmem:[%s1621 + $0x98] sm:$0xff] %v1644
                  %v1646 = vld [vmem:[%s1620 + $0x60] sm:$0xff]
                  %1647 = vst [vmem:[%s1621 + $0xa0] sm:$0xff] %v1646
                  %v1648 = vld [vmem:[%s1620 + $0x68] sm:$0xff]
                  %1649 = vst [vmem:[%s1621 + $0xa8] sm:$0xff] %v1648
                  %v1650 = vld [vmem:[%s1620 + $0x70] sm:$0xff]
                  %1651 = vst [vmem:[%s1621 + $0xb0] sm:$0xff] %v1650
                  %v1652 = vld [vmem:[%s1620 + $0x78] sm:$0xff]
                  %1653 = vst [vmem:[%s1621 + $0xb8] sm:$0xff] %v1652
                  %v1654 = vld [vmem:[%s1620 + $0x80] sm:$0xff]
                  %1655 = vst [vmem:[%s1621 + $0x100] sm:$0xff] %v1654
                  %v1656 = vld [vmem:[%s1620 + $0x88] sm:$0xff]
                  %1657 = vst [vmem:[%s1621 + $0x108] sm:$0xff] %v1656
                  %v1658 = vld [vmem:[%s1620 + $0x90] sm:$0xff]
                  %1659 = vst [vmem:[%s1621 + $0x110] sm:$0xff] %v1658
                  %v1660 = vld [vmem:[%s1620 + $0x98] sm:$0xff]
                  %1661 = vst [vmem:[%s1621 + $0x118] sm:$0xff] %v1660
                  %v1662 = vld [vmem:[%s1620 + $0xa0] sm:$0xff]
                  %1663 = vst [vmem:[%s1621 + $0x120] sm:$0xff] %v1662
                  %v1664 = vld [vmem:[%s1620 + $0xa8] sm:$0xff]
                  %1665 = vst [vmem:[%s1621 + $0x128] sm:$0xff] %v1664
                  %v1666 = vld [vmem:[%s1620 + $0xb0] sm:$0xff]
                  %1667 = vst [vmem:[%s1621 + $0x130] sm:$0xff] %v1666
                  %v1668 = vld [vmem:[%s1620 + $0xb8] sm:$0xff]
                  %1669 = vst [vmem:[%s1621 + $0x138] sm:$0xff] %v1668
                  %v1670 = vld [vmem:[%s1620 + $0xc0] sm:$0xff]
                  %1671 = vst [vmem:[%s1621 + $0x180] sm:$0xff] %v1670
                  %v1672 = vld [vmem:[%s1620 + $0xc8] sm:$0xff]
                  %1673 = vst [vmem:[%s1621 + $0x188] sm:$0xff] %v1672
                  %v1674 = vld [vmem:[%s1620 + $0xd0] sm:$0xff]
                  %1675 = vst [vmem:[%s1621 + $0x190] sm:$0xff] %v1674
                  %v1676 = vld [vmem:[%s1620 + $0xd8] sm:$0xff]
                  %1677 = vst [vmem:[%s1621 + $0x198] sm:$0xff] %v1676
                  %v1678 = vld [vmem:[%s1620 + $0xe0] sm:$0xff]
                  %1679 = vst [vmem:[%s1621 + $0x1a0] sm:$0xff] %v1678
                  %v1680 = vld [vmem:[%s1620 + $0xe8] sm:$0xff]
                  %1681 = vst [vmem:[%s1621 + $0x1a8] sm:$0xff] %v1680
                  %v1682 = vld [vmem:[%s1620 + $0xf0] sm:$0xff]
                  %1683 = vst [vmem:[%s1621 + $0x1b0] sm:$0xff] %v1682
                  %v1684 = vld [vmem:[%s1620 + $0xf8] sm:$0xff]
                  %1685 = vst [vmem:[%s1621 + $0x1b8] sm:$0xff] %v1684
                $region80: #{decoder_block_forward.5} parent=74 // loop_footer
                  %s1619 = sadd.s32 1, %s1615
                $region81: #{decoder_block_forward.5} parent=74 // loop_footer_branch
                  %1614 = sbr.rel target = $region77
                $region82: #{decoder_block_forward.5} parent=74 // loop_exit
                  _
              $region75: #{decoder_block_forward.5} parent=59 // pred_fallthru
                _
              // Predicated region
              $region83: #{decoder_block_forward.5} parent=59 // pred_check
                _
              $region84: #{decoder_block_forward.5} parent=59 // pred_check_branch
                %1687 = sbr.rel target = $region86
              $region85: #{decoder_block_forward.5} parent=59 // pred_region
                _
              $region86: #{decoder_block_forward.5} parent=59 // pred_fallthru
                _
            $region60: #{decoder_block_forward.5} parent=55 // pred_fallthru
              _
            // Predicated region
            $region61: #{decoder_block_forward.5} parent=55 // pred_check
              _
            $region62: #{decoder_block_forward.5} parent=55 // pred_check_branch
              %1537 = sbr.rel target = $region64
            $region63: #{decoder_block_forward.5} parent=55 // pred_region
              %s1539 = ssub.s32 256, 1
              loop: start=0, step=1, limit=1
              $region65: #{decoder_block_forward.5} parent=63 // loop_pre_header
                _
              $region66: #{decoder_block_forward.5} parent=63 // loop_header
                %s1541 = sphi 0, %s1545
                %p1542 = scmp.ge.s32.totalorder %s1541, 1
                %s1546 = sphi %s1507, %s1507
                %s1547 = sphi %s1531, %s1531
              $region67: #{decoder_block_forward.5} parent=63 // loop_header_branch
                %1544 = sbr.rel (%p1542) target = $region71
              $region68: #{decoder_block_forward.5} parent=63 // loop_body
                %v1548 = vld [vmem:[%s1546] sm:%s1539]
                %1549 = vst [vmem:[%s1547] sm:%s1539] %v1548
                %v1550 = vld [vmem:[%s1546 + $0x8] sm:%s1539]
                %1551 = vst [vmem:[%s1547 + $0x8] sm:%s1539] %v1550
                %v1552 = vld [vmem:[%s1546 + $0x10] sm:%s1539]
                %1553 = vst [vmem:[%s1547 + $0x10] sm:%s1539] %v1552
                %v1554 = vld [vmem:[%s1546 + $0x18] sm:%s1539]
                %1555 = vst [vmem:[%s1547 + $0x18] sm:%s1539] %v1554
                %v1556 = vld [vmem:[%s1546 + $0x20] sm:%s1539]
                %1557 = vst [vmem:[%s1547 + $0x20] sm:%s1539] %v1556
                %v1558 = vld [vmem:[%s1546 + $0x28] sm:%s1539]
                %1559 = vst [vmem:[%s1547 + $0x28] sm:%s1539] %v1558
                %v1560 = vld [vmem:[%s1546 + $0x30] sm:%s1539]
                %1561 = vst [vmem:[%s1547 + $0x30] sm:%s1539] %v1560
                %v1562 = vld [vmem:[%s1546 + $0x38] sm:%s1539]
                %1563 = vst [vmem:[%s1547 + $0x38] sm:%s1539] %v1562
                %v1564 = vld [vmem:[%s1546 + $0x40] sm:%s1539]
                %1565 = vst [vmem:[%s1547 + $0x80] sm:%s1539] %v1564
                %v1566 = vld [vmem:[%s1546 + $0x48] sm:%s1539]
                %1567 = vst [vmem:[%s1547 + $0x88] sm:%s1539] %v1566
                %v1568 = vld [vmem:[%s1546 + $0x50] sm:%s1539]
                %1569 = vst [vmem:[%s1547 + $0x90] sm:%s1539] %v1568
                %v1570 = vld [vmem:[%s1546 + $0x58] sm:%s1539]
                %1571 = vst [vmem:[%s1547 + $0x98] sm:%s1539] %v1570
                %v1572 = vld [vmem:[%s1546 + $0x60] sm:%s1539]
                %1573 = vst [vmem:[%s1547 + $0xa0] sm:%s1539] %v1572
                %v1574 = vld [vmem:[%s1546 + $0x68] sm:%s1539]
                %1575 = vst [vmem:[%s1547 + $0xa8] sm:%s1539] %v1574
                %v1576 = vld [vmem:[%s1546 + $0x70] sm:%s1539]
                %1577 = vst [vmem:[%s1547 + $0xb0] sm:%s1539] %v1576
                %v1578 = vld [vmem:[%s1546 + $0x78] sm:%s1539]
                %1579 = vst [vmem:[%s1547 + $0xb8] sm:%s1539] %v1578
                %v1580 = vld [vmem:[%s1546 + $0x80] sm:%s1539]
                %1581 = vst [vmem:[%s1547 + $0x100] sm:%s1539] %v1580
                %v1582 = vld [vmem:[%s1546 + $0x88] sm:%s1539]
                %1583 = vst [vmem:[%s1547 + $0x108] sm:%s1539] %v1582
                %v1584 = vld [vmem:[%s1546 + $0x90] sm:%s1539]
                %1585 = vst [vmem:[%s1547 + $0x110] sm:%s1539] %v1584
                %v1586 = vld [vmem:[%s1546 + $0x98] sm:%s1539]
                %1587 = vst [vmem:[%s1547 + $0x118] sm:%s1539] %v1586
                %v1588 = vld [vmem:[%s1546 + $0xa0] sm:%s1539]
                %1589 = vst [vmem:[%s1547 + $0x120] sm:%s1539] %v1588
                %v1590 = vld [vmem:[%s1546 + $0xa8] sm:%s1539]
                %1591 = vst [vmem:[%s1547 + $0x128] sm:%s1539] %v1590
                %v1592 = vld [vmem:[%s1546 + $0xb0] sm:%s1539]
                %1593 = vst [vmem:[%s1547 + $0x130] sm:%s1539] %v1592
                %v1594 = vld [vmem:[%s1546 + $0xb8] sm:%s1539]
                %1595 = vst [vmem:[%s1547 + $0x138] sm:%s1539] %v1594
                %v1596 = vld [vmem:[%s1546 + $0xc0] sm:%s1539]
                %1597 = vst [vmem:[%s1547 + $0x180] sm:%s1539] %v1596
                %v1598 = vld [vmem:[%s1546 + $0xc8] sm:%s1539]
                %1599 = vst [vmem:[%s1547 + $0x188] sm:%s1539] %v1598
                %v1600 = vld [vmem:[%s1546 + $0xd0] sm:%s1539]
                %1601 = vst [vmem:[%s1547 + $0x190] sm:%s1539] %v1600
                %v1602 = vld [vmem:[%s1546 + $0xd8] sm:%s1539]
                %1603 = vst [vmem:[%s1547 + $0x198] sm:%s1539] %v1602
                %v1604 = vld [vmem:[%s1546 + $0xe0] sm:%s1539]
                %1605 = vst [vmem:[%s1547 + $0x1a0] sm:%s1539] %v1604
                %v1606 = vld [vmem:[%s1546 + $0xe8] sm:%s1539]
                %1607 = vst [vmem:[%s1547 + $0x1a8] sm:%s1539] %v1606
                %v1608 = vld [vmem:[%s1546 + $0xf0] sm:%s1539]
                %1609 = vst [vmem:[%s1547 + $0x1b0] sm:%s1539] %v1608
                %v1610 = vld [vmem:[%s1546 + $0xf8] sm:%s1539]
                %1611 = vst [vmem:[%s1547 + $0x1b8] sm:%s1539] %v1610
              $region69: #{decoder_block_forward.5} parent=63 // loop_footer
                %s1545 = sadd.s32 1, %s1541
              $region70: #{decoder_block_forward.5} parent=63 // loop_footer_branch
                %1540 = sbr.rel target = $region66
              $region71: #{decoder_block_forward.5} parent=63 // loop_exit
                _
            $region64: #{decoder_block_forward.5} parent=55 // pred_fallthru
              _
          $region56: #{decoder_block_forward.5} parent=51 // pred_fallthru
            _
          %1688 = vnop
        $region52: #{decoder_block_forward.5} parent=43 // pred_fallthru
          _
        // Predicated region
        $region87: #{decoder_block_forward.5} parent=43 // pred_check
          %p1689 = pneg %p229
        $region88: #{decoder_block_forward.5} parent=43 // pred_check_branch
          %1691 = sbr.rel (%p1689) target = $region90
        $region89: #{decoder_block_forward.5} parent=43 // pred_region
          _
        $region90: #{decoder_block_forward.5} parent=43 // pred_fallthru
          _
        // Predicated region
        $region91: #{decoder_block_forward.5} parent=43 // pred_check
          %p1692 = pneg %p257
        $region92: #{decoder_block_forward.5} parent=43 // pred_check_branch
          %1694 = sbr.rel (%p1692) target = $region94
        $region93: #{decoder_block_forward.5} parent=43 // pred_region
          _
        $region94: #{decoder_block_forward.5} parent=43 // pred_fallthru
          _
      $region44: #{decoder_block_forward.5} parent=5 // pred_fallthru
        _
      %p1695 = scmp.le.s32.totalorder 2, %s16
      // Predicated region
      $region95: #{decoder_block_forward.5} parent=5 // pred_check
        %p1696 = pneg %p1695
      $region96: #{decoder_block_forward.5} parent=5 // pred_check_branch
        %1698 = sbr.rel (%p1696) target = $region98
      $region97: #{decoder_block_forward.5} parent=5 // pred_region
        %s1699 = ssub.s32 %s16, 2
        // Predicated region
        $region99: #{decoder_block_forward.5} parent=97 // pred_check
          %p1700 = pneg %p207
        $region100: #{decoder_block_forward.5} parent=97 // pred_check_branch
          %1702 = sbr.rel (%p1700) target = $region102
        $region101: #{decoder_block_forward.5} parent=97 // pred_region
          %s1703 = sand.u32 %s192, 1
          %s1704 = sand.u32 %s192, 1
          %s1705 = smul.addr %s1704, 256
          %s1706 = scalar_lea.vmem [#allocation4], %s1705
        $region102: #{decoder_block_forward.5} parent=97 // pred_fallthru
          _
        // Predicated region
        $region103: #{decoder_block_forward.5} parent=97 // pred_check
          %p1707 = pneg %p235
        $region104: #{decoder_block_forward.5} parent=97 // pred_check_branch
          %1709 = sbr.rel (%p1707) target = $region106
        $region105: #{decoder_block_forward.5} parent=97 // pred_region
          %p1710 = scmp.lt.s32.totalorder %s27, 1
          %s1711 = scalar_select %p1710, %s27, 1
          %p1712 = scmp.lt.s32.totalorder %s28, 0
          %s1713 = scalar_select %p1712, %s28, 0
          %s1714 = smul.addr %s1713, 4
          %s1715 = smul.addr %s1711, 4
          %s1716 = sadd.s32 %s1714, %s1715
          %s1717 = scalar_lea.vmem %s7, %s1716
        $region106: #{decoder_block_forward.5} parent=97 // pred_fallthru
          _
        // Predicated region
        $region107: #{decoder_block_forward.5} parent=97 // pred_check
          %p1718 = pneg %p263
        $region108: #{decoder_block_forward.5} parent=97 // pred_check_branch
          %1720 = sbr.rel (%p1718) target = $region110
        $region109: #{decoder_block_forward.5} parent=97 // pred_region
          %p1721 = scmp.lt.s32.totalorder %s27, 1
          %s1722 = scalar_select %p1721, %s27, 1
          %p1723 = scmp.lt.s32.totalorder %s28, 0
          %s1724 = scalar_select %p1723, %s28, 0
          %s1725 = smul.addr %s1724, 4
          %s1726 = smul.addr %s1722, 4
          %s1727 = sadd.s32 %s1725, %s1726
          %s1728 = scalar_lea.vmem %s8, %s1727
        $region110: #{decoder_block_forward.5} parent=97 // pred_fallthru
          _
      $region98: #{decoder_block_forward.5} parent=5 // pred_fallthru
        _
    $region6: #{decoder_block_forward.5} parent=1 // loop_footer
      %s20 = sadd.s32 1, %s16
    $region7: #{decoder_block_forward.5} parent=1 // loop_footer_branch
      %15 = sbr.rel target = $region3
    $region8: #{decoder_block_forward.5} parent=1 // loop_exit
      _
    %1729 = vsyncpa [#allocation3], 1
    %s1730 = scalar_lea.sflag [#allocation3], 1
    %1731 = vsyncpa %s1730, 1

// kernel: decoder_block_forward.6
$region0: #{decoder_block_forward.6}
  #allocation0 [shape = 'u32[]', space=smem, size = 0x4, offset = 0x4, fixed_abs, tag = 'smem constant byte address 0x4 - core index']
  #allocation1 [shape = 'u32[144,128]{1,0:T(1,128)}', space=vmem, size = 0x12000, scoped, tag = 'internal scratch']
  %s0 = inlined_call_operand.vmem [shape: f32[512,128], index: 0, kind: input, shape index: {}]
  %s1 = inlined_call_operand.vmem [shape: f32[1,128], index: 1, kind: input, shape index: {}]
  %s2 = inlined_call_operand.vmem [shape: f32[1,128], index: 2, kind: input, shape index: {}]
  %s3 = inlined_call_operand.vmem [shape: f32[128,128], index: 3, kind: input, shape index: {}]
  %s4 = inlined_call_operand.vmem [shape: f32[1,128], index: 4, kind: input, shape index: {}]
  %s5 = inlined_call_operand.vmem [shape: f32[512,128], index: 5, kind: output, shape index: {0}]
  %s6 = inlined_call_operand.vmem [shape: f32[2,1,128], index: 6, kind: output, shape index: {1}]
  %s7 = inlined_call_operand.vmem [shape: f32[2,1,128], index: 7, kind: output, shape index: {2}]
  %8 = xla_tuple %s5, %s6, %s7
  %s9 = sld [smem:[#allocation0]]
  $region69: #{decoder_block_forward.6} parent=0
    _
  %s11 = ssub.s32 1, %s9
  %s12 = scalar_select 0, %s11, %s9
  loop: start=0, step=1, limit=4
  $region2: #{decoder_block_forward.6} parent=0 // loop_pre_header
    _
  $region3: #{decoder_block_forward.6} parent=0 // loop_header
    %s14 = sphi 0, %s18
    %p15 = scmp.ge.s32.totalorder %s14, 4
    %s24 = sphi 0, %s26
    %s27 = sphi 0, %s24
    %s28 = sphi 0, %s27
    %s44 = sphi 0, %s28
    %s48 = sphi 0, %s48
    %s50 = sphi 0, %s48
    %s51 = sphi 0, %s50
    %s65 = sphi 0, %s51
    %s69 = sphi 0, %s69
    %s71 = sphi 0, %s69
    %s72 = sphi 0, %s71
    %s86 = sphi 0, %s72
    %s90 = sphi 0, %s90
    %s92 = sphi 0, %s90
    %s93 = sphi 0, %s92
    %s107 = sphi 0, %s93
    %s111 = sphi 0, %s111
    %s113 = sphi 0, %s111
    %s114 = sphi 0, %s113
    %s128 = sphi 0, %s114
    %s134 = sphi 0, %s136
    %s137 = sphi 0, %s134
    %s138 = sphi 0, %s137
    %s154 = sphi 0, %s138
    %s160 = sphi 0, %s162
    %s163 = sphi 0, %s160
    %s164 = sphi 0, %s163
    %s180 = sphi 0, %s164
    %s186 = sphi 0, %s188
    %s189 = sphi 0, %s186
    %s190 = sphi 0, %s189
    %s206 = sphi 0, %s190
  $region4: #{decoder_block_forward.6} parent=0 // loop_header_branch
    %17 = sbr.rel (%p15) target = $region8
  $region5: #{decoder_block_forward.6} parent=0 // loop_body
    %s19 = ssub.s32 %s14, 1
    %s20 = ssub.s32 %s14, 2
    %s21 = sadd.s32 %s14, 1
    %s22 = ssub.s32 %s14, %s21
    %p23 = scmp.eq.s32.totalorder %s22, 0
    %s25 = sadd.s32 %s24, 1
    %s26 = scalar_select %p23, %s24, %s25
    %p29 = pneg %p23
    %p30 = scmp.eq.s32.totalorder %s14, 1
    %p31 = por %p29, %p30
    %p32 = scmp.ne.s32.totalorder %s24, %s27
    %p33 = scmp.eq.s32.totalorder %s14, 0
    %p34 = por %p32, %p33
    %p35 = scmp.ne.s32.totalorder %s24, %s27
    %p36 = scmp.eq.s32.totalorder %s19, 1
    %p37 = por %p35, %p36
    %p38 = scmp.ne.s32.totalorder %s27, %s28
    %p39 = scmp.eq.s32.totalorder %s19, 0
    %p40 = por %p38, %p39
    %p41 = scmp.ne.s32.totalorder %s27, %s28
    %p42 = scmp.eq.s32.totalorder %s20, 1
    %p43 = por %p41, %p42
    %p45 = scmp.ne.s32.totalorder %s28, %s44
    %p46 = scmp.eq.s32.totalorder %s20, 0
    %p47 = por %p45, %p46
    %s49 = sadd.s32 %s48, 1
    %p52 = scmp.eq.s32.totalorder %s14, 1
    %p53 = scmp.ne.s32.totalorder %s48, %s50
    %p54 = scmp.eq.s32.totalorder %s14, 0
    %p55 = por %p53, %p54
    %p56 = scmp.ne.s32.totalorder %s48, %s50
    %p57 = scmp.eq.s32.totalorder %s19, 1
    %p58 = por %p56, %p57
    %p59 = scmp.ne.s32.totalorder %s50, %s51
    %p60 = scmp.eq.s32.totalorder %s19, 0
    %p61 = por %p59, %p60
    %p62 = scmp.ne.s32.totalorder %s50, %s51
    %p63 = scmp.eq.s32.totalorder %s20, 1
    %p64 = por %p62, %p63
    %p66 = scmp.ne.s32.totalorder %s51, %s65
    %p67 = scmp.eq.s32.totalorder %s20, 0
    %p68 = por %p66, %p67
    %s70 = sadd.s32 %s69, 1
    %p73 = scmp.eq.s32.totalorder %s14, 1
    %p74 = scmp.ne.s32.totalorder %s69, %s71
    %p75 = scmp.eq.s32.totalorder %s14, 0
    %p76 = por %p74, %p75
    %p77 = scmp.ne.s32.totalorder %s69, %s71
    %p78 = scmp.eq.s32.totalorder %s19, 1
    %p79 = por %p77, %p78
    %p80 = scmp.ne.s32.totalorder %s71, %s72
    %p81 = scmp.eq.s32.totalorder %s19, 0
    %p82 = por %p80, %p81
    %p83 = scmp.ne.s32.totalorder %s71, %s72
    %p84 = scmp.eq.s32.totalorder %s20, 1
    %p85 = por %p83, %p84
    %p87 = scmp.ne.s32.totalorder %s72, %s86
    %p88 = scmp.eq.s32.totalorder %s20, 0
    %p89 = por %p87, %p88
    %s91 = sadd.s32 %s90, 1
    %p94 = scmp.eq.s32.totalorder %s14, 1
    %p95 = scmp.ne.s32.totalorder %s90, %s92
    %p96 = scmp.eq.s32.totalorder %s14, 0
    %p97 = por %p95, %p96
    %p98 = scmp.ne.s32.totalorder %s90, %s92
    %p99 = scmp.eq.s32.totalorder %s19, 1
    %p100 = por %p98, %p99
    %p101 = scmp.ne.s32.totalorder %s92, %s93
    %p102 = scmp.eq.s32.totalorder %s19, 0
    %p103 = por %p101, %p102
    %p104 = scmp.ne.s32.totalorder %s92, %s93
    %p105 = scmp.eq.s32.totalorder %s20, 1
    %p106 = por %p104, %p105
    %p108 = scmp.ne.s32.totalorder %s93, %s107
    %p109 = scmp.eq.s32.totalorder %s20, 0
    %p110 = por %p108, %p109
    %s112 = sadd.s32 %s111, 1
    %p115 = scmp.eq.s32.totalorder %s14, 1
    %p116 = scmp.ne.s32.totalorder %s111, %s113
    %p117 = scmp.eq.s32.totalorder %s14, 0
    %p118 = por %p116, %p117
    %p119 = scmp.ne.s32.totalorder %s111, %s113
    %p120 = scmp.eq.s32.totalorder %s19, 1
    %p121 = por %p119, %p120
    %p122 = scmp.ne.s32.totalorder %s113, %s114
    %p123 = scmp.eq.s32.totalorder %s19, 0
    %p124 = por %p122, %p123
    %p125 = scmp.ne.s32.totalorder %s113, %s114
    %p126 = scmp.eq.s32.totalorder %s20, 1
    %p127 = por %p125, %p126
    %p129 = scmp.ne.s32.totalorder %s114, %s128
    %p130 = scmp.eq.s32.totalorder %s20, 0
    %p131 = por %p129, %p130
    %s132 = ssub.s32 %s14, %s21
    %p133 = scmp.eq.s32.totalorder %s132, 0
    %s135 = sadd.s32 %s134, 1
    %s136 = scalar_select %p133, %s134, %s135
    %p139 = pneg %p133
    %p140 = scmp.eq.s32.totalorder %s14, 1
    %p141 = por %p139, %p140
    %p142 = scmp.ne.s32.totalorder %s134, %s137
    %p143 = scmp.eq.s32.totalorder %s14, 0
    %p144 = por %p142, %p143
    %p145 = scmp.ne.s32.totalorder %s134, %s137
    %p146 = scmp.eq.s32.totalorder %s19, 1
    %p147 = por %p145, %p146
    %p148 = scmp.ne.s32.totalorder %s137, %s138
    %p149 = scmp.eq.s32.totalorder %s19, 0
    %p150 = por %p148, %p149
    %p151 = scmp.ne.s32.totalorder %s137, %s138
    %p152 = scmp.eq.s32.totalorder %s20, 1
    %p153 = por %p151, %p152
    %p155 = scmp.ne.s32.totalorder %s138, %s154
    %p156 = scmp.eq.s32.totalorder %s20, 0
    %p157 = por %p155, %p156
    %s158 = ssub.s32 %s14, %s21
    %p159 = scmp.eq.s32.totalorder %s158, 0
    %s161 = sadd.s32 %s160, 1
    %s162 = scalar_select %p159, %s160, %s161
    %p165 = pneg %p159
    %p166 = scmp.eq.s32.totalorder %s14, 1
    %p167 = por %p165, %p166
    %p168 = scmp.ne.s32.totalorder %s160, %s163
    %p169 = scmp.eq.s32.totalorder %s14, 0
    %p170 = por %p168, %p169
    %p171 = scmp.ne.s32.totalorder %s160, %s163
    %p172 = scmp.eq.s32.totalorder %s19, 1
    %p173 = por %p171, %p172
    %p174 = scmp.ne.s32.totalorder %s163, %s164
    %p175 = scmp.eq.s32.totalorder %s19, 0
    %p176 = por %p174, %p175
    %p177 = scmp.ne.s32.totalorder %s163, %s164
    %p178 = scmp.eq.s32.totalorder %s20, 1
    %p179 = por %p177, %p178
    %p181 = scmp.ne.s32.totalorder %s164, %s180
    %p182 = scmp.eq.s32.totalorder %s20, 0
    %p183 = por %p181, %p182
    %s184 = ssub.s32 %s14, %s21
    %p185 = scmp.eq.s32.totalorder %s184, 0
    %s187 = sadd.s32 %s186, 1
    %s188 = scalar_select %p185, %s186, %s187
    %p191 = pneg %p185
    %p192 = scmp.eq.s32.totalorder %s14, 1
    %p193 = por %p191, %p192
    %p194 = scmp.ne.s32.totalorder %s186, %s189
    %p195 = scmp.eq.s32.totalorder %s14, 0
    %p196 = por %p194, %p195
    %p197 = scmp.ne.s32.totalorder %s186, %s189
    %p198 = scmp.eq.s32.totalorder %s19, 1
    %p199 = por %p197, %p198
    %p200 = scmp.ne.s32.totalorder %s189, %s190
    %p201 = scmp.eq.s32.totalorder %s19, 0
    %p202 = por %p200, %p201
    %p203 = scmp.ne.s32.totalorder %s189, %s190
    %p204 = scmp.eq.s32.totalorder %s20, 1
    %p205 = por %p203, %p204
    %p207 = scmp.ne.s32.totalorder %s190, %s206
    %p208 = scmp.eq.s32.totalorder %s20, 0
    %p209 = por %p207, %p208
    %p210 = scmp.le.s32.totalorder 1, %s14
    %p211 = scmp.lt.s32.totalorder %s14, 3
    %p212 = pnand %p210, %p211
    %p213 = pneg %p212
    // Predicated region
    $region9: #{decoder_block_forward.6} parent=5 // pred_check
      _
    $region10: #{decoder_block_forward.6} parent=5 // pred_check_branch
      %215 = sbr.rel (%p212) target = $region12
    $region11: #{decoder_block_forward.6} parent=5 // pred_region
      %s216 = ssub.s32 %s14, 1
      // Predicated region
      $region13: #{decoder_block_forward.6} parent=11 // pred_check
        %p217 = pneg %p61
      $region14: #{decoder_block_forward.6} parent=11 // pred_check_branch
        %219 = sbr.rel (%p217) target = $region16
      $region15: #{decoder_block_forward.6} parent=11 // pred_region
        _
      $region16: #{decoder_block_forward.6} parent=11 // pred_fallthru
        _
      // Predicated region
      $region17: #{decoder_block_forward.6} parent=11 // pred_check
        %p220 = pneg %p82
      $region18: #{decoder_block_forward.6} parent=11 // pred_check_branch
        %222 = sbr.rel (%p220) target = $region20
      $region19: #{decoder_block_forward.6} parent=11 // pred_region
        _
      $region20: #{decoder_block_forward.6} parent=11 // pred_fallthru
        _
      // Predicated region
      $region21: #{decoder_block_forward.6} parent=11 // pred_check
        %p223 = pneg %p103
      $region22: #{decoder_block_forward.6} parent=11 // pred_check_branch
        %225 = sbr.rel (%p223) target = $region24
      $region23: #{decoder_block_forward.6} parent=11 // pred_region
        _
      $region24: #{decoder_block_forward.6} parent=11 // pred_fallthru
        _
      // Predicated region
      $region25: #{decoder_block_forward.6} parent=11 // pred_check
        %p226 = pneg %p124
      $region26: #{decoder_block_forward.6} parent=11 // pred_check_branch
        %228 = sbr.rel (%p226) target = $region28
      $region27: #{decoder_block_forward.6} parent=11 // pred_region
        _
      $region28: #{decoder_block_forward.6} parent=11 // pred_fallthru
        _
    $region12: #{decoder_block_forward.6} parent=5 // pred_fallthru
      _
    %p229 = scmp.lt.s32.totalorder %s14, 2
    // Predicated region
    $region29: #{decoder_block_forward.6} parent=5 // pred_check
      %p230 = pneg %p229
    $region30: #{decoder_block_forward.6} parent=5 // pred_check_branch
      %232 = sbr.rel (%p230) target = $region32
    $region31: #{decoder_block_forward.6} parent=5 // pred_region
      // Predicated region
      $region33: #{decoder_block_forward.6} parent=31 // pred_check
        %p233 = pneg %p34
      $region34: #{decoder_block_forward.6} parent=31 // pred_check_branch
        %235 = sbr.rel (%p233) target = $region36
      $region35: #{decoder_block_forward.6} parent=31 // pred_region
        %s236 = smul.u32 32, %s14
        %p237 = scmp.lt.s32.totalorder %s236, 63
        %s238 = scalar_select %p237, %s236, 63
        %s239 = smul.addr %s238, 8
        %s240 = scalar_lea.vmem %s0, %s239
        %s241 = smul.u32 32, %s14
      $region36: #{decoder_block_forward.6} parent=31 // pred_fallthru
        _
    $region32: #{decoder_block_forward.6} parent=5 // pred_fallthru
      _
    %p242 = scmp.le.s32.totalorder 1, %s14
    %p243 = scmp.lt.s32.totalorder %s14, 3
    %p244 = pnand %p242, %p243
    %p245 = pneg %p244
    // Predicated region
    $region37: #{decoder_block_forward.6} parent=5 // pred_check
      _
    $region38: #{decoder_block_forward.6} parent=5 // pred_check_branch
      %247 = sbr.rel (%p244) target = $region40
    $region39: #{decoder_block_forward.6} parent=5 // pred_region
      %s248 = ssub.s32 %s14, 1
      %s249 = smul.u32 32, %s19
      %p250 = scmp.lt.s32.totalorder %s249, 63
      %s251 = scalar_select %p250, %s249, 63
      %s252 = smul.addr %s251, 8
      %s253 = scalar_lea.vmem %s0, %s252
      %p254 = pneg %p40
      %p255 = pneg %p37
      %p256 = pneg %p61
      %p257 = pneg %p58
      %p258 = pneg %p82
      %p259 = pneg %p79
      %p260 = pneg %p103
      %p261 = pneg %p100
      %p262 = pneg %p124
      %p263 = pneg %p121
      %p264 = pneg %p150
      %p265 = pneg %p147
      %s266 = smul.u32 32, %s19
      %p267 = scmp.lt.s32.totalorder %s266, 63
      %s268 = scalar_select %p267, %s266, 63
      %s269 = smul.addr %s268, 8
      %s270 = scalar_lea.vmem %s5, %s269
      %p271 = pneg %p176
      %p272 = pneg %p173
      %p273 = scmp.lt.s32.totalorder %s19, 1
      %s274 = scalar_select %p273, %s19, 1
      %s275 = scalar_lea.vmem %s6, %s274
      %p276 = pneg %p202
      %p277 = pneg %p199
      %p278 = scmp.lt.s32.totalorder %s19, 1
      %s279 = scalar_select %p278, %s19, 1
      %s280 = scalar_lea.vmem %s7, %s279
      %s281 = smul.u32 32, %s19
      %p282 = scmp.lt.s32.totalorder %s281, 63
      %s283 = scalar_select %p282, %s281, 63
      %s284 = smul.addr %s283, 8
      %s285 = scalar_lea.vmem %s0, %s284
      %s286 = smul.u32 32, %s19
      %s287 = smul.u32 32, %s19
      %p288 = scmp.lt.s32.totalorder %s287, 63
      %s289 = scalar_select %p288, %s287, 63
      %s290 = smul.addr %s289, 8
      %s291 = scalar_lea.vmem %s5, %s290
      %s292 = smul.u32 32, %s19
      %p293 = scmp.lt.s32.totalorder %s19, 1
      %s294 = scalar_select %p293, %s19, 1
      %s295 = scalar_lea.vmem %s6, %s294
      %p296 = scmp.lt.s32.totalorder %s19, 1
      %s297 = scalar_select %p296, %s19, 1
      %s298 = scalar_lea.vmem %s7, %s297
      %v299 = vld [vmem:[%s3] sm:$0xff]
      %v300 = vld [vmem:[%s3 + $0x8] sm:$0xff]
      %v301 = vld [vmem:[%s3 + $0x10] sm:$0xff]
      %v302 = vld [vmem:[%s3 + $0x18] sm:$0xff]
      %v303 = vld [vmem:[%s3 + $0x20] sm:$0xff]
      %v304 = vld [vmem:[%s3 + $0x28] sm:$0xff]
      %v305 = vld [vmem:[%s3 + $0x30] sm:$0xff]
      %v306 = vld [vmem:[%s3 + $0x38] sm:$0xff]
      %v307 = vld [vmem:[%s3 + $0x40] sm:$0xff]
      %v308 = vld [vmem:[%s3 + $0x48] sm:$0xff]
      %v309 = vld [vmem:[%s3 + $0x50] sm:$0xff]
      %v310 = vld [vmem:[%s3 + $0x58] sm:$0xff]
      %v311 = vld [vmem:[%s3 + $0x60] sm:$0xff]
      %v312 = vld [vmem:[%s3 + $0x68] sm:$0xff]
      %v313 = vld [vmem:[%s3 + $0x70] sm:$0xff]
      %v314 = vld [vmem:[%s3 + $0x78] sm:$0xff]
      %v315 = vld [vmem:[%s285] sm:$0xff]
      %v316 = vld [vmem:[%s285 + $0x8] sm:$0xff]
      %v317 = vld [vmem:[%s285 + $0x10] sm:$0xff]
      %v318 = vld [vmem:[%s285 + $0x18] sm:$0xff]
      %v319 = vld [vmem:[%s285 + $0x20] sm:$0xff]
      %v320 = vld [vmem:[%s285 + $0x28] sm:$0xff]
      %v321 = vld [vmem:[%s285 + $0x30] sm:$0xff]
      %v322 = vld [vmem:[%s285 + $0x38] sm:$0xff]
      %v323 = vld [vmem:[%s285 + $0x40] sm:$0xff]
      %v324 = vld [vmem:[%s285 + $0x48] sm:$0xff]
      %v325 = vld [vmem:[%s285 + $0x50] sm:$0xff]
      %v326 = vld [vmem:[%s285 + $0x58] sm:$0xff]
      %v327 = vld [vmem:[%s285 + $0x60] sm:$0xff]
      %v328 = vld [vmem:[%s285 + $0x68] sm:$0xff]
      %v329 = vld [vmem:[%s285 + $0x70] sm:$0xff]
      %v330 = vld [vmem:[%s285 + $0x78] sm:$0xff]
      %v331 = vld [vmem:[%s285 + $0x80] sm:$0xff]
      %v332 = vld [vmem:[%s285 + $0x88] sm:$0xff]
      %v333 = vld [vmem:[%s285 + $0x90] sm:$0xff]
      %v334 = vld [vmem:[%s285 + $0x98] sm:$0xff]
      %v335 = vld [vmem:[%s285 + $0xa0] sm:$0xff]
      %v336 = vld [vmem:[%s285 + $0xa8] sm:$0xff]
      %v337 = vld [vmem:[%s285 + $0xb0] sm:$0xff]
      %v338 = vld [vmem:[%s285 + $0xb8] sm:$0xff]
      %v339 = vld [vmem:[%s285 + $0xc0] sm:$0xff]
      %v340 = vld [vmem:[%s285 + $0xc8] sm:$0xff]
      %v341 = vld [vmem:[%s285 + $0xd0] sm:$0xff]
      %v342 = vld [vmem:[%s285 + $0xd8] sm:$0xff]
      %v343 = vld [vmem:[%s285 + $0xe0] sm:$0xff]
      %v344 = vld [vmem:[%s285 + $0xe8] sm:$0xff]
      %v345 = vld [vmem:[%s285 + $0xf0] sm:$0xff]
      %v346 = vld [vmem:[%s285 + $0xf8] sm:$0xff]
      %v347 = vld [vmem:[%s1] sm:$0x1]
      %v349 = vlaneseq
      %v350 = vshrl.u32 %v349, 7
      %v351 = vsub.s32 0, %v350
      %v352 = vrot.slane %v347, %v351
      %v354 = vmul.f32 %v315, %v352
      %v355 = vmul.f32 %v316, %v352
      %v356 = vmul.f32 %v317, %v352
      %v357 = vmul.f32 %v318, %v352
      %v358 = vmul.f32 %v319, %v352
      %v359 = vmul.f32 %v320, %v352
      %v360 = vmul.f32 %v321, %v352
      %v361 = vmul.f32 %v322, %v352
      %v362 = vmul.f32 %v323, %v352
      %v363 = vmul.f32 %v324, %v352
      %v364 = vmul.f32 %v325, %v352
      %v365 = vmul.f32 %v326, %v352
      %v366 = vmul.f32 %v327, %v352
      %v367 = vmul.f32 %v328, %v352
      %v368 = vmul.f32 %v329, %v352
      %v369 = vmul.f32 %v330, %v352
      %v370 = vmul.f32 %v331, %v352
      %v371 = vmul.f32 %v332, %v352
      %v372 = vmul.f32 %v333, %v352
      %v373 = vmul.f32 %v334, %v352
      %v374 = vmul.f32 %v335, %v352
      %v375 = vmul.f32 %v336, %v352
      %v376 = vmul.f32 %v337, %v352
      %v377 = vmul.f32 %v338, %v352
      %v378 = vmul.f32 %v339, %v352
      %v379 = vmul.f32 %v340, %v352
      %v380 = vmul.f32 %v341, %v352
      %v381 = vmul.f32 %v342, %v352
      %v382 = vmul.f32 %v343, %v352
      %v383 = vmul.f32 %v344, %v352
      %v384 = vmul.f32 %v345, %v352
      %v385 = vmul.f32 %v346, %v352
      %v386 = vld [vmem:[%s2] sm:$0x1]
      %v388 = vlaneseq
      %v389 = vshrl.u32 %v388, 7
      %v390 = vsub.s32 0, %v389
      %v391 = vrot.slane %v386, %v390
      %v393 = vadd.f32 %v354, %v391
      %v394 = vadd.f32 %v355, %v391
      %v395 = vadd.f32 %v356, %v391
      %v396 = vadd.f32 %v357, %v391
      %v397 = vadd.f32 %v358, %v391
      %v398 = vadd.f32 %v359, %v391
      %v399 = vadd.f32 %v360, %v391
      %v400 = vadd.f32 %v361, %v391
      %v401 = vadd.f32 %v362, %v391
      %v402 = vadd.f32 %v363, %v391
      %v403 = vadd.f32 %v364, %v391
      %v404 = vadd.f32 %v365, %v391
      %v405 = vadd.f32 %v366, %v391
      %v406 = vadd.f32 %v367, %v391
      %v407 = vadd.f32 %v368, %v391
      %v408 = vadd.f32 %v369, %v391
      %v409 = vadd.f32 %v370, %v391
      %v410 = vadd.f32 %v371, %v391
      %v411 = vadd.f32 %v372, %v391
      %v412 = vadd.f32 %v373, %v391
      %v413 = vadd.f32 %v374, %v391
      %v414 = vadd.f32 %v375, %v391
      %v415 = vadd.f32 %v376, %v391
      %v416 = vadd.f32 %v377, %v391
      %v417 = vadd.f32 %v378, %v391
      %v418 = vadd.f32 %v379, %v391
      %v419 = vadd.f32 %v380, %v391
      %v420 = vadd.f32 %v381, %v391
      %v421 = vadd.f32 %v382, %v391
      %v422 = vadd.f32 %v383, %v391
      %v423 = vadd.f32 %v384, %v391
      %v424 = vadd.f32 %v385, %v391
      %v425 = vmax.f32 %v393, 0.0
      %v426 = vmax.f32 %v394, 0.0
      %v427 = vmax.f32 %v395, 0.0
      %v428 = vmax.f32 %v396, 0.0
      %v429 = vmax.f32 %v397, 0.0
      %v430 = vmax.f32 %v398, 0.0
      %v431 = vmax.f32 %v399, 0.0
      %v432 = vmax.f32 %v400, 0.0
      %v433 = vmax.f32 %v401, 0.0
      %v434 = vmax.f32 %v402, 0.0
      %v435 = vmax.f32 %v403, 0.0
      %v436 = vmax.f32 %v404, 0.0
      %v437 = vmax.f32 %v405, 0.0
      %v438 = vmax.f32 %v406, 0.0
      %v439 = vmax.f32 %v407, 0.0
      %v440 = vmax.f32 %v408, 0.0
      %v441 = vmax.f32 %v409, 0.0
      %v442 = vmax.f32 %v410, 0.0
      %v443 = vmax.f32 %v411, 0.0
      %v444 = vmax.f32 %v412, 0.0
      %v445 = vmax.f32 %v413, 0.0
      %v446 = vmax.f32 %v414, 0.0
      %v447 = vmax.f32 %v415, 0.0
      %v448 = vmax.f32 %v416, 0.0
      %v449 = vmax.f32 %v417, 0.0
      %v450 = vmax.f32 %v418, 0.0
      %v451 = vmax.f32 %v419, 0.0
      %v452 = vmax.f32 %v420, 0.0
      %v453 = vmax.f32 %v421, 0.0
      %v454 = vmax.f32 %v422, 0.0
      %v455 = vmax.f32 %v423, 0.0
      %v456 = vmax.f32 %v424, 0.0
      %v457 = vld [vmem:[%s4] sm:$0x1]
      %v459 = vlaneseq
      %v460 = vshrl.u32 %v459, 7
      %v461 = vsub.s32 0, %v460
      %v462 = vrot.slane %v457, %v461
      %464 = vmatprep.subr.mxu0 0.0
      %465 = vmatpush1.msra.mxu0 %v314
      %466 = vmatprep.subr.mxu0 0.0
      %467 = vmatpush1.msra.mxu0 %v313
      %468 = vmatprep.subr.mxu0 0.0
      %469 = vmatpush1.msra.mxu0 %v312
      %470 = vmatprep.subr.mxu0 0.0
      %471 = vmatpush1.msra.mxu0 %v311
      %472 = vmatprep.subr.mxu0 0.0
      %473 = vmatpush1.msra.mxu0 %v310
      %474 = vmatprep.subr.mxu0 0.0
      %475 = vmatpush1.msra.mxu0 %v309
      %476 = vmatprep.subr.mxu0 0.0
      %477 = vmatpush1.msra.mxu0 %v308
      %478 = vmatprep.subr.mxu0 0.0
      %479 = vmatpush1.msra.mxu0 %v307
      %480 = vmatprep.subr.mxu0 0.0
      %481 = vmatpush1.msra.mxu0 %v306
      %482 = vmatprep.subr.mxu0 0.0
      %483 = vmatpush1.msra.mxu0 %v305
      %484 = vmatprep.subr.mxu0 0.0
      %485 = vmatpush1.msra.mxu0 %v304
      %486 = vmatprep.subr.mxu0 0.0
      %487 = vmatpush1.msra.mxu0 %v303
      %488 = vmatprep.subr.mxu0 0.0
      %489 = vmatpush1.msra.mxu0 %v302
      %490 = vmatprep.subr.mxu0 0.0
      %491 = vmatpush1.msra.mxu0 %v301
      %492 = vmatprep.subr.mxu0 0.0
      %493 = vmatpush1.msra.mxu0 %v300
      %494 = vmatprep.subr.mxu0 0.0
      %495 = vmatpush1.msra.mxu0 %v299
      %496 = vmatprep.subr.mxu0 0.0
      %497 = vmatpush2.msra.mxu0 0.0
      %498 = vmatprep.subr.mxu0 0.0
      %499 = vmatpush2.msra.mxu0 0.0
      %500 = vmatprep.subr.mxu0 0.0
      %501 = vmatpush2.msra.mxu0 0.0
      %502 = vmatprep.subr.mxu0 0.0
      %503 = vmatpush2.msra.mxu0 0.0
      %504 = vmatprep.subr.mxu0 0.0
      %505 = vmatpush2.msra.mxu0 0.0
      %506 = vmatprep.subr.mxu0 0.0
      %507 = vmatpush2.msra.mxu0 0.0
      %508 = vmatprep.subr.mxu0 0.0
      %509 = vmatpush2.msra.mxu0 0.0
      %510 = vmatprep.subr.mxu0 0.0
      %511 = vmatpush2.msra.mxu0 0.0
      %512 = vmatprep.subr.mxu0 0.0
      %513 = vmatpush2.msra.mxu0 0.0
      %514 = vmatprep.subr.mxu0 0.0
      %515 = vmatpush2.msra.mxu0 0.0
      %516 = vmatprep.subr.mxu0 0.0
      %517 = vmatpush2.msra.mxu0 0.0
      %518 = vmatprep.subr.mxu0 0.0
      %519 = vmatpush2.msra.mxu0 0.0
      %520 = vmatprep.subr.mxu0 0.0
      %521 = vmatpush2.msra.mxu0 0.0
      %522 = vmatprep.subr.mxu0 0.0
      %523 = vmatpush2.msra.mxu0 0.0
      %524 = vmatprep.subr.mxu0 0.0
      %525 = vmatpush2.msra.mxu0 0.0
      %526 = vmatprep.subr.mxu0 0.0
      %527 = vmatpush2.msra.mxu0 0.0
      %528 = vmatprep.mubr.f32.mxu0 0.0
      %529 = vmatmul.mubr.f32.gmra.mxu0 %v425
      %v530 = vpop.f32.mrf.mxu0
      %v531 = vadd.f32 %v462, %v530
      %v532 = vpop.f32.mrf.mxu0
      %533 = vmatprep.mubr.f32.mxu0 0.0
      %534 = vmatmul.mubr.f32.gmra.mxu0 %v426
      %v535 = vpop.f32.mrf.mxu0
      %v536 = vadd.f32 %v462, %v535
      %v537 = vpop.f32.mrf.mxu0
      %538 = vmatprep.mubr.f32.mxu0 0.0
      %539 = vmatmul.mubr.f32.gmra.mxu0 %v427
      %v540 = vpop.f32.mrf.mxu0
      %v541 = vadd.f32 %v462, %v540
      %v542 = vpop.f32.mrf.mxu0
      %543 = vmatprep.mubr.f32.mxu0 0.0
      %544 = vmatmul.mubr.f32.gmra.mxu0 %v428
      %v545 = vpop.f32.mrf.mxu0
      %v546 = vadd.f32 %v462, %v545
      %v547 = vpop.f32.mrf.mxu0
      %548 = vmatprep.mubr.f32.mxu0 0.0
      %549 = vmatmul.mubr.f32.gmra.mxu0 %v429
      %v550 = vpop.f32.mrf.mxu0
      %v551 = vadd.f32 %v462, %v550
      %v552 = vpop.f32.mrf.mxu0
      %553 = vmatprep.mubr.f32.mxu0 0.0
      %554 = vmatmul.mubr.f32.gmra.mxu0 %v430
      %v555 = vpop.f32.mrf.mxu0
      %v556 = vadd.f32 %v462, %v555
      %v557 = vpop.f32.mrf.mxu0
      %558 = vmatprep.mubr.f32.mxu0 0.0
      %559 = vmatmul.mubr.f32.gmra.mxu0 %v431
      %v560 = vpop.f32.mrf.mxu0
      %v561 = vadd.f32 %v462, %v560
      %v562 = vpop.f32.mrf.mxu0
      %563 = vmatprep.mubr.f32.mxu0 0.0
      %564 = vmatmul.mubr.f32.gmra.mxu0 %v432
      %v565 = vpop.f32.mrf.mxu0
      %v566 = vadd.f32 %v462, %v565
      %v567 = vpop.f32.mrf.mxu0
      %568 = vmatprep.mubr.f32.mxu0 0.0
      %569 = vmatmul.mubr.f32.gmra.mxu0 %v433
      %v570 = vpop.f32.mrf.mxu0
      %v571 = vadd.f32 %v462, %v570
      %v572 = vpop.f32.mrf.mxu0
      %573 = vmatprep.mubr.f32.mxu0 0.0
      %574 = vmatmul.mubr.f32.gmra.mxu0 %v434
      %v575 = vpop.f32.mrf.mxu0
      %v576 = vadd.f32 %v462, %v575
      %v577 = vpop.f32.mrf.mxu0
      %578 = vmatprep.mubr.f32.mxu0 0.0
      %579 = vmatmul.mubr.f32.gmra.mxu0 %v435
      %v580 = vpop.f32.mrf.mxu0
      %v581 = vadd.f32 %v462, %v580
      %v582 = vpop.f32.mrf.mxu0
      %583 = vmatprep.mubr.f32.mxu0 0.0
      %584 = vmatmul.mubr.f32.gmra.mxu0 %v436
      %v585 = vpop.f32.mrf.mxu0
      %v586 = vadd.f32 %v462, %v585
      %v587 = vpop.f32.mrf.mxu0
      %588 = vmatprep.mubr.f32.mxu0 0.0
      %589 = vmatmul.mubr.f32.gmra.mxu0 %v437
      %v590 = vpop.f32.mrf.mxu0
      %v591 = vadd.f32 %v462, %v590
      %v592 = vpop.f32.mrf.mxu0
      %593 = vmatprep.mubr.f32.mxu0 0.0
      %594 = vmatmul.mubr.f32.gmra.mxu0 %v438
      %v595 = vpop.f32.mrf.mxu0
      %v596 = vadd.f32 %v462, %v595
      %v597 = vpop.f32.mrf.mxu0
      %598 = vmatprep.mubr.f32.mxu0 0.0
      %599 = vmatmul.mubr.f32.gmra.mxu0 %v439
      %v600 = vpop.f32.mrf.mxu0
      %v601 = vadd.f32 %v462, %v600
      %v602 = vpop.f32.mrf.mxu0
      %603 = vmatprep.mubr.f32.mxu0 0.0
      %604 = vmatmul.mubr.f32.gmra.mxu0 %v440
      %v605 = vpop.f32.mrf.mxu0
      %v606 = vadd.f32 %v462, %v605
      %v607 = vpop.f32.mrf.mxu0
      %608 = vmatprep.mubr.f32.mxu0 0.0
      %609 = vmatmul.mubr.f32.gmra.mxu0 %v441
      %v610 = vpop.f32.mrf.mxu0
      %v611 = vadd.f32 %v462, %v610
      %v612 = vpop.f32.mrf.mxu0
      %613 = vmatprep.mubr.f32.mxu0 0.0
      %614 = vmatmul.mubr.f32.gmra.mxu0 %v442
      %v615 = vpop.f32.mrf.mxu0
      %v616 = vadd.f32 %v462, %v615
      %v617 = vpop.f32.mrf.mxu0
      %618 = vmatprep.mubr.f32.mxu0 0.0
      %619 = vmatmul.mubr.f32.gmra.mxu0 %v443
      %v620 = vpop.f32.mrf.mxu0
      %v621 = vadd.f32 %v462, %v620
      %v622 = vpop.f32.mrf.mxu0
      %623 = vmatprep.mubr.f32.mxu0 0.0
      %624 = vmatmul.mubr.f32.gmra.mxu0 %v444
      %v625 = vpop.f32.mrf.mxu0
      %v626 = vadd.f32 %v462, %v625
      %v627 = vpop.f32.mrf.mxu0
      %628 = vmatprep.mubr.f32.mxu0 0.0
      %629 = vmatmul.mubr.f32.gmra.mxu0 %v445
      %v630 = vpop.f32.mrf.mxu0
      %v631 = vadd.f32 %v462, %v630
      %v632 = vpop.f32.mrf.mxu0
      %633 = vmatprep.mubr.f32.mxu0 0.0
      %634 = vmatmul.mubr.f32.gmra.mxu0 %v446
      %v635 = vpop.f32.mrf.mxu0
      %v636 = vadd.f32 %v462, %v635
      %v637 = vpop.f32.mrf.mxu0
      %638 = vmatprep.mubr.f32.mxu0 0.0
      %639 = vmatmul.mubr.f32.gmra.mxu0 %v447
      %v640 = vpop.f32.mrf.mxu0
      %v641 = vadd.f32 %v462, %v640
      %v642 = vpop.f32.mrf.mxu0
      %643 = vmatprep.mubr.f32.mxu0 0.0
      %644 = vmatmul.mubr.f32.gmra.mxu0 %v448
      %v645 = vpop.f32.mrf.mxu0
      %v646 = vadd.f32 %v462, %v645
      %v647 = vpop.f32.mrf.mxu0
      %648 = vmatprep.mubr.f32.mxu0 0.0
      %649 = vmatmul.mubr.f32.gmra.mxu0 %v449
      %v650 = vpop.f32.mrf.mxu0
      %v651 = vadd.f32 %v462, %v650
      %v652 = vpop.f32.mrf.mxu0
      %653 = vmatprep.mubr.f32.mxu0 0.0
      %654 = vmatmul.mubr.f32.gmra.mxu0 %v450
      %v655 = vpop.f32.mrf.mxu0
      %v656 = vadd.f32 %v462, %v655
      %v657 = vpop.f32.mrf.mxu0
      %658 = vmatprep.mubr.f32.mxu0 0.0
      %659 = vmatmul.mubr.f32.gmra.mxu0 %v451
      %v660 = vpop.f32.mrf.mxu0
      %v661 = vadd.f32 %v462, %v660
      %v662 = vpop.f32.mrf.mxu0
      %663 = vmatprep.mubr.f32.mxu0 0.0
      %664 = vmatmul.mubr.f32.gmra.mxu0 %v452
      %v665 = vpop.f32.mrf.mxu0
      %v666 = vadd.f32 %v462, %v665
      %v667 = vpop.f32.mrf.mxu0
      %668 = vmatprep.mubr.f32.mxu0 0.0
      %669 = vmatmul.mubr.f32.gmra.mxu0 %v453
      %v670 = vpop.f32.mrf.mxu0
      %v671 = vadd.f32 %v462, %v670
      %v672 = vpop.f32.mrf.mxu0
      %673 = vmatprep.mubr.f32.mxu0 0.0
      %674 = vmatmul.mubr.f32.gmra.mxu0 %v454
      %v675 = vpop.f32.mrf.mxu0
      %v676 = vadd.f32 %v462, %v675
      %v677 = vpop.f32.mrf.mxu0
      %678 = vmatprep.mubr.f32.mxu0 0.0
      %679 = vmatmul.mubr.f32.gmra.mxu0 %v455
      %v680 = vpop.f32.mrf.mxu0
      %v681 = vadd.f32 %v462, %v680
      %v682 = vpop.f32.mrf.mxu0
      %683 = vmatprep.mubr.f32.mxu0 0.0
      %684 = vmatmul.mubr.f32.gmra.mxu0 %v456
      %v685 = vpop.f32.mrf.mxu0
      %v686 = vadd.f32 %v462, %v685
      %v687 = vpop.f32.mrf.mxu0
      %688 = vdwg.mxu0
      %689 = vst [vmem:[%s291] sm:$0xff] %v531
      %690 = vst [vmem:[%s291 + $0x8] sm:$0xff] %v536
      %691 = vst [vmem:[%s291 + $0x10] sm:$0xff] %v541
      %692 = vst [vmem:[%s291 + $0x18] sm:$0xff] %v546
      %693 = vst [vmem:[%s291 + $0x20] sm:$0xff] %v551
      %694 = vst [vmem:[%s291 + $0x28] sm:$0xff] %v556
      %695 = vst [vmem:[%s291 + $0x30] sm:$0xff] %v561
      %696 = vst [vmem:[%s291 + $0x38] sm:$0xff] %v566
      %697 = vst [vmem:[%s291 + $0x40] sm:$0xff] %v571
      %698 = vst [vmem:[%s291 + $0x48] sm:$0xff] %v576
      %699 = vst [vmem:[%s291 + $0x50] sm:$0xff] %v581
      %700 = vst [vmem:[%s291 + $0x58] sm:$0xff] %v586
      %701 = vst [vmem:[%s291 + $0x60] sm:$0xff] %v591
      %702 = vst [vmem:[%s291 + $0x68] sm:$0xff] %v596
      %703 = vst [vmem:[%s291 + $0x70] sm:$0xff] %v601
      %704 = vst [vmem:[%s291 + $0x78] sm:$0xff] %v606
      %705 = vst [vmem:[%s291 + $0x80] sm:$0xff] %v611
      %706 = vst [vmem:[%s291 + $0x88] sm:$0xff] %v616
      %707 = vst [vmem:[%s291 + $0x90] sm:$0xff] %v621
      %708 = vst [vmem:[%s291 + $0x98] sm:$0xff] %v626
      %709 = vst [vmem:[%s291 + $0xa0] sm:$0xff] %v631
      %710 = vst [vmem:[%s291 + $0xa8] sm:$0xff] %v636
      %711 = vst [vmem:[%s291 + $0xb0] sm:$0xff] %v641
      %712 = vst [vmem:[%s291 + $0xb8] sm:$0xff] %v646
      %713 = vst [vmem:[%s291 + $0xc0] sm:$0xff] %v651
      %714 = vst [vmem:[%s291 + $0xc8] sm:$0xff] %v656
      %715 = vst [vmem:[%s291 + $0xd0] sm:$0xff] %v661
      %716 = vst [vmem:[%s291 + $0xd8] sm:$0xff] %v666
      %717 = vst [vmem:[%s291 + $0xe0] sm:$0xff] %v671
      %718 = vst [vmem:[%s291 + $0xe8] sm:$0xff] %v676
      %719 = vst [vmem:[%s291 + $0xf0] sm:$0xff] %v681
      %720 = vst [vmem:[%s291 + $0xf8] sm:$0xff] %v686
      %v721 = vadd.f32 %v531, %v536
      %v722 = vadd.f32 %v721, %v541
      %v723 = vadd.f32 %v722, %v546
      %v724 = vadd.f32 %v723, %v551
      %v725 = vadd.f32 %v724, %v556
      %v726 = vadd.f32 %v725, %v561
      %v727 = vadd.f32 %v726, %v566
      %v728 = vadd.f32 %v727, %v571
      %v729 = vadd.f32 %v728, %v576
      %v730 = vadd.f32 %v729, %v581
      %v731 = vadd.f32 %v730, %v586
      %v732 = vadd.f32 %v731, %v591
      %v733 = vadd.f32 %v732, %v596
      %v734 = vadd.f32 %v733, %v601
      %v735 = vadd.f32 %v734, %v606
      %v736 = vadd.f32 %v735, %v611
      %v737 = vadd.f32 %v736, %v616
      %v738 = vadd.f32 %v737, %v621
      %v739 = vadd.f32 %v738, %v626
      %v740 = vadd.f32 %v739, %v631
      %v741 = vadd.f32 %v740, %v636
      %v742 = vadd.f32 %v741, %v641
      %v743 = vadd.f32 %v742, %v646
      %v744 = vadd.f32 %v743, %v651
      %v745 = vadd.f32 %v744, %v656
      %v746 = vadd.f32 %v745, %v661
      %v747 = vadd.f32 %v746, %v666
      %v748 = vadd.f32 %v747, %v671
      %v749 = vadd.f32 %v748, %v676
      %v750 = vadd.f32 %v749, %v681
      %v751 = vadd.f32 %v750, %v686
      %v752 = vrot.slane %v751, 4
      %v753 = vadd.f32 %v751, %v752
      %v754 = vrot.slane %v753, 2
      %v755 = vadd.f32 %v753, %v754
      %v756 = vrot.slane %v755, 1
      %v757 = vadd.f32 %v755, %v756
      %758 = vst [vmem:[%s295] sm:$0x1] %v757
      %v759 = vmul.f32 %v531, %v531
      %v760 = vmul.f32 %v536, %v536
      %v761 = vmul.f32 %v541, %v541
      %v762 = vmul.f32 %v546, %v546
      %v763 = vmul.f32 %v551, %v551
      %v764 = vmul.f32 %v556, %v556
      %v765 = vmul.f32 %v561, %v561
      %v766 = vmul.f32 %v566, %v566
      %v767 = vmul.f32 %v571, %v571
      %v768 = vmul.f32 %v576, %v576
      %v769 = vmul.f32 %v581, %v581
      %v770 = vmul.f32 %v586, %v586
      %v771 = vmul.f32 %v591, %v591
      %v772 = vmul.f32 %v596, %v596
      %v773 = vmul.f32 %v601, %v601
      %v774 = vmul.f32 %v606, %v606
      %v775 = vmul.f32 %v611, %v611
      %v776 = vmul.f32 %v616, %v616
      %v777 = vmul.f32 %v621, %v621
      %v778 = vmul.f32 %v626, %v626
      %v779 = vmul.f32 %v631, %v631
      %v780 = vmul.f32 %v636, %v636
      %v781 = vmul.f32 %v641, %v641
      %v782 = vmul.f32 %v646, %v646
      %v783 = vmul.f32 %v651, %v651
      %v784 = vmul.f32 %v656, %v656
      %v785 = vmul.f32 %v661, %v661
      %v786 = vmul.f32 %v666, %v666
      %v787 = vmul.f32 %v671, %v671
      %v788 = vmul.f32 %v676, %v676
      %v789 = vmul.f32 %v681, %v681
      %v790 = vmul.f32 %v686, %v686
      %v791 = vadd.f32 %v759, %v760
      %v792 = vadd.f32 %v791, %v761
      %v793 = vadd.f32 %v792, %v762
      %v794 = vadd.f32 %v793, %v763
      %v795 = vadd.f32 %v794, %v764
      %v796 = vadd.f32 %v795, %v765
      %v797 = vadd.f32 %v796, %v766
      %v798 = vadd.f32 %v797, %v767
      %v799 = vadd.f32 %v798, %v768
      %v800 = vadd.f32 %v799, %v769
      %v801 = vadd.f32 %v800, %v770
      %v802 = vadd.f32 %v801, %v771
      %v803 = vadd.f32 %v802, %v772
      %v804 = vadd.f32 %v803, %v773
      %v805 = vadd.f32 %v804, %v774
      %v806 = vadd.f32 %v805, %v775
      %v807 = vadd.f32 %v806, %v776
      %v808 = vadd.f32 %v807, %v777
      %v809 = vadd.f32 %v808, %v778
      %v810 = vadd.f32 %v809, %v779
      %v811 = vadd.f32 %v810, %v780
      %v812 = vadd.f32 %v811, %v781
      %v813 = vadd.f32 %v812, %v782
      %v814 = vadd.f32 %v813, %v783
      %v815 = vadd.f32 %v814, %v784
      %v816 = vadd.f32 %v815, %v785
      %v817 = vadd.f32 %v816, %v786
      %v818 = vadd.f32 %v817, %v787
      %v819 = vadd.f32 %v818, %v788
      %v820 = vadd.f32 %v819, %v789
      %v821 = vadd.f32 %v820, %v790
      %v822 = vrot.slane %v821, 4
      %v823 = vadd.f32 %v821, %v822
      %v824 = vrot.slane %v823, 2
      %v825 = vadd.f32 %v823, %v824
      %v826 = vrot.slane %v825, 1
      %v827 = vadd.f32 %v825, %v826
      %828 = vst [vmem:[%s298] sm:$0x1] %v827
      %s829 = smul.u32 32, %s19
      %p830 = scmp.lt.s32.totalorder %s829, 63
      %s831 = scalar_select %p830, %s829, 63
      %s832 = smul.addr %s831, 8
      %s833 = scalar_lea.vmem %s5, %s832
      %p834 = scmp.lt.s32.totalorder %s19, 1
      %s835 = scalar_select %p834, %s19, 1
      %s836 = scalar_lea.vmem %s6, %s835
      %p837 = scmp.lt.s32.totalorder %s19, 1
      %s838 = scalar_select %p837, %s19, 1
      %s839 = scalar_lea.vmem %s7, %s838
      // Predicated region
      $region41: #{decoder_block_forward.6} parent=39 // pred_check
        %p840 = pneg %p147
      $region42: #{decoder_block_forward.6} parent=39 // pred_check_branch
        %842 = sbr.rel (%p840) target = $region44
      $region43: #{decoder_block_forward.6} parent=39 // pred_region
        %s843 = smul.u32 32, %s19
      $region44: #{decoder_block_forward.6} parent=39 // pred_fallthru
        _
      // Predicated region
      $region45: #{decoder_block_forward.6} parent=39 // pred_check
        %p844 = pneg %p173
      $region46: #{decoder_block_forward.6} parent=39 // pred_check_branch
        %846 = sbr.rel (%p844) target = $region48
      $region47: #{decoder_block_forward.6} parent=39 // pred_region
        _
      $region48: #{decoder_block_forward.6} parent=39 // pred_fallthru
        _
      // Predicated region
      $region49: #{decoder_block_forward.6} parent=39 // pred_check
        %p847 = pneg %p199
      $region50: #{decoder_block_forward.6} parent=39 // pred_check_branch
        %849 = sbr.rel (%p847) target = $region52
      $region51: #{decoder_block_forward.6} parent=39 // pred_region
        _
      $region52: #{decoder_block_forward.6} parent=39 // pred_fallthru
        _
    $region40: #{decoder_block_forward.6} parent=5 // pred_fallthru
      _
    %p850 = scmp.le.s32.totalorder 2, %s14
    // Predicated region
    $region53: #{decoder_block_forward.6} parent=5 // pred_check
      %p851 = pneg %p850
    $region54: #{decoder_block_forward.6} parent=5 // pred_check_branch
      %853 = sbr.rel (%p851) target = $region56
    $region55: #{decoder_block_forward.6} parent=5 // pred_region
      %s854 = ssub.s32 %s14, 2
      // Predicated region
      $region57: #{decoder_block_forward.6} parent=55 // pred_check
        %p855 = pneg %p153
      $region58: #{decoder_block_forward.6} parent=55 // pred_check_branch
        %857 = sbr.rel (%p855) target = $region60
      $region59: #{decoder_block_forward.6} parent=55 // pred_region
        %s858 = smul.u32 32, %s20
        %p859 = scmp.lt.s32.totalorder %s858, 63
        %s860 = scalar_select %p859, %s858, 63
        %s861 = smul.addr %s860, 8
        %s862 = scalar_lea.vmem %s5, %s861
      $region60: #{decoder_block_forward.6} parent=55 // pred_fallthru
        _
      // Predicated region
      $region61: #{decoder_block_forward.6} parent=55 // pred_check
        %p863 = pneg %p179
      $region62: #{decoder_block_forward.6} parent=55 // pred_check_branch
        %865 = sbr.rel (%p863) target = $region64
      $region63: #{decoder_block_forward.6} parent=55 // pred_region
        %p866 = scmp.lt.s32.totalorder %s20, 1
        %s867 = scalar_select %p866, %s20, 1
        %s868 = scalar_lea.vmem %s6, %s867
      $region64: #{decoder_block_forward.6} parent=55 // pred_fallthru
        _
      // Predicated region
      $region65: #{decoder_block_forward.6} parent=55 // pred_check
        %p869 = pneg %p205
      $region66: #{decoder_block_forward.6} parent=55 // pred_check_branch
        %871 = sbr.rel (%p869) target = $region68
      $region67: #{decoder_block_forward.6} parent=55 // pred_region
        %p872 = scmp.lt.s32.totalorder %s20, 1
        %s873 = scalar_select %p872, %s20, 1
        %s874 = scalar_lea.vmem %s7, %s873
      $region68: #{decoder_block_forward.6} parent=55 // pred_fallthru
        _
    $region56: #{decoder_block_forward.6} parent=5 // pred_fallthru
      _
  $region6: #{decoder_block_forward.6} parent=0 // loop_footer
    %s18 = sadd.s32 1, %s14
  $region7: #{decoder_block_forward.6} parent=0 // loop_footer_branch
    %13 = sbr.rel target = $region3
  $region8: #{decoder_block_forward.6} parent=0 // loop_exit
    _

</llo_original>
